<compile_context>
chip_gen: v7x
topology: tpu7x:2x2x1
jax: 0.10.0
libtpu: 0.0.40
codegen_flags: <defaults>
</compile_context>

<pallas_src>
import functools

import jax
import jax.numpy as jnp
import numpy as np
from jax.experimental import pallas as pl
from jax.experimental.pallas import tpu as pltpu

ITEM_SIZE = 22            # conv kernel height == input height
GAP = 5                   # conv kernel width
K_RAW = ITEM_SIZE * GAP   # 110
K_PAD = 128               # pad contraction dim (110 real + 1 bias column + 17 zeros)
C_CONV = 64 * 24          # 1536 conv output channels
H_FC = 512
N_OUT = 2
LANE = 128                # lane-dense padded output width
EPS = 1e-5
NEG_SLOPE = 0.2
VMEM_LIMIT_BYTES = 48 * 1024 * 1024   # fits v7x's 64 MiB physical VMEM with headroom


def _round_up(x, m):
    return (x + m - 1) // m * m


def _choose_btile(B, wp):
    """Batch-tile size: multiple of 8, M>=8, btile*wp <= ~2048 rows, >=2 tiles when possible."""
    rows_cap = 2048    # f32 conv activation <= ~12 MiB -> valid on v7x 64 MiB VMEM
    btile_cap = 256    # fc-matmul M; 256 saturates v6e/v7x MXU rows
    btile = max(8, min(btile_cap, (rows_cap // max(wp, 1)) // 8 * 8))
    btile = min(btile, _round_up(B, 8))
    if B >= 16 and _round_up(B, 8) <= btile:
        # Split a single over-large tile in two so the "parallel" grid axis can
        # shard across v7x's two TensorCores.
        btile = max(8, _round_up((B + 1) // 2, 8))
    return btile


# ----------------------------------------------------------------------------
# Fused kernel: conv-as-matmul (BN2d shift folded) + LeakyReLU + window max
#               + fc1 + BN1d shift + LeakyReLU + fc2, all in one grid step.
# ----------------------------------------------------------------------------
def fused_kernel(p_ref, wc_ref, w1_ref, sh1_ref, w2_ref, b2_ref, o_ref, *, btile, wp):
    # Conv (+ folded conv-bias/BN2d shift via the constant-1 K column) as one matmul
    # over the window-major (window*sample) M dimension.
    y = jnp.dot(p_ref[...], wc_ref[...],
                preferred_element_type=jnp.float32)            # (wp*btile, C)
    y = jnp.maximum(y, NEG_SLOPE * y)                          # LeakyReLU(0.2)
    # Window-major rows => width max is wp elementwise maxes over sublane-aligned
    # (btile, C) slabs (pure VPU, no cross-sublane XLU reduce / relayout).
    feat = jnp.max(y.reshape(wp, btile, C_CONV), axis=0)       # (btile, C)

    h = jnp.dot(feat.astype(jnp.bfloat16), w1_ref[...],
                preferred_element_type=jnp.float32)            # (btile, 512)
    h = h + sh1_ref[...]                                       # folded fc1 bias + BN1d shift (f32)
    h = jnp.maximum(h, NEG_SLOPE * h)                          # LeakyReLU(0.2)

    out = jnp.dot(h.astype(jnp.bfloat16), w2_ref[...],
                  preferred_element_type=jnp.float32)          # (btile, 128) lane-dense
    out = out + b2_ref[...]
    o_ref[...] = out.reshape(o_ref.shape)


def fused_forward(p2d, wc, w1s, shift1, w2p, b2p, *, btile, wp, num_tiles):
    kernel = functools.partial(fused_kernel, btile=btile, wp=wp)

    def const_spec(shape):
        # Grid-invariant operand: DMA'd once; single-buffered to free VMEM
        # (default double-buffering would reserve ~2x the ~2 MiB of weights).
        return pl.BlockSpec(shape, lambda b: (0,) * len(shape),
                            pipeline_mode=pl.Buffered(1))

    return pl.pallas_call(
        kernel,
        out_shape=jax.ShapeDtypeStruct((num_tiles, btile, LANE), jnp.float32),
        grid_spec=pltpu.PrefetchScalarGridSpec(
            num_scalar_prefetch=0,
            grid=(num_tiles,),
            in_specs=[
                pl.BlockSpec((btile * wp, K_PAD), lambda b: (b, 0)),
                const_spec((K_PAD, C_CONV)),
                const_spec((C_CONV, H_FC)),
                const_spec((1, H_FC)),
                const_spec((H_FC, LANE)),
                const_spec((1, LANE)),
            ],
            out_specs=pl.BlockSpec((1, btile, LANE), lambda b: (b, 0, 0)),
        ),
        compiler_params=pltpu.CompilerParams(
            dimension_semantics=("parallel",),
            vmem_limit_bytes=VMEM_LIMIT_BYTES,
        ),
    )(p2d, wc, w1s, shift1, w2p, b2p)


# ----------------------------------------------------------------------------
# Parameter construction (deterministic) and glue.
# ----------------------------------------------------------------------------
def init_params(key):
    ks = jax.random.split(key, 14)
    p = {}
    # Conv2d(1, 1536, (22, 5))
    p["conv_w"] = jax.random.normal(ks[0], (C_CONV, 1, ITEM_SIZE, GAP), jnp.float32) * 0.05
    p["conv_b"] = jax.random.normal(ks[1], (C_CONV,), jnp.float32) * 0.05
    # BatchNorm2d(1536) running stats + affine
    p["bn2_gamma"] = 1.0 + 0.1 * jax.random.normal(ks[2], (C_CONV,), jnp.float32)
    p["bn2_beta"] = 0.1 * jax.random.normal(ks[3], (C_CONV,), jnp.float32)
    p["bn2_mean"] = 0.1 * jax.random.normal(ks[4], (C_CONV,), jnp.float32)
    p["bn2_var"] = jnp.abs(jax.random.normal(ks[5], (C_CONV,), jnp.float32)) + 0.5
    # Linear(1536, 512)
    p["fc1_w"] = jax.random.normal(ks[6], (H_FC, C_CONV), jnp.float32) * 0.02
    p["fc1_b"] = jax.random.normal(ks[7], (H_FC,), jnp.float32) * 0.02
    # BatchNorm1d(512)
    p["bn1_gamma"] = 1.0 + 0.1 * jax.random.normal(ks[8], (H_FC,), jnp.float32)
    p["bn1_beta"] = 0.1 * jax.random.normal(ks[9], (H_FC,), jnp.float32)
    p["bn1_mean"] = 0.1 * jax.random.normal(ks[10], (H_FC,), jnp.float32)
    p["bn1_var"] = jnp.abs(jax.random.normal(ks[11], (H_FC,), jnp.float32)) + 0.5
    # Linear(512, 2)
    p["fc2_w"] = jax.random.normal(ks[12], (N_OUT, H_FC), jnp.float32) * 0.02
    p["fc2_b"] = jax.random.normal(ks[13], (N_OUT,), jnp.float32) * 0.02
    return p


def im2col(x):
    # x: (B, 1, 22, W) -> patches (B, W_out, 110), row-major over (kh, kw),
    # matching PyTorch's weight.reshape(C, 22*5) flattening.
    B, _, H, W = x.shape
    assert H == ITEM_SIZE
    W_out = W - GAP + 1
    x2 = x[:, 0]                                              # (B, 22, W)
    cols = [x2[:, :, kw:kw + W_out] for kw in range(GAP)]     # GAP(=5) slices, not W_out
    stacked = jnp.stack(cols, axis=2)                         # (B, 22, 5, W_out)
    return jnp.transpose(stacked, (0, 3, 1, 2)).reshape(B, W_out, K_RAW)


def pepcnn_forward(params, x):
    p = params
    B = x.shape[0]
    W = x.shape[3]
    assert W >= GAP, "need at least one conv window (W >= kernel width)"
    W_out = W - GAP + 1
    wp = _round_up(W_out, 8)

    btile = _choose_btile(B, wp)
    num_tiles = -(-B // btile)
    B_pad = num_tiles * btile

    # Patches: duplicate edge windows up to wp (max-invariant), append a
    # constant-1 column carrying the folded conv-bias + BN2d shift, zero-pad
    # K 111 -> 128, cast to bf16 (exact for one-hot inputs; f32 accumulation
    # happens inside the kernel).
    patches = im2col(x)                                                    # (B, W_out, 110)
    patches = jnp.pad(patches, ((0, 0), (0, wp - W_out), (0, 0)), mode="edge")
    ones = jnp.ones(patches.shape[:2] + (1,), patches.dtype)
    patches = jnp.concatenate([patches, ones], axis=-1)                    # (B, wp, 111)
    patches = jnp.pad(patches, ((0, 0), (0, 0), (0, K_PAD - K_RAW - 1)))   # (B, wp, 128)
    if B_pad > B:
        patches = jnp.pad(patches, ((0, B_pad - B), (0, 0), (0, 0)))

    # Window-major packing per batch tile: tile rows are ordered (window, sample)
    # so the in-kernel width max is a sublane-aligned elementwise max.
    p2d = (patches.reshape(num_tiles, btile, wp, K_PAD)
           .transpose(0, 2, 1, 3)
           .reshape(num_tiles * wp * btile, K_PAD)
           .astype(jnp.bfloat16))

    # Fold conv bias + BN2d into the conv weights: scale on the 110 real rows,
    # shift on the constant-1 row (row 110).
    scale2 = p["bn2_gamma"] / jnp.sqrt(p["bn2_var"] + EPS)
    shift2 = p["bn2_beta"] + (p["conv_b"] - p["bn2_mean"]) * scale2
    w_flat = p["conv_w"].reshape(C_CONV, K_RAW).T * scale2[None, :]        # (110, 1536)
    wc = jnp.concatenate([w_flat, shift2[None, :]], axis=0)                # (111, 1536)
    wc = jnp.pad(wc, ((0, K_PAD - K_RAW - 1), (0, 0))).astype(jnp.bfloat16)

    # Fold fc1 bias + BN1d into weight scale and an additive f32 shift.
    scale1 = p["bn1_gamma"] / jnp.sqrt(p["bn1_var"] + EPS)
    shift1 = p["bn1_beta"] + (p["fc1_b"] - p["bn1_mean"]) * scale1
    w1s = (p["fc1_w"].T * scale1[None, :]).astype(jnp.bfloat16)            # (1536, 512)

    # Lane-dense fc2: pad the 2 output logits out to 128 lanes, slice in wrapper.
    w2p = jnp.pad(p["fc2_w"].T, ((0, 0), (0, LANE - N_OUT))).astype(jnp.bfloat16)  # (512, 128)
    b2p = jnp.pad(p["fc2_b"], (0, LANE - N_OUT))[None, :].astype(jnp.float32)      # (1, 128)

    out = fused_forward(p2d, wc, w1s, shift1[None, :].astype(jnp.float32),
                        w2p, b2p, btile=btile, wp=wp, num_tiles=num_tiles)
    return out.reshape(B_pad, LANE)[:B, :N_OUT]


# Pure-JAX f32 reference for validation.
def pepcnn_reference(params, x):
    p = params
    patches = im2col(x)
    w_flat = p["conv_w"].reshape(C_CONV, K_RAW)
    conv = jnp.einsum("bwk,ck->bwc", patches, w_flat) + p["conv_b"]
    bn = (conv - p["bn2_mean"]) / jnp.sqrt(p["bn2_var"] + EPS) * p["bn2_gamma"] + p["bn2_beta"]
    act = jnp.where(bn > 0, bn, NEG_SLOPE * bn)
    feat = jnp.max(act, axis=1)                                            # (B, 1536)
    h = feat @ p["fc1_w"].T + p["fc1_b"]
    h = (h - p["bn1_mean"]) / jnp.sqrt(p["bn1_var"] + EPS) * p["bn1_gamma"] + p["bn1_beta"]
    h = jnp.where(h > 0, h, NEG_SLOPE * h)
    return h @ p["fc2_w"].T + p["fc2_b"]


if __name__ == "__main__":
    key = jax.random.PRNGKey(0)
    kp, kx1, kx2 = jax.random.split(key, 3)
    params = init_params(kp)

    # Small inputs consistent with the module: (B, 1, 22, W).
    #  - (2, 16): single tile, W_out=12 -> wp=16 (edge-padded windows).
    #  - (20, 18): exercises multi-tile grid (num_tiles=2) + batch padding.
    for B, W, kx in [(2, 16, kx1), (20, 18, kx2)]:
        x = jax.random.normal(kx, (B, 1, ITEM_SIZE, W), jnp.float32)
        out = jax.block_until_ready(pepcnn_forward(params, x))
        ref = jax.block_until_ready(pepcnn_reference(params, x))
        assert out.shape == (B, N_OUT), out.shape
        # bf16 matmul operands (f32 accumulation) -> looser tolerance vs f32 reference.
        np.testing.assert_allclose(np.asarray(out), np.asarray(ref), rtol=5e-2, atol=5e-2)

    print("KERNEL_OK")
</pallas_src>

<mosaic_0001>
module attributes {stable_mosaic.version = 11 : i64} {
  func.func @fused_kernel(%arg0: i32, %arg1: memref<128x128xbf16, #tpu.memory_space<vmem>>, %arg2: memref<128x1536xbf16, #tpu.memory_space<vmem>>, %arg3: memref<1536x512xbf16, #tpu.memory_space<vmem>>, %arg4: memref<1x512xf32, #tpu.memory_space<vmem>>, %arg5: memref<512x128xbf16, #tpu.memory_space<vmem>>, %arg6: memref<1x128xf32, #tpu.memory_space<vmem>>, %arg7: memref<1x8x128xf32, #tpu.memory_space<vmem>>) attributes {dimension_semantics = [#tpu.dimension_semantics<parallel>], iteration_bounds = array<i64: 1>, scalar_prefetch = 0 : i64, scratch_operands = 0 : i64, tpu.core_type = #tpu.core_type<tc>, window_params = [{transform_indices = @transform_0, window_bounds = array<i64: 128, 128>}, {pipeline_mode = #tpu.pipeline_mode<synchronous>, transform_indices = @transform_1, window_bounds = array<i64: 128, 1536>}, {pipeline_mode = #tpu.pipeline_mode<synchronous>, transform_indices = @transform_2, window_bounds = array<i64: 1536, 512>}, {pipeline_mode = #tpu.pipeline_mode<synchronous>, transform_indices = @transform_3, window_bounds = array<i64: 1, 512>}, {pipeline_mode = #tpu.pipeline_mode<synchronous>, transform_indices = @transform_4, window_bounds = array<i64: 512, 128>}, {pipeline_mode = #tpu.pipeline_mode<synchronous>, transform_indices = @transform_5, window_bounds = array<i64: 1, 128>}, {transform_indices = @transform_6, window_bounds = array<i64: 1, 8, 128>}]} {
    %c0 = arith.constant 0 : index
    %c0_0 = arith.constant 0 : index
    %0 = vector.load %arg1[%c0, %c0_0] : memref<128x128xbf16, #tpu.memory_space<vmem>>, vector<128x128xbf16>
    %c0_1 = arith.constant 0 : index
    %c0_2 = arith.constant 0 : index
    %1 = vector.load %arg2[%c0_1, %c0_2] : memref<128x1536xbf16, #tpu.memory_space<vmem>>, vector<128x1536xbf16>
    %cst = arith.constant dense<0.000000e+00> : vector<128x1536xf32>
    %2 = tpu.matmul %0, %1, %cst {dimension_numbers = #tpu.dot_dimension_numbers<[1], [0], [0], [1], [0, 0, 1, 1], [], []>} : vector<128x128xbf16>, vector<128x1536xbf16>, vector<128x1536xf32> -> vector<128x1536xf32>
    %cst_3 = arith.constant 2.000000e-01 : f32
    %3 = vector.broadcast %cst_3 : f32 to vector<128x1536xf32>
    %4 = arith.mulf %3, %2 : vector<128x1536xf32>
    %5 = arith.maximumf %2, %4 : vector<128x1536xf32>
    %6 = vector.shape_cast %5 : vector<128x1536xf32> to vector<16x8x1536xf32>
    %cst_4 = arith.constant dense<0xFF800000> : vector<8x1536xf32>
    %7 = vector.multi_reduction <maximumf>, %6, %cst_4 [0] : vector<16x8x1536xf32> to vector<8x1536xf32>
    %8 = arith.truncf %7 : vector<8x1536xf32> to vector<8x1536xbf16>
    %c0_5 = arith.constant 0 : index
    %c0_6 = arith.constant 0 : index
    %9 = vector.load %arg3[%c0_5, %c0_6] : memref<1536x512xbf16, #tpu.memory_space<vmem>>, vector<1536x512xbf16>
    %cst_7 = arith.constant dense<0.000000e+00> : vector<8x512xf32>
    %10 = tpu.matmul %8, %9, %cst_7 {dimension_numbers = #tpu.dot_dimension_numbers<[1], [0], [0], [1], [0, 0, 1, 1], [], []>} : vector<8x1536xbf16>, vector<1536x512xbf16>, vector<8x512xf32> -> vector<8x512xf32>
    %c0_8 = arith.constant 0 : index
    %c0_9 = arith.constant 0 : index
    %11 = vector.load %arg4[%c0_8, %c0_9] : memref<1x512xf32, #tpu.memory_space<vmem>>, vector<1x512xf32>
    %12 = vector.broadcast %11 : vector<1x512xf32> to vector<8x512xf32>
    %13 = arith.addf %10, %12 : vector<8x512xf32>
    %cst_10 = arith.constant 2.000000e-01 : f32
    %14 = vector.broadcast %cst_10 : f32 to vector<8x512xf32>
    %15 = arith.mulf %14, %13 : vector<8x512xf32>
    %16 = arith.maximumf %13, %15 : vector<8x512xf32>
    %17 = arith.truncf %16 : vector<8x512xf32> to vector<8x512xbf16>
    %c0_11 = arith.constant 0 : index
    %c0_12 = arith.constant 0 : index
    %18 = vector.load %arg5[%c0_11, %c0_12] : memref<512x128xbf16, #tpu.memory_space<vmem>>, vector<512x128xbf16>
    %cst_13 = arith.constant dense<0.000000e+00> : vector<8x128xf32>
    %19 = tpu.matmul %17, %18, %cst_13 {dimension_numbers = #tpu.dot_dimension_numbers<[1], [0], [0], [1], [0, 0, 1, 1], [], []>} : vector<8x512xbf16>, vector<512x128xbf16>, vector<8x128xf32> -> vector<8x128xf32>
    %c0_14 = arith.constant 0 : index
    %c0_15 = arith.constant 0 : index
    %20 = vector.load %arg6[%c0_14, %c0_15] : memref<1x128xf32, #tpu.memory_space<vmem>>, vector<1x128xf32>
    %21 = vector.broadcast %20 : vector<1x128xf32> to vector<8x128xf32>
    %22 = arith.addf %19, %21 : vector<8x128xf32>
    %23 = vector.shape_cast %22 : vector<8x128xf32> to vector<1x8x128xf32>
    %c0_16 = arith.constant 0 : index
    %c0_17 = arith.constant 0 : index
    %c0_18 = arith.constant 0 : index
    %24 = vector.load %arg7[%c0_16, %c0_17, %c0_18] : memref<1x8x128xf32, #tpu.memory_space<vmem>>, vector<1x8x128xf32>
    tpu.vector_store %arg7[%c0_16, %c0_17, %c0_18], %23 {strides = array<i32>} : memref<1x8x128xf32, #tpu.memory_space<vmem>>, vector<1x8x128xf32>,
    return
  }
  func.func @transform_0(%arg0: i32) -> (i32, i32) {
    %c0_i32 = arith.constant 0 : i32
    %c0_i32_0 = arith.constant 0 : i32
    return %arg0, %c0_i32 : i32, i32
  }
  func.func @transform_1(%arg0: i32) -> (i32, i32) {
    %c0_i32 = arith.constant 0 : i32
    %c0_i32_0 = arith.constant 0 : i32
    %c0_i32_1 = arith.constant 0 : i32
    return %c0_i32, %c0_i32_0 : i32, i32
  }
  func.func @transform_2(%arg0: i32) -> (i32, i32) {
    %c0_i32 = arith.constant 0 : i32
    %c0_i32_0 = arith.constant 0 : i32
    %c0_i32_1 = arith.constant 0 : i32
    return %c0_i32, %c0_i32_0 : i32, i32
  }
  func.func @transform_3(%arg0: i32) -> (i32, i32) {
    %c0_i32 = arith.constant 0 : i32
    %c0_i32_0 = arith.constant 0 : i32
    %c0_i32_1 = arith.constant 0 : i32
    return %c0_i32, %c0_i32_0 : i32, i32
  }
  func.func @transform_4(%arg0: i32) -> (i32, i32) {
    %c0_i32 = arith.constant 0 : i32
    %c0_i32_0 = arith.constant 0 : i32
    %c0_i32_1 = arith.constant 0 : i32
    return %c0_i32, %c0_i32_0 : i32, i32
  }
  func.func @transform_5(%arg0: i32) -> (i32, i32) {
    %c0_i32 = arith.constant 0 : i32
    %c0_i32_0 = arith.constant 0 : i32
    %c0_i32_1 = arith.constant 0 : i32
    return %c0_i32, %c0_i32_0 : i32, i32
  }
  func.func @transform_6(%arg0: i32) -> (i32, i32, i32) {
    %c0_i32 = arith.constant 0 : i32
    %c0_i32_0 = arith.constant 0 : i32
    %c0_i32_1 = arith.constant 0 : i32
    return %arg0, %c0_i32, %c0_i32_0 : i32, i32, i32
  }
}

</mosaic_0001>

<llo_original>
// kernel: tpu_custom_call.1
$region0: #{tpu_custom_call.1}
  #allocation0 [shape = 'u32[]', space=smem, size = 0x4, offset = 0x4, fixed_abs, tag = 'smem constant byte address 0x4 - core index']
  #allocation1 [shape = 'u32[144,128]{1,0:T(1,128)}', space=vmem, size = 0x12000, scoped, tag = 'internal scratch']
  %s0 = inlined_call_operand.hbm [shape: bf16[128,128], index: 0, kind: input, shape index: {}]
  %s1 = inlined_call_operand.hbm [shape: bf16[128,1536], index: 1, kind: input, shape index: {}]
  %s2 = inlined_call_operand.hbm [shape: bf16[1536,512], index: 2, kind: input, shape index: {}]
  %s3 = inlined_call_operand.hbm [shape: f32[1,512], index: 3, kind: input, shape index: {}]
  %s4 = inlined_call_operand.hbm [shape: bf16[512,128], index: 4, kind: input, shape index: {}]
  %s5 = inlined_call_operand.hbm [shape: f32[1,128], index: 5, kind: input, shape index: {}]
  %s6 = inlined_call_operand.hbm [shape: f32[1,8,128], index: 6, kind: output, shape index: {}]
  %s7 = sld [smem:[#allocation0]]
  $region58: #{tpu_custom_call.1} parent=0
    _
  %s9 = ssub.s32 1, %s7
  %s10 = scalar_select 0, %s9, %s7
  $region1: #{tpu_custom_call.1} parent=0
    #allocation2 [shape = 'u8[32768]{0}', space=vmem, size = 0x8000, scoped, tag = 'input window, operand 0, single buffered']
    #allocation3 [shape = 's32[1]{0}', space=sflag, size = 0x4, scoped, tag = 'scoped memory for tpu_custom_call.1']
    #allocation4 [shape = 's32[1]{0}', space=sflag, size = 0x4, scoped, tag = 'scoped memory for tpu_custom_call.1']
    #allocation5 [shape = 'u8[393216]{0}', space=vmem, size = 0x60000, scoped, tag = 'input window, operand 1, single buffered']
    #allocation6 [shape = 's32[1]{0}', space=sflag, size = 0x4, scoped, tag = 'scoped memory for tpu_custom_call.1']
    #allocation7 [shape = 'u8[1572864]{0}', space=vmem, size = 0x180000, scoped, tag = 'input window, operand 2, single buffered']
    #allocation8 [shape = 'u8[2048]{0}', space=vmem, size = 0x800, scoped, tag = 'input window, operand 3, single buffered']
    #allocation9 [shape = 's32[1]{0}', space=sflag, size = 0x4, scoped, tag = 'scoped memory for tpu_custom_call.1']
    #allocation10 [shape = 'u8[131072]{0}', space=vmem, size = 0x20000, scoped, tag = 'input window, operand 4, single buffered']
    #allocation11 [shape = 'u8[512]{0}', space=vmem, size = 0x400, scoped, tag = 'input window, operand 5, single buffered']
    #allocation12 [shape = 's32[1]{0}', space=sflag, size = 0x4, scoped, tag = 'scoped memory for tpu_custom_call.1']
    #allocation13 [shape = 'u8[4096]{0}', space=vmem, size = 0x1000, scoped, tag = 'output window, operand 0, single buffered']
    %11 = vsyncpa [#allocation3], 0
    %12 = vsyncpa [#allocation6], 0
    %13 = vsyncpa [#allocation9], 0
    %14 = vsyncpa [#allocation12], 0
    %15 = vsyncpa [#allocation4], 0
    // Predicated region
    $region2: #{tpu_custom_call.1} parent=1 // pred_check
      _
    $region3: #{tpu_custom_call.1} parent=1 // pred_check_branch
      %17 = sbr.rel (0) target = $region5
    $region4: #{tpu_custom_call.1} parent=1 // pred_region
      %s19 = ssub.s32 1024, 1024
      %20 = vsyncadd [#allocation3], %s19
      %s21 = sshll.u32 [#allocation2], 4
      %s22 = int_to_ptr.vmem [resolvable:$true] %s21
      %27 = dma.hbm_to_vmem [thread:$0]  %s0, 1024, %s22, [#allocation3], 64, 64, 4
    $region5: #{tpu_custom_call.1} parent=1 // pred_fallthru
      _
    // Predicated region
    $region6: #{tpu_custom_call.1} parent=1 // pred_check
      _
    $region7: #{tpu_custom_call.1} parent=1 // pred_check_branch
      %29 = sbr.rel (0) target = $region9
    $region8: #{tpu_custom_call.1} parent=1 // pred_region
      %s31 = ssub.s32 12288, 12288
      %32 = vsyncadd [#allocation6], %s31
      %s33 = sshll.u32 [#allocation5], 4
      %s34 = int_to_ptr.vmem [resolvable:$true] %s33
      %39 = dma.hbm_to_vmem [thread:$0]  %s1, 12288, %s34, [#allocation6], 768, 768, 48
    $region9: #{tpu_custom_call.1} parent=1 // pred_fallthru
      _
    // Predicated region
    $region10: #{tpu_custom_call.1} parent=1 // pred_check
      _
    $region11: #{tpu_custom_call.1} parent=1 // pred_check_branch
      %41 = sbr.rel (0) target = $region13
    $region12: #{tpu_custom_call.1} parent=1 // pred_region
      %s43 = ssub.s32 49152, 49152
      %44 = vsyncadd [#allocation6], %s43
      %s45 = sshll.u32 [#allocation7], 4
      %s46 = int_to_ptr.vmem [resolvable:$true] %s45
      %51 = dma.hbm_to_vmem [thread:$0]  %s2, 49152, %s46, [#allocation6], 256, 256, 16
    $region13: #{tpu_custom_call.1} parent=1 // pred_fallthru
      _
    // Predicated region
    $region14: #{tpu_custom_call.1} parent=1 // pred_check
      _
    $region15: #{tpu_custom_call.1} parent=1 // pred_check_branch
      %53 = sbr.rel (0) target = $region17
    $region16: #{tpu_custom_call.1} parent=1 // pred_region
      %s55 = ssub.s32 64, 64
      %56 = vsyncadd [#allocation9], %s55
      %s58 = sshll.u32 [#allocation8], 4
      %s59 = int_to_ptr.vmem [resolvable:$true] %s58
      %61 = dma.hbm_to_vmem [thread:$0]  %s3, 64, %s59, [#allocation9]
    $region17: #{tpu_custom_call.1} parent=1 // pred_fallthru
      _
    // Predicated region
    $region18: #{tpu_custom_call.1} parent=1 // pred_check
      _
    $region19: #{tpu_custom_call.1} parent=1 // pred_check_branch
      %63 = sbr.rel (0) target = $region21
    $region20: #{tpu_custom_call.1} parent=1 // pred_region
      %s65 = ssub.s32 4096, 4096
      %66 = vsyncadd [#allocation9], %s65
      %s67 = sshll.u32 [#allocation10], 4
      %s68 = int_to_ptr.vmem [resolvable:$true] %s67
      %73 = dma.hbm_to_vmem [thread:$0]  %s4, 4096, %s68, [#allocation9], 64, 64, 4
    $region21: #{tpu_custom_call.1} parent=1 // pred_fallthru
      _
    // Predicated region
    $region22: #{tpu_custom_call.1} parent=1 // pred_check
      _
    $region23: #{tpu_custom_call.1} parent=1 // pred_check_branch
      %75 = sbr.rel (0) target = $region25
    $region24: #{tpu_custom_call.1} parent=1 // pred_region
      %s77 = ssub.s32 16, 16
      %78 = vsyncadd [#allocation12], %s77
      %s80 = sshll.u32 [#allocation11], 4
      %s81 = int_to_ptr.vmem [resolvable:$true] %s80
      %83 = dma.hbm_to_vmem [thread:$0]  %s5, 16, %s81, [#allocation12]
    $region25: #{tpu_custom_call.1} parent=1 // pred_fallthru
      _
    // Predicated region
    $region26: #{tpu_custom_call.1} parent=1 // pred_check
      _
    $region27: #{tpu_custom_call.1} parent=1 // pred_check_branch
      %85 = sbr.rel (0) target = $region29
    $region28: #{tpu_custom_call.1} parent=1 // pred_region
      %86 = dma.done [#allocation3], 1024
    $region29: #{tpu_custom_call.1} parent=1 // pred_fallthru
      _
    // Predicated region
    $region30: #{tpu_custom_call.1} parent=1 // pred_check
      _
    $region31: #{tpu_custom_call.1} parent=1 // pred_check_branch
      %88 = sbr.rel (0) target = $region33
    $region32: #{tpu_custom_call.1} parent=1 // pred_region
      %89 = dma.done [#allocation6], 12288
    $region33: #{tpu_custom_call.1} parent=1 // pred_fallthru
      _
    // Predicated region
    $region34: #{tpu_custom_call.1} parent=1 // pred_check
      _
    $region35: #{tpu_custom_call.1} parent=1 // pred_check_branch
      %91 = sbr.rel (0) target = $region37
    $region36: #{tpu_custom_call.1} parent=1 // pred_region
      %92 = dma.done [#allocation6], 49152
    $region37: #{tpu_custom_call.1} parent=1 // pred_fallthru
      _
    // Predicated region
    $region38: #{tpu_custom_call.1} parent=1 // pred_check
      _
    $region39: #{tpu_custom_call.1} parent=1 // pred_check_branch
      %94 = sbr.rel (0) target = $region41
    $region40: #{tpu_custom_call.1} parent=1 // pred_region
      %95 = dma.done [#allocation9], 64
    $region41: #{tpu_custom_call.1} parent=1 // pred_fallthru
      _
    // Predicated region
    $region42: #{tpu_custom_call.1} parent=1 // pred_check
      _
    $region43: #{tpu_custom_call.1} parent=1 // pred_check_branch
      %97 = sbr.rel (0) target = $region45
    $region44: #{tpu_custom_call.1} parent=1 // pred_region
      %98 = dma.done [#allocation9], 4096
    $region45: #{tpu_custom_call.1} parent=1 // pred_fallthru
      _
    // Predicated region
    $region46: #{tpu_custom_call.1} parent=1 // pred_check
      _
    $region47: #{tpu_custom_call.1} parent=1 // pred_check_branch
      %100 = sbr.rel (0) target = $region49
    $region48: #{tpu_custom_call.1} parent=1 // pred_region
      %101 = dma.done [#allocation12], 16
    $region49: #{tpu_custom_call.1} parent=1 // pred_fallthru
      _
    %v103 = vld [vmem:[#allocation2] sm:$0xf]
    %v104 = vld [vmem:[#allocation2 + $0x4] sm:$0xf]
    %v105 = vld [vmem:[#allocation2 + $0x8] sm:$0xf]
    %v106 = vld [vmem:[#allocation2 + $0xc] sm:$0xf]
    %v107 = vld [vmem:[#allocation2 + $0x10] sm:$0xf]
    %v108 = vld [vmem:[#allocation2 + $0x14] sm:$0xf]
    %v109 = vld [vmem:[#allocation2 + $0x18] sm:$0xf]
    %v110 = vld [vmem:[#allocation2 + $0x1c] sm:$0xf]
    %v111 = vld [vmem:[#allocation2 + $0x20] sm:$0xf]
    %v112 = vld [vmem:[#allocation2 + $0x24] sm:$0xf]
    %v113 = vld [vmem:[#allocation2 + $0x28] sm:$0xf]
    %v114 = vld [vmem:[#allocation2 + $0x2c] sm:$0xf]
    %v115 = vld [vmem:[#allocation2 + $0x30] sm:$0xf]
    %v116 = vld [vmem:[#allocation2 + $0x34] sm:$0xf]
    %v117 = vld [vmem:[#allocation2 + $0x38] sm:$0xf]
    %v118 = vld [vmem:[#allocation2 + $0x3c] sm:$0xf]
    %v119 = vld [vmem:[#allocation5] sm:$0xff]
    %v120 = vld [vmem:[#allocation5 + $0x8] sm:$0xff]
    %v121 = vld [vmem:[#allocation5 + $0x10] sm:$0xff]
    %v122 = vld [vmem:[#allocation5 + $0x18] sm:$0xff]
    %v123 = vld [vmem:[#allocation5 + $0x20] sm:$0xff]
    %v124 = vld [vmem:[#allocation5 + $0x28] sm:$0xff]
    %v125 = vld [vmem:[#allocation5 + $0x30] sm:$0xff]
    %v126 = vld [vmem:[#allocation5 + $0x38] sm:$0xff]
    %v127 = vld [vmem:[#allocation5 + $0x40] sm:$0xff]
    %v128 = vld [vmem:[#allocation5 + $0x48] sm:$0xff]
    %v129 = vld [vmem:[#allocation5 + $0x50] sm:$0xff]
    %v130 = vld [vmem:[#allocation5 + $0x58] sm:$0xff]
    %v131 = vld [vmem:[#allocation5 + $0x60] sm:$0xff]
    %v132 = vld [vmem:[#allocation5 + $0x68] sm:$0xff]
    %v133 = vld [vmem:[#allocation5 + $0x70] sm:$0xff]
    %v134 = vld [vmem:[#allocation5 + $0x78] sm:$0xff]
    %v135 = vld [vmem:[#allocation5 + $0x80] sm:$0xff]
    %v136 = vld [vmem:[#allocation5 + $0x88] sm:$0xff]
    %v137 = vld [vmem:[#allocation5 + $0x90] sm:$0xff]
    %v138 = vld [vmem:[#allocation5 + $0x98] sm:$0xff]
    %v139 = vld [vmem:[#allocation5 + $0xa0] sm:$0xff]
    %v140 = vld [vmem:[#allocation5 + $0xa8] sm:$0xff]
    %v141 = vld [vmem:[#allocation5 + $0xb0] sm:$0xff]
    %v142 = vld [vmem:[#allocation5 + $0xb8] sm:$0xff]
    %v143 = vld [vmem:[#allocation5 + $0xc0] sm:$0xff]
    %v144 = vld [vmem:[#allocation5 + $0xc8] sm:$0xff]
    %v145 = vld [vmem:[#allocation5 + $0xd0] sm:$0xff]
    %v146 = vld [vmem:[#allocation5 + $0xd8] sm:$0xff]
    %v147 = vld [vmem:[#allocation5 + $0xe0] sm:$0xff]
    %v148 = vld [vmem:[#allocation5 + $0xe8] sm:$0xff]
    %v149 = vld [vmem:[#allocation5 + $0xf0] sm:$0xff]
    %v150 = vld [vmem:[#allocation5 + $0xf8] sm:$0xff]
    %v151 = vld [vmem:[#allocation5 + $0x100] sm:$0xff]
    %v152 = vld [vmem:[#allocation5 + $0x108] sm:$0xff]
    %v153 = vld [vmem:[#allocation5 + $0x110] sm:$0xff]
    %v154 = vld [vmem:[#allocation5 + $0x118] sm:$0xff]
    %v155 = vld [vmem:[#allocation5 + $0x120] sm:$0xff]
    %v156 = vld [vmem:[#allocation5 + $0x128] sm:$0xff]
    %v157 = vld [vmem:[#allocation5 + $0x130] sm:$0xff]
    %v158 = vld [vmem:[#allocation5 + $0x138] sm:$0xff]
    %v159 = vld [vmem:[#allocation5 + $0x140] sm:$0xff]
    %v160 = vld [vmem:[#allocation5 + $0x148] sm:$0xff]
    %v161 = vld [vmem:[#allocation5 + $0x150] sm:$0xff]
    %v162 = vld [vmem:[#allocation5 + $0x158] sm:$0xff]
    %v163 = vld [vmem:[#allocation5 + $0x160] sm:$0xff]
    %v164 = vld [vmem:[#allocation5 + $0x168] sm:$0xff]
    %v165 = vld [vmem:[#allocation5 + $0x170] sm:$0xff]
    %v166 = vld [vmem:[#allocation5 + $0x178] sm:$0xff]
    %v167 = vld [vmem:[#allocation5 + $0x180] sm:$0xff]
    %v168 = vld [vmem:[#allocation5 + $0x188] sm:$0xff]
    %v169 = vld [vmem:[#allocation5 + $0x190] sm:$0xff]
    %v170 = vld [vmem:[#allocation5 + $0x198] sm:$0xff]
    %v171 = vld [vmem:[#allocation5 + $0x1a0] sm:$0xff]
    %v172 = vld [vmem:[#allocation5 + $0x1a8] sm:$0xff]
    %v173 = vld [vmem:[#allocation5 + $0x1b0] sm:$0xff]
    %v174 = vld [vmem:[#allocation5 + $0x1b8] sm:$0xff]
    %v175 = vld [vmem:[#allocation5 + $0x1c0] sm:$0xff]
    %v176 = vld [vmem:[#allocation5 + $0x1c8] sm:$0xff]
    %v177 = vld [vmem:[#allocation5 + $0x1d0] sm:$0xff]
    %v178 = vld [vmem:[#allocation5 + $0x1d8] sm:$0xff]
    %v179 = vld [vmem:[#allocation5 + $0x1e0] sm:$0xff]
    %v180 = vld [vmem:[#allocation5 + $0x1e8] sm:$0xff]
    %v181 = vld [vmem:[#allocation5 + $0x1f0] sm:$0xff]
    %v182 = vld [vmem:[#allocation5 + $0x1f8] sm:$0xff]
    %v183 = vld [vmem:[#allocation5 + $0x200] sm:$0xff]
    %v184 = vld [vmem:[#allocation5 + $0x208] sm:$0xff]
    %v185 = vld [vmem:[#allocation5 + $0x210] sm:$0xff]
    %v186 = vld [vmem:[#allocation5 + $0x218] sm:$0xff]
    %v187 = vld [vmem:[#allocation5 + $0x220] sm:$0xff]
    %v188 = vld [vmem:[#allocation5 + $0x228] sm:$0xff]
    %v189 = vld [vmem:[#allocation5 + $0x230] sm:$0xff]
    %v190 = vld [vmem:[#allocation5 + $0x238] sm:$0xff]
    %v191 = vld [vmem:[#allocation5 + $0x240] sm:$0xff]
    %v192 = vld [vmem:[#allocation5 + $0x248] sm:$0xff]
    %v193 = vld [vmem:[#allocation5 + $0x250] sm:$0xff]
    %v194 = vld [vmem:[#allocation5 + $0x258] sm:$0xff]
    %v195 = vld [vmem:[#allocation5 + $0x260] sm:$0xff]
    %v196 = vld [vmem:[#allocation5 + $0x268] sm:$0xff]
    %v197 = vld [vmem:[#allocation5 + $0x270] sm:$0xff]
    %v198 = vld [vmem:[#allocation5 + $0x278] sm:$0xff]
    %v199 = vld [vmem:[#allocation5 + $0x280] sm:$0xff]
    %v200 = vld [vmem:[#allocation5 + $0x288] sm:$0xff]
    %v201 = vld [vmem:[#allocation5 + $0x290] sm:$0xff]
    %v202 = vld [vmem:[#allocation5 + $0x298] sm:$0xff]
    %v203 = vld [vmem:[#allocation5 + $0x2a0] sm:$0xff]
    %v204 = vld [vmem:[#allocation5 + $0x2a8] sm:$0xff]
    %v205 = vld [vmem:[#allocation5 + $0x2b0] sm:$0xff]
    %v206 = vld [vmem:[#allocation5 + $0x2b8] sm:$0xff]
    %v207 = vld [vmem:[#allocation5 + $0x2c0] sm:$0xff]
    %v208 = vld [vmem:[#allocation5 + $0x2c8] sm:$0xff]
    %v209 = vld [vmem:[#allocation5 + $0x2d0] sm:$0xff]
    %v210 = vld [vmem:[#allocation5 + $0x2d8] sm:$0xff]
    %v211 = vld [vmem:[#allocation5 + $0x2e0] sm:$0xff]
    %v212 = vld [vmem:[#allocation5 + $0x2e8] sm:$0xff]
    %v213 = vld [vmem:[#allocation5 + $0x2f0] sm:$0xff]
    %v214 = vld [vmem:[#allocation5 + $0x2f8] sm:$0xff]
    %v231 = vunpack.c.l.b16 %v103
    %v232 = vunpack.c.l.b16 %v104
    %v233 = vunpack.c.l.b16 %v105
    %v234 = vunpack.c.l.b16 %v106
    %v235 = vunpack.c.l.b16 %v107
    %v236 = vunpack.c.l.b16 %v108
    %v237 = vunpack.c.l.b16 %v109
    %v238 = vunpack.c.l.b16 %v110
    %v239 = vunpack.c.l.b16 %v111
    %v240 = vunpack.c.l.b16 %v112
    %v241 = vunpack.c.l.b16 %v113
    %v242 = vunpack.c.l.b16 %v114
    %v243 = vunpack.c.l.b16 %v115
    %v244 = vunpack.c.l.b16 %v116
    %v245 = vunpack.c.l.b16 %v117
    %v246 = vunpack.c.l.b16 %v118
    %v247 = vpack.c.b16 %v232, %v231
    %v248 = vpack.c.b16 %v234, %v233
    %v249 = vpack.c.b16 %v236, %v235
    %v250 = vpack.c.b16 %v238, %v237
    %v251 = vpack.c.b16 %v240, %v239
    %v252 = vpack.c.b16 %v242, %v241
    %v253 = vpack.c.b16 %v244, %v243
    %v254 = vpack.c.b16 %v246, %v245
    %v359 = vunpack.c.l.b16 %v119
    %v360 = vunpack.c.h.b16 %v119
    %v361 = vunpack.c.l.b16 %v120
    %v362 = vunpack.c.h.b16 %v120
    %v363 = vunpack.c.l.b16 %v121
    %v364 = vunpack.c.h.b16 %v121
    %v365 = vunpack.c.l.b16 %v122
    %v366 = vunpack.c.h.b16 %v122
    %v367 = vunpack.c.l.b16 %v123
    %v368 = vunpack.c.h.b16 %v123
    %v369 = vunpack.c.l.b16 %v124
    %v370 = vunpack.c.h.b16 %v124
    %v371 = vunpack.c.l.b16 %v125
    %v372 = vunpack.c.h.b16 %v125
    %v373 = vunpack.c.l.b16 %v126
    %v374 = vunpack.c.h.b16 %v126
    %v375 = vunpack.c.l.b16 %v127
    %v376 = vunpack.c.h.b16 %v127
    %v377 = vunpack.c.l.b16 %v128
    %v378 = vunpack.c.h.b16 %v128
    %v379 = vunpack.c.l.b16 %v129
    %v380 = vunpack.c.h.b16 %v129
    %v381 = vunpack.c.l.b16 %v130
    %v382 = vunpack.c.h.b16 %v130
    %v383 = vunpack.c.l.b16 %v131
    %v384 = vunpack.c.h.b16 %v131
    %v385 = vunpack.c.l.b16 %v132
    %v386 = vunpack.c.h.b16 %v132
    %v387 = vunpack.c.l.b16 %v133
    %v388 = vunpack.c.h.b16 %v133
    %v389 = vunpack.c.l.b16 %v134
    %v390 = vunpack.c.h.b16 %v134
    %v391 = vunpack.c.l.b16 %v135
    %v392 = vunpack.c.h.b16 %v135
    %v393 = vunpack.c.l.b16 %v136
    %v394 = vunpack.c.h.b16 %v136
    %v395 = vunpack.c.l.b16 %v137
    %v396 = vunpack.c.h.b16 %v137
    %v397 = vunpack.c.l.b16 %v138
    %v398 = vunpack.c.h.b16 %v138
    %v399 = vunpack.c.l.b16 %v139
    %v400 = vunpack.c.h.b16 %v139
    %v401 = vunpack.c.l.b16 %v140
    %v402 = vunpack.c.h.b16 %v140
    %v403 = vunpack.c.l.b16 %v141
    %v404 = vunpack.c.h.b16 %v141
    %v405 = vunpack.c.l.b16 %v142
    %v406 = vunpack.c.h.b16 %v142
    %v407 = vunpack.c.l.b16 %v143
    %v408 = vunpack.c.h.b16 %v143
    %v409 = vunpack.c.l.b16 %v144
    %v410 = vunpack.c.h.b16 %v144
    %v411 = vunpack.c.l.b16 %v145
    %v412 = vunpack.c.h.b16 %v145
    %v413 = vunpack.c.l.b16 %v146
    %v414 = vunpack.c.h.b16 %v146
    %v415 = vunpack.c.l.b16 %v147
    %v416 = vunpack.c.h.b16 %v147
    %v417 = vunpack.c.l.b16 %v148
    %v418 = vunpack.c.h.b16 %v148
    %v419 = vunpack.c.l.b16 %v149
    %v420 = vunpack.c.h.b16 %v149
    %v421 = vunpack.c.l.b16 %v150
    %v422 = vunpack.c.h.b16 %v150
    %v423 = vunpack.c.l.b16 %v151
    %v424 = vunpack.c.h.b16 %v151
    %v425 = vunpack.c.l.b16 %v152
    %v426 = vunpack.c.h.b16 %v152
    %v427 = vunpack.c.l.b16 %v153
    %v428 = vunpack.c.h.b16 %v153
    %v429 = vunpack.c.l.b16 %v154
    %v430 = vunpack.c.h.b16 %v154
    %v431 = vunpack.c.l.b16 %v155
    %v432 = vunpack.c.h.b16 %v155
    %v433 = vunpack.c.l.b16 %v156
    %v434 = vunpack.c.h.b16 %v156
    %v435 = vunpack.c.l.b16 %v157
    %v436 = vunpack.c.h.b16 %v157
    %v437 = vunpack.c.l.b16 %v158
    %v438 = vunpack.c.h.b16 %v158
    %v439 = vunpack.c.l.b16 %v159
    %v440 = vunpack.c.h.b16 %v159
    %v441 = vunpack.c.l.b16 %v160
    %v442 = vunpack.c.h.b16 %v160
    %v443 = vunpack.c.l.b16 %v161
    %v444 = vunpack.c.h.b16 %v161
    %v445 = vunpack.c.l.b16 %v162
    %v446 = vunpack.c.h.b16 %v162
    %v447 = vunpack.c.l.b16 %v163
    %v448 = vunpack.c.h.b16 %v163
    %v449 = vunpack.c.l.b16 %v164
    %v450 = vunpack.c.h.b16 %v164
    %v451 = vunpack.c.l.b16 %v165
    %v452 = vunpack.c.h.b16 %v165
    %v453 = vunpack.c.l.b16 %v166
    %v454 = vunpack.c.h.b16 %v166
    %v455 = vunpack.c.l.b16 %v167
    %v456 = vunpack.c.h.b16 %v167
    %v457 = vunpack.c.l.b16 %v168
    %v458 = vunpack.c.h.b16 %v168
    %v459 = vunpack.c.l.b16 %v169
    %v460 = vunpack.c.h.b16 %v169
    %v461 = vunpack.c.l.b16 %v170
    %v462 = vunpack.c.h.b16 %v170
    %v463 = vunpack.c.l.b16 %v171
    %v464 = vunpack.c.h.b16 %v171
    %v465 = vunpack.c.l.b16 %v172
    %v466 = vunpack.c.h.b16 %v172
    %v467 = vunpack.c.l.b16 %v173
    %v468 = vunpack.c.h.b16 %v173
    %v469 = vunpack.c.l.b16 %v174
    %v470 = vunpack.c.h.b16 %v174
    %v471 = vunpack.c.l.b16 %v175
    %v472 = vunpack.c.h.b16 %v175
    %v473 = vunpack.c.l.b16 %v176
    %v474 = vunpack.c.h.b16 %v176
    %v475 = vunpack.c.l.b16 %v177
    %v476 = vunpack.c.h.b16 %v177
    %v477 = vunpack.c.l.b16 %v178
    %v478 = vunpack.c.h.b16 %v178
    %v479 = vunpack.c.l.b16 %v179
    %v480 = vunpack.c.h.b16 %v179
    %v481 = vunpack.c.l.b16 %v180
    %v482 = vunpack.c.h.b16 %v180
    %v483 = vunpack.c.l.b16 %v181
    %v484 = vunpack.c.h.b16 %v181
    %v485 = vunpack.c.l.b16 %v182
    %v486 = vunpack.c.h.b16 %v182
    %v487 = vunpack.c.l.b16 %v183
    %v488 = vunpack.c.h.b16 %v183
    %v489 = vunpack.c.l.b16 %v184
    %v490 = vunpack.c.h.b16 %v184
    %v491 = vunpack.c.l.b16 %v185
    %v492 = vunpack.c.h.b16 %v185
    %v493 = vunpack.c.l.b16 %v186
    %v494 = vunpack.c.h.b16 %v186
    %v495 = vunpack.c.l.b16 %v187
    %v496 = vunpack.c.h.b16 %v187
    %v497 = vunpack.c.l.b16 %v188
    %v498 = vunpack.c.h.b16 %v188
    %v499 = vunpack.c.l.b16 %v189
    %v500 = vunpack.c.h.b16 %v189
    %v501 = vunpack.c.l.b16 %v190
    %v502 = vunpack.c.h.b16 %v190
    %v503 = vunpack.c.l.b16 %v191
    %v504 = vunpack.c.h.b16 %v191
    %v505 = vunpack.c.l.b16 %v192
    %v506 = vunpack.c.h.b16 %v192
    %v507 = vunpack.c.l.b16 %v193
    %v508 = vunpack.c.h.b16 %v193
    %v509 = vunpack.c.l.b16 %v194
    %v510 = vunpack.c.h.b16 %v194
    %v511 = vunpack.c.l.b16 %v195
    %v512 = vunpack.c.h.b16 %v195
    %v513 = vunpack.c.l.b16 %v196
    %v514 = vunpack.c.h.b16 %v196
    %v515 = vunpack.c.l.b16 %v197
    %v516 = vunpack.c.h.b16 %v197
    %v517 = vunpack.c.l.b16 %v198
    %v518 = vunpack.c.h.b16 %v198
    %v519 = vunpack.c.l.b16 %v199
    %v520 = vunpack.c.h.b16 %v199
    %v521 = vunpack.c.l.b16 %v200
    %v522 = vunpack.c.h.b16 %v200
    %v523 = vunpack.c.l.b16 %v201
    %v524 = vunpack.c.h.b16 %v201
    %v525 = vunpack.c.l.b16 %v202
    %v526 = vunpack.c.h.b16 %v202
    %v527 = vunpack.c.l.b16 %v203
    %v528 = vunpack.c.h.b16 %v203
    %v529 = vunpack.c.l.b16 %v204
    %v530 = vunpack.c.h.b16 %v204
    %v531 = vunpack.c.l.b16 %v205
    %v532 = vunpack.c.h.b16 %v205
    %v533 = vunpack.c.l.b16 %v206
    %v534 = vunpack.c.h.b16 %v206
    %v535 = vunpack.c.l.b16 %v207
    %v536 = vunpack.c.h.b16 %v207
    %v537 = vunpack.c.l.b16 %v208
    %v538 = vunpack.c.h.b16 %v208
    %v539 = vunpack.c.l.b16 %v209
    %v540 = vunpack.c.h.b16 %v209
    %v541 = vunpack.c.l.b16 %v210
    %v542 = vunpack.c.h.b16 %v210
    %v543 = vunpack.c.l.b16 %v211
    %v544 = vunpack.c.h.b16 %v211
    %v545 = vunpack.c.l.b16 %v212
    %v546 = vunpack.c.h.b16 %v212
    %v547 = vunpack.c.l.b16 %v213
    %v548 = vunpack.c.h.b16 %v213
    %v549 = vunpack.c.l.b16 %v214
    %v550 = vunpack.c.h.b16 %v214
    %v551 = vpack.c.b16 %v371, %v359
    %v552 = vpack.c.b16 %v372, %v360
    %v553 = vpack.c.b16 %v373, %v361
    %v554 = vpack.c.b16 %v374, %v362
    %v555 = vpack.c.b16 %v375, %v363
    %v556 = vpack.c.b16 %v376, %v364
    %v557 = vpack.c.b16 %v377, %v365
    %v558 = vpack.c.b16 %v378, %v366
    %v559 = vpack.c.b16 %v379, %v367
    %v560 = vpack.c.b16 %v380, %v368
    %v561 = vpack.c.b16 %v381, %v369
    %v562 = vpack.c.b16 %v382, %v370
    %v563 = vpack.c.b16 %v395, %v383
    %v564 = vpack.c.b16 %v396, %v384
    %v565 = vpack.c.b16 %v397, %v385
    %v566 = vpack.c.b16 %v398, %v386
    %v567 = vpack.c.b16 %v399, %v387
    %v568 = vpack.c.b16 %v400, %v388
    %v569 = vpack.c.b16 %v401, %v389
    %v570 = vpack.c.b16 %v402, %v390
    %v571 = vpack.c.b16 %v403, %v391
    %v572 = vpack.c.b16 %v404, %v392
    %v573 = vpack.c.b16 %v405, %v393
    %v574 = vpack.c.b16 %v406, %v394
    %v575 = vpack.c.b16 %v419, %v407
    %v576 = vpack.c.b16 %v420, %v408
    %v577 = vpack.c.b16 %v421, %v409
    %v578 = vpack.c.b16 %v422, %v410
    %v579 = vpack.c.b16 %v423, %v411
    %v580 = vpack.c.b16 %v424, %v412
    %v581 = vpack.c.b16 %v425, %v413
    %v582 = vpack.c.b16 %v426, %v414
    %v583 = vpack.c.b16 %v427, %v415
    %v584 = vpack.c.b16 %v428, %v416
    %v585 = vpack.c.b16 %v429, %v417
    %v586 = vpack.c.b16 %v430, %v418
    %v587 = vpack.c.b16 %v443, %v431
    %v588 = vpack.c.b16 %v444, %v432
    %v589 = vpack.c.b16 %v445, %v433
    %v590 = vpack.c.b16 %v446, %v434
    %v591 = vpack.c.b16 %v447, %v435
    %v592 = vpack.c.b16 %v448, %v436
    %v593 = vpack.c.b16 %v449, %v437
    %v594 = vpack.c.b16 %v450, %v438
    %v595 = vpack.c.b16 %v451, %v439
    %v596 = vpack.c.b16 %v452, %v440
    %v597 = vpack.c.b16 %v453, %v441
    %v598 = vpack.c.b16 %v454, %v442
    %v599 = vpack.c.b16 %v467, %v455
    %v600 = vpack.c.b16 %v468, %v456
    %v601 = vpack.c.b16 %v469, %v457
    %v602 = vpack.c.b16 %v470, %v458
    %v603 = vpack.c.b16 %v471, %v459
    %v604 = vpack.c.b16 %v472, %v460
    %v605 = vpack.c.b16 %v473, %v461
    %v606 = vpack.c.b16 %v474, %v462
    %v607 = vpack.c.b16 %v475, %v463
    %v608 = vpack.c.b16 %v476, %v464
    %v609 = vpack.c.b16 %v477, %v465
    %v610 = vpack.c.b16 %v478, %v466
    %v611 = vpack.c.b16 %v491, %v479
    %v612 = vpack.c.b16 %v492, %v480
    %v613 = vpack.c.b16 %v493, %v481
    %v614 = vpack.c.b16 %v494, %v482
    %v615 = vpack.c.b16 %v495, %v483
    %v616 = vpack.c.b16 %v496, %v484
    %v617 = vpack.c.b16 %v497, %v485
    %v618 = vpack.c.b16 %v498, %v486
    %v619 = vpack.c.b16 %v499, %v487
    %v620 = vpack.c.b16 %v500, %v488
    %v621 = vpack.c.b16 %v501, %v489
    %v622 = vpack.c.b16 %v502, %v490
    %v623 = vpack.c.b16 %v515, %v503
    %v624 = vpack.c.b16 %v516, %v504
    %v625 = vpack.c.b16 %v517, %v505
    %v626 = vpack.c.b16 %v518, %v506
    %v627 = vpack.c.b16 %v519, %v507
    %v628 = vpack.c.b16 %v520, %v508
    %v629 = vpack.c.b16 %v521, %v509
    %v630 = vpack.c.b16 %v522, %v510
    %v631 = vpack.c.b16 %v523, %v511
    %v632 = vpack.c.b16 %v524, %v512
    %v633 = vpack.c.b16 %v525, %v513
    %v634 = vpack.c.b16 %v526, %v514
    %v635 = vpack.c.b16 %v539, %v527
    %v636 = vpack.c.b16 %v540, %v528
    %v637 = vpack.c.b16 %v541, %v529
    %v638 = vpack.c.b16 %v542, %v530
    %v639 = vpack.c.b16 %v543, %v531
    %v640 = vpack.c.b16 %v544, %v532
    %v641 = vpack.c.b16 %v545, %v533
    %v642 = vpack.c.b16 %v546, %v534
    %v643 = vpack.c.b16 %v547, %v535
    %v644 = vpack.c.b16 %v548, %v536
    %v645 = vpack.c.b16 %v549, %v537
    %v646 = vpack.c.b16 %v550, %v538
    %743 = vmatprep.subr.bf16.mxu0 %v552
    %744 = vmatpush1.bf16.msra.mxu0 %v551
    %745 = vmatprep.subr.bf16.mxu0 %v564
    %746 = vmatpush1.bf16.msra.mxu0 %v563
    %747 = vmatprep.subr.bf16.mxu0 %v576
    %748 = vmatpush1.bf16.msra.mxu0 %v575
    %749 = vmatprep.subr.bf16.mxu0 %v588
    %750 = vmatpush1.bf16.msra.mxu0 %v587
    %751 = vmatprep.subr.bf16.mxu0 %v600
    %752 = vmatpush1.bf16.msra.mxu0 %v599
    %753 = vmatprep.subr.bf16.mxu0 %v612
    %754 = vmatpush1.bf16.msra.mxu0 %v611
    %755 = vmatprep.subr.bf16.mxu0 %v624
    %756 = vmatpush1.bf16.msra.mxu0 %v623
    %757 = vmatprep.subr.bf16.mxu0 %v636
    %758 = vmatpush1.bf16.msra.mxu0 %v635
    %759 = vmatprep.subr.bf16.mxu0 0
    %760 = vmatpush1.bf16.msra.mxu0 0
    %761 = vmatprep.subr.bf16.mxu0 0
    %762 = vmatpush1.bf16.msra.mxu0 0
    %763 = vmatprep.subr.bf16.mxu0 0
    %764 = vmatpush1.bf16.msra.mxu0 0
    %765 = vmatprep.subr.bf16.mxu0 0
    %766 = vmatpush1.bf16.msra.mxu0 0
    %767 = vmatprep.subr.bf16.mxu0 0
    %768 = vmatpush1.bf16.msra.mxu0 0
    %769 = vmatprep.subr.bf16.mxu0 0
    %770 = vmatpush1.bf16.msra.mxu0 0
    %771 = vmatprep.subr.bf16.mxu0 0
    %772 = vmatpush1.bf16.msra.mxu0 0
    %773 = vmatprep.subr.bf16.mxu0 0
    %774 = vmatpush1.bf16.msra.mxu0 0
    %775 = vmatprep.mubr.bf16.mxu0 0
    %776 = vmatmul.mubr.bf16.gmra.mrb[0].mxu0 %v247
    %v777 = vpop.f32.mrb[0].mxu0
    %v778 = vadd.f32 0.0, %v777
    %v779 = vpop.f32.mrb[0].mxu0
    %v780 = vadd.f32 0.0, %v779
    %v781 = vpop.f32.mrb[0].mxu0
    %v782 = vadd.f32 0.0, %v781
    %v783 = vpop.f32.mrb[0].mxu0
    %v784 = vadd.f32 0.0, %v783
    %785 = vmatprep.mubr.bf16.mxu0 0
    %786 = vmatmul.mubr.bf16.gmra.mrb[0].mxu0 %v248
    %v787 = vpop.f32.mrb[0].mxu0
    %v788 = vadd.f32 0.0, %v787
    %v789 = vpop.f32.mrb[0].mxu0
    %v790 = vadd.f32 0.0, %v789
    %v791 = vpop.f32.mrb[0].mxu0
    %v792 = vadd.f32 0.0, %v791
    %v793 = vpop.f32.mrb[0].mxu0
    %v794 = vadd.f32 0.0, %v793
    %795 = vmatprep.mubr.bf16.mxu0 0
    %796 = vmatmul.mubr.bf16.gmra.mrb[0].mxu0 %v249
    %v797 = vpop.f32.mrb[0].mxu0
    %v798 = vadd.f32 0.0, %v797
    %v799 = vpop.f32.mrb[0].mxu0
    %v800 = vadd.f32 0.0, %v799
    %v801 = vpop.f32.mrb[0].mxu0
    %v802 = vadd.f32 0.0, %v801
    %v803 = vpop.f32.mrb[0].mxu0
    %v804 = vadd.f32 0.0, %v803
    %805 = vmatprep.mubr.bf16.mxu0 0
    %806 = vmatmul.mubr.bf16.gmra.mrb[0].mxu0 %v250
    %v807 = vpop.f32.mrb[0].mxu0
    %v808 = vadd.f32 0.0, %v807
    %v809 = vpop.f32.mrb[0].mxu0
    %v810 = vadd.f32 0.0, %v809
    %v811 = vpop.f32.mrb[0].mxu0
    %v812 = vadd.f32 0.0, %v811
    %v813 = vpop.f32.mrb[0].mxu0
    %v814 = vadd.f32 0.0, %v813
    %815 = vmatprep.mubr.bf16.mxu0 0
    %816 = vmatmul.mubr.bf16.gmra.mrb[0].mxu0 %v251
    %v817 = vpop.f32.mrb[0].mxu0
    %v818 = vadd.f32 0.0, %v817
    %v819 = vpop.f32.mrb[0].mxu0
    %v820 = vadd.f32 0.0, %v819
    %v821 = vpop.f32.mrb[0].mxu0
    %v822 = vadd.f32 0.0, %v821
    %v823 = vpop.f32.mrb[0].mxu0
    %v824 = vadd.f32 0.0, %v823
    %825 = vmatprep.mubr.bf16.mxu0 0
    %826 = vmatmul.mubr.bf16.gmra.mrb[0].mxu0 %v252
    %v827 = vpop.f32.mrb[0].mxu0
    %v828 = vadd.f32 0.0, %v827
    %v829 = vpop.f32.mrb[0].mxu0
    %v830 = vadd.f32 0.0, %v829
    %v831 = vpop.f32.mrb[0].mxu0
    %v832 = vadd.f32 0.0, %v831
    %v833 = vpop.f32.mrb[0].mxu0
    %v834 = vadd.f32 0.0, %v833
    %835 = vmatprep.mubr.bf16.mxu0 0
    %836 = vmatmul.mubr.bf16.gmra.mrb[0].mxu0 %v253
    %v837 = vpop.f32.mrb[0].mxu0
    %v838 = vadd.f32 0.0, %v837
    %v839 = vpop.f32.mrb[0].mxu0
    %v840 = vadd.f32 0.0, %v839
    %v841 = vpop.f32.mrb[0].mxu0
    %v842 = vadd.f32 0.0, %v841
    %v843 = vpop.f32.mrb[0].mxu0
    %v844 = vadd.f32 0.0, %v843
    %845 = vmatprep.mubr.bf16.mxu0 0
    %846 = vmatmul.mubr.bf16.gmra.mrb[0].mxu0 %v254
    %v847 = vpop.f32.mrb[0].mxu0
    %v848 = vadd.f32 0.0, %v847
    %v849 = vpop.f32.mrb[0].mxu0
    %v850 = vadd.f32 0.0, %v849
    %v851 = vpop.f32.mrb[0].mxu0
    %v852 = vadd.f32 0.0, %v851
    %v853 = vpop.f32.mrb[0].mxu0
    %v854 = vadd.f32 0.0, %v853
    %855 = vdwg.mxu0
    %856 = vmatprep.subr.bf16.mxu0 %v554
    %857 = vmatpush1.bf16.msra.mxu0 %v553
    %858 = vmatprep.subr.bf16.mxu0 %v566
    %859 = vmatpush1.bf16.msra.mxu0 %v565
    %860 = vmatprep.subr.bf16.mxu0 %v578
    %861 = vmatpush1.bf16.msra.mxu0 %v577
    %862 = vmatprep.subr.bf16.mxu0 %v590
    %863 = vmatpush1.bf16.msra.mxu0 %v589
    %864 = vmatprep.subr.bf16.mxu0 %v602
    %865 = vmatpush1.bf16.msra.mxu0 %v601
    %866 = vmatprep.subr.bf16.mxu0 %v614
    %867 = vmatpush1.bf16.msra.mxu0 %v613
    %868 = vmatprep.subr.bf16.mxu0 %v626
    %869 = vmatpush1.bf16.msra.mxu0 %v625
    %870 = vmatprep.subr.bf16.mxu0 %v638
    %871 = vmatpush1.bf16.msra.mxu0 %v637
    %872 = vmatprep.subr.bf16.mxu0 0
    %873 = vmatpush1.bf16.msra.mxu0 0
    %874 = vmatprep.subr.bf16.mxu0 0
    %875 = vmatpush1.bf16.msra.mxu0 0
    %876 = vmatprep.subr.bf16.mxu0 0
    %877 = vmatpush1.bf16.msra.mxu0 0
    %878 = vmatprep.subr.bf16.mxu0 0
    %879 = vmatpush1.bf16.msra.mxu0 0
    %880 = vmatprep.subr.bf16.mxu0 0
    %881 = vmatpush1.bf16.msra.mxu0 0
    %882 = vmatprep.subr.bf16.mxu0 0
    %883 = vmatpush1.bf16.msra.mxu0 0
    %884 = vmatprep.subr.bf16.mxu0 0
    %885 = vmatpush1.bf16.msra.mxu0 0
    %886 = vmatprep.subr.bf16.mxu0 0
    %887 = vmatpush1.bf16.msra.mxu0 0
    %888 = vmatprep.mubr.bf16.mxu0 0
    %889 = vmatmul.mubr.bf16.gmra.mrb[0].mxu0 %v247
    %v890 = vpop.f32.mrb[0].mxu0
    %v891 = vadd.f32 0.0, %v890
    %v892 = vpop.f32.mrb[0].mxu0
    %v893 = vadd.f32 0.0, %v892
    %v894 = vpop.f32.mrb[0].mxu0
    %v895 = vadd.f32 0.0, %v894
    %v896 = vpop.f32.mrb[0].mxu0
    %v897 = vadd.f32 0.0, %v896
    %898 = vmatprep.mubr.bf16.mxu0 0
    %899 = vmatmul.mubr.bf16.gmra.mrb[0].mxu0 %v248
    %v900 = vpop.f32.mrb[0].mxu0
    %v901 = vadd.f32 0.0, %v900
    %v902 = vpop.f32.mrb[0].mxu0
    %v903 = vadd.f32 0.0, %v902
    %v904 = vpop.f32.mrb[0].mxu0
    %v905 = vadd.f32 0.0, %v904
    %v906 = vpop.f32.mrb[0].mxu0
    %v907 = vadd.f32 0.0, %v906
    %908 = vmatprep.mubr.bf16.mxu0 0
    %909 = vmatmul.mubr.bf16.gmra.mrb[0].mxu0 %v249
    %v910 = vpop.f32.mrb[0].mxu0
    %v911 = vadd.f32 0.0, %v910
    %v912 = vpop.f32.mrb[0].mxu0
    %v913 = vadd.f32 0.0, %v912
    %v914 = vpop.f32.mrb[0].mxu0
    %v915 = vadd.f32 0.0, %v914
    %v916 = vpop.f32.mrb[0].mxu0
    %v917 = vadd.f32 0.0, %v916
    %918 = vmatprep.mubr.bf16.mxu0 0
    %919 = vmatmul.mubr.bf16.gmra.mrb[0].mxu0 %v250
    %v920 = vpop.f32.mrb[0].mxu0
    %v921 = vadd.f32 0.0, %v920
    %v922 = vpop.f32.mrb[0].mxu0
    %v923 = vadd.f32 0.0, %v922
    %v924 = vpop.f32.mrb[0].mxu0
    %v925 = vadd.f32 0.0, %v924
    %v926 = vpop.f32.mrb[0].mxu0
    %v927 = vadd.f32 0.0, %v926
    %928 = vmatprep.mubr.bf16.mxu0 0
    %929 = vmatmul.mubr.bf16.gmra.mrb[0].mxu0 %v251
    %v930 = vpop.f32.mrb[0].mxu0
    %v931 = vadd.f32 0.0, %v930
    %v932 = vpop.f32.mrb[0].mxu0
    %v933 = vadd.f32 0.0, %v932
    %v934 = vpop.f32.mrb[0].mxu0
    %v935 = vadd.f32 0.0, %v934
    %v936 = vpop.f32.mrb[0].mxu0
    %v937 = vadd.f32 0.0, %v936
    %938 = vmatprep.mubr.bf16.mxu0 0
    %939 = vmatmul.mubr.bf16.gmra.mrb[0].mxu0 %v252
    %v940 = vpop.f32.mrb[0].mxu0
    %v941 = vadd.f32 0.0, %v940
    %v942 = vpop.f32.mrb[0].mxu0
    %v943 = vadd.f32 0.0, %v942
    %v944 = vpop.f32.mrb[0].mxu0
    %v945 = vadd.f32 0.0, %v944
    %v946 = vpop.f32.mrb[0].mxu0
    %v947 = vadd.f32 0.0, %v946
    %948 = vmatprep.mubr.bf16.mxu0 0
    %949 = vmatmul.mubr.bf16.gmra.mrb[0].mxu0 %v253
    %v950 = vpop.f32.mrb[0].mxu0
    %v951 = vadd.f32 0.0, %v950
    %v952 = vpop.f32.mrb[0].mxu0
    %v953 = vadd.f32 0.0, %v952
    %v954 = vpop.f32.mrb[0].mxu0
    %v955 = vadd.f32 0.0, %v954
    %v956 = vpop.f32.mrb[0].mxu0
    %v957 = vadd.f32 0.0, %v956
    %958 = vmatprep.mubr.bf16.mxu0 0
    %959 = vmatmul.mubr.bf16.gmra.mrb[0].mxu0 %v254
    %v960 = vpop.f32.mrb[0].mxu0
    %v961 = vadd.f32 0.0, %v960
    %v962 = vpop.f32.mrb[0].mxu0
    %v963 = vadd.f32 0.0, %v962
    %v964 = vpop.f32.mrb[0].mxu0
    %v965 = vadd.f32 0.0, %v964
    %v966 = vpop.f32.mrb[0].mxu0
    %v967 = vadd.f32 0.0, %v966
    %968 = vdwg.mxu0
    %969 = vmatprep.subr.bf16.mxu0 %v556
    %970 = vmatpush1.bf16.msra.mxu0 %v555
    %971 = vmatprep.subr.bf16.mxu0 %v568
    %972 = vmatpush1.bf16.msra.mxu0 %v567
    %973 = vmatprep.subr.bf16.mxu0 %v580
    %974 = vmatpush1.bf16.msra.mxu0 %v579
    %975 = vmatprep.subr.bf16.mxu0 %v592
    %976 = vmatpush1.bf16.msra.mxu0 %v591
    %977 = vmatprep.subr.bf16.mxu0 %v604
    %978 = vmatpush1.bf16.msra.mxu0 %v603
    %979 = vmatprep.subr.bf16.mxu0 %v616
    %980 = vmatpush1.bf16.msra.mxu0 %v615
    %981 = vmatprep.subr.bf16.mxu0 %v628
    %982 = vmatpush1.bf16.msra.mxu0 %v627
    %983 = vmatprep.subr.bf16.mxu0 %v640
    %984 = vmatpush1.bf16.msra.mxu0 %v639
    %985 = vmatprep.subr.bf16.mxu0 0
    %986 = vmatpush1.bf16.msra.mxu0 0
    %987 = vmatprep.subr.bf16.mxu0 0
    %988 = vmatpush1.bf16.msra.mxu0 0
    %989 = vmatprep.subr.bf16.mxu0 0
    %990 = vmatpush1.bf16.msra.mxu0 0
    %991 = vmatprep.subr.bf16.mxu0 0
    %992 = vmatpush1.bf16.msra.mxu0 0
    %993 = vmatprep.subr.bf16.mxu0 0
    %994 = vmatpush1.bf16.msra.mxu0 0
    %995 = vmatprep.subr.bf16.mxu0 0
    %996 = vmatpush1.bf16.msra.mxu0 0
    %997 = vmatprep.subr.bf16.mxu0 0
    %998 = vmatpush1.bf16.msra.mxu0 0
    %999 = vmatprep.subr.bf16.mxu0 0
    %1000 = vmatpush1.bf16.msra.mxu0 0
    %1001 = vmatprep.mubr.bf16.mxu0 0
    %1002 = vmatmul.mubr.bf16.gmra.mrb[0].mxu0 %v247
    %v1003 = vpop.f32.mrb[0].mxu0
    %v1004 = vadd.f32 0.0, %v1003
    %v1005 = vpop.f32.mrb[0].mxu0
    %v1006 = vadd.f32 0.0, %v1005
    %v1007 = vpop.f32.mrb[0].mxu0
    %v1008 = vadd.f32 0.0, %v1007
    %v1009 = vpop.f32.mrb[0].mxu0
    %v1010 = vadd.f32 0.0, %v1009
    %1011 = vmatprep.mubr.bf16.mxu0 0
    %1012 = vmatmul.mubr.bf16.gmra.mrb[0].mxu0 %v248
    %v1013 = vpop.f32.mrb[0].mxu0
    %v1014 = vadd.f32 0.0, %v1013
    %v1015 = vpop.f32.mrb[0].mxu0
    %v1016 = vadd.f32 0.0, %v1015
    %v1017 = vpop.f32.mrb[0].mxu0
    %v1018 = vadd.f32 0.0, %v1017
    %v1019 = vpop.f32.mrb[0].mxu0
    %v1020 = vadd.f32 0.0, %v1019
    %1021 = vmatprep.mubr.bf16.mxu0 0
    %1022 = vmatmul.mubr.bf16.gmra.mrb[0].mxu0 %v249
    %v1023 = vpop.f32.mrb[0].mxu0
    %v1024 = vadd.f32 0.0, %v1023
    %v1025 = vpop.f32.mrb[0].mxu0
    %v1026 = vadd.f32 0.0, %v1025
    %v1027 = vpop.f32.mrb[0].mxu0
    %v1028 = vadd.f32 0.0, %v1027
    %v1029 = vpop.f32.mrb[0].mxu0
    %v1030 = vadd.f32 0.0, %v1029
    %1031 = vmatprep.mubr.bf16.mxu0 0
    %1032 = vmatmul.mubr.bf16.gmra.mrb[0].mxu0 %v250
    %v1033 = vpop.f32.mrb[0].mxu0
    %v1034 = vadd.f32 0.0, %v1033
    %v1035 = vpop.f32.mrb[0].mxu0
    %v1036 = vadd.f32 0.0, %v1035
    %v1037 = vpop.f32.mrb[0].mxu0
    %v1038 = vadd.f32 0.0, %v1037
    %v1039 = vpop.f32.mrb[0].mxu0
    %v1040 = vadd.f32 0.0, %v1039
    %1041 = vmatprep.mubr.bf16.mxu0 0
    %1042 = vmatmul.mubr.bf16.gmra.mrb[0].mxu0 %v251
    %v1043 = vpop.f32.mrb[0].mxu0
    %v1044 = vadd.f32 0.0, %v1043
    %v1045 = vpop.f32.mrb[0].mxu0
    %v1046 = vadd.f32 0.0, %v1045
    %v1047 = vpop.f32.mrb[0].mxu0
    %v1048 = vadd.f32 0.0, %v1047
    %v1049 = vpop.f32.mrb[0].mxu0
    %v1050 = vadd.f32 0.0, %v1049
    %1051 = vmatprep.mubr.bf16.mxu0 0
    %1052 = vmatmul.mubr.bf16.gmra.mrb[0].mxu0 %v252
    %v1053 = vpop.f32.mrb[0].mxu0
    %v1054 = vadd.f32 0.0, %v1053
    %v1055 = vpop.f32.mrb[0].mxu0
    %v1056 = vadd.f32 0.0, %v1055
    %v1057 = vpop.f32.mrb[0].mxu0
    %v1058 = vadd.f32 0.0, %v1057
    %v1059 = vpop.f32.mrb[0].mxu0
    %v1060 = vadd.f32 0.0, %v1059
    %1061 = vmatprep.mubr.bf16.mxu0 0
    %1062 = vmatmul.mubr.bf16.gmra.mrb[0].mxu0 %v253
    %v1063 = vpop.f32.mrb[0].mxu0
    %v1064 = vadd.f32 0.0, %v1063
    %v1065 = vpop.f32.mrb[0].mxu0
    %v1066 = vadd.f32 0.0, %v1065
    %v1067 = vpop.f32.mrb[0].mxu0
    %v1068 = vadd.f32 0.0, %v1067
    %v1069 = vpop.f32.mrb[0].mxu0
    %v1070 = vadd.f32 0.0, %v1069
    %1071 = vmatprep.mubr.bf16.mxu0 0
    %1072 = vmatmul.mubr.bf16.gmra.mrb[0].mxu0 %v254
    %v1073 = vpop.f32.mrb[0].mxu0
    %v1074 = vadd.f32 0.0, %v1073
    %v1075 = vpop.f32.mrb[0].mxu0
    %v1076 = vadd.f32 0.0, %v1075
    %v1077 = vpop.f32.mrb[0].mxu0
    %v1078 = vadd.f32 0.0, %v1077
    %v1079 = vpop.f32.mrb[0].mxu0
    %v1080 = vadd.f32 0.0, %v1079
    %1081 = vdwg.mxu0
    %1082 = vmatprep.subr.bf16.mxu0 %v558
    %1083 = vmatpush1.bf16.msra.mxu0 %v557
    %1084 = vmatprep.subr.bf16.mxu0 %v570
    %1085 = vmatpush1.bf16.msra.mxu0 %v569
    %1086 = vmatprep.subr.bf16.mxu0 %v582
    %1087 = vmatpush1.bf16.msra.mxu0 %v581
    %1088 = vmatprep.subr.bf16.mxu0 %v594
    %1089 = vmatpush1.bf16.msra.mxu0 %v593
    %1090 = vmatprep.subr.bf16.mxu0 %v606
    %1091 = vmatpush1.bf16.msra.mxu0 %v605
    %1092 = vmatprep.subr.bf16.mxu0 %v618
    %1093 = vmatpush1.bf16.msra.mxu0 %v617
    %1094 = vmatprep.subr.bf16.mxu0 %v630
    %1095 = vmatpush1.bf16.msra.mxu0 %v629
    %1096 = vmatprep.subr.bf16.mxu0 %v642
    %1097 = vmatpush1.bf16.msra.mxu0 %v641
    %1098 = vmatprep.subr.bf16.mxu0 0
    %1099 = vmatpush1.bf16.msra.mxu0 0
    %1100 = vmatprep.subr.bf16.mxu0 0
    %1101 = vmatpush1.bf16.msra.mxu0 0
    %1102 = vmatprep.subr.bf16.mxu0 0
    %1103 = vmatpush1.bf16.msra.mxu0 0
    %1104 = vmatprep.subr.bf16.mxu0 0
    %1105 = vmatpush1.bf16.msra.mxu0 0
    %1106 = vmatprep.subr.bf16.mxu0 0
    %1107 = vmatpush1.bf16.msra.mxu0 0
    %1108 = vmatprep.subr.bf16.mxu0 0
    %1109 = vmatpush1.bf16.msra.mxu0 0
    %1110 = vmatprep.subr.bf16.mxu0 0
    %1111 = vmatpush1.bf16.msra.mxu0 0
    %1112 = vmatprep.subr.bf16.mxu0 0
    %1113 = vmatpush1.bf16.msra.mxu0 0
    %1114 = vmatprep.mubr.bf16.mxu0 0
    %1115 = vmatmul.mubr.bf16.gmra.mrb[0].mxu0 %v247
    %v1116 = vpop.f32.mrb[0].mxu0
    %v1117 = vadd.f32 0.0, %v1116
    %v1118 = vpop.f32.mrb[0].mxu0
    %v1119 = vadd.f32 0.0, %v1118
    %v1120 = vpop.f32.mrb[0].mxu0
    %v1121 = vadd.f32 0.0, %v1120
    %v1122 = vpop.f32.mrb[0].mxu0
    %v1123 = vadd.f32 0.0, %v1122
    %1124 = vmatprep.mubr.bf16.mxu0 0
    %1125 = vmatmul.mubr.bf16.gmra.mrb[0].mxu0 %v248
    %v1126 = vpop.f32.mrb[0].mxu0
    %v1127 = vadd.f32 0.0, %v1126
    %v1128 = vpop.f32.mrb[0].mxu0
    %v1129 = vadd.f32 0.0, %v1128
    %v1130 = vpop.f32.mrb[0].mxu0
    %v1131 = vadd.f32 0.0, %v1130
    %v1132 = vpop.f32.mrb[0].mxu0
    %v1133 = vadd.f32 0.0, %v1132
    %1134 = vmatprep.mubr.bf16.mxu0 0
    %1135 = vmatmul.mubr.bf16.gmra.mrb[0].mxu0 %v249
    %v1136 = vpop.f32.mrb[0].mxu0
    %v1137 = vadd.f32 0.0, %v1136
    %v1138 = vpop.f32.mrb[0].mxu0
    %v1139 = vadd.f32 0.0, %v1138
    %v1140 = vpop.f32.mrb[0].mxu0
    %v1141 = vadd.f32 0.0, %v1140
    %v1142 = vpop.f32.mrb[0].mxu0
    %v1143 = vadd.f32 0.0, %v1142
    %1144 = vmatprep.mubr.bf16.mxu0 0
    %1145 = vmatmul.mubr.bf16.gmra.mrb[0].mxu0 %v250
    %v1146 = vpop.f32.mrb[0].mxu0
    %v1147 = vadd.f32 0.0, %v1146
    %v1148 = vpop.f32.mrb[0].mxu0
    %v1149 = vadd.f32 0.0, %v1148
    %v1150 = vpop.f32.mrb[0].mxu0
    %v1151 = vadd.f32 0.0, %v1150
    %v1152 = vpop.f32.mrb[0].mxu0
    %v1153 = vadd.f32 0.0, %v1152
    %1154 = vmatprep.mubr.bf16.mxu0 0
    %1155 = vmatmul.mubr.bf16.gmra.mrb[0].mxu0 %v251
    %v1156 = vpop.f32.mrb[0].mxu0
    %v1157 = vadd.f32 0.0, %v1156
    %v1158 = vpop.f32.mrb[0].mxu0
    %v1159 = vadd.f32 0.0, %v1158
    %v1160 = vpop.f32.mrb[0].mxu0
    %v1161 = vadd.f32 0.0, %v1160
    %v1162 = vpop.f32.mrb[0].mxu0
    %v1163 = vadd.f32 0.0, %v1162
    %1164 = vmatprep.mubr.bf16.mxu0 0
    %1165 = vmatmul.mubr.bf16.gmra.mrb[0].mxu0 %v252
    %v1166 = vpop.f32.mrb[0].mxu0
    %v1167 = vadd.f32 0.0, %v1166
    %v1168 = vpop.f32.mrb[0].mxu0
    %v1169 = vadd.f32 0.0, %v1168
    %v1170 = vpop.f32.mrb[0].mxu0
    %v1171 = vadd.f32 0.0, %v1170
    %v1172 = vpop.f32.mrb[0].mxu0
    %v1173 = vadd.f32 0.0, %v1172
    %1174 = vmatprep.mubr.bf16.mxu0 0
    %1175 = vmatmul.mubr.bf16.gmra.mrb[0].mxu0 %v253
    %v1176 = vpop.f32.mrb[0].mxu0
    %v1177 = vadd.f32 0.0, %v1176
    %v1178 = vpop.f32.mrb[0].mxu0
    %v1179 = vadd.f32 0.0, %v1178
    %v1180 = vpop.f32.mrb[0].mxu0
    %v1181 = vadd.f32 0.0, %v1180
    %v1182 = vpop.f32.mrb[0].mxu0
    %v1183 = vadd.f32 0.0, %v1182
    %1184 = vmatprep.mubr.bf16.mxu0 0
    %1185 = vmatmul.mubr.bf16.gmra.mrb[0].mxu0 %v254
    %v1186 = vpop.f32.mrb[0].mxu0
    %v1187 = vadd.f32 0.0, %v1186
    %v1188 = vpop.f32.mrb[0].mxu0
    %v1189 = vadd.f32 0.0, %v1188
    %v1190 = vpop.f32.mrb[0].mxu0
    %v1191 = vadd.f32 0.0, %v1190
    %v1192 = vpop.f32.mrb[0].mxu0
    %v1193 = vadd.f32 0.0, %v1192
    %1194 = vdwg.mxu0
    %1195 = vmatprep.subr.bf16.mxu0 %v560
    %1196 = vmatpush1.bf16.msra.mxu0 %v559
    %1197 = vmatprep.subr.bf16.mxu0 %v572
    %1198 = vmatpush1.bf16.msra.mxu0 %v571
    %1199 = vmatprep.subr.bf16.mxu0 %v584
    %1200 = vmatpush1.bf16.msra.mxu0 %v583
    %1201 = vmatprep.subr.bf16.mxu0 %v596
    %1202 = vmatpush1.bf16.msra.mxu0 %v595
    %1203 = vmatprep.subr.bf16.mxu0 %v608
    %1204 = vmatpush1.bf16.msra.mxu0 %v607
    %1205 = vmatprep.subr.bf16.mxu0 %v620
    %1206 = vmatpush1.bf16.msra.mxu0 %v619
    %1207 = vmatprep.subr.bf16.mxu0 %v632
    %1208 = vmatpush1.bf16.msra.mxu0 %v631
    %1209 = vmatprep.subr.bf16.mxu0 %v644
    %1210 = vmatpush1.bf16.msra.mxu0 %v643
    %1211 = vmatprep.subr.bf16.mxu0 0
    %1212 = vmatpush1.bf16.msra.mxu0 0
    %1213 = vmatprep.subr.bf16.mxu0 0
    %1214 = vmatpush1.bf16.msra.mxu0 0
    %1215 = vmatprep.subr.bf16.mxu0 0
    %1216 = vmatpush1.bf16.msra.mxu0 0
    %1217 = vmatprep.subr.bf16.mxu0 0
    %1218 = vmatpush1.bf16.msra.mxu0 0
    %1219 = vmatprep.subr.bf16.mxu0 0
    %1220 = vmatpush1.bf16.msra.mxu0 0
    %1221 = vmatprep.subr.bf16.mxu0 0
    %1222 = vmatpush1.bf16.msra.mxu0 0
    %1223 = vmatprep.subr.bf16.mxu0 0
    %1224 = vmatpush1.bf16.msra.mxu0 0
    %1225 = vmatprep.subr.bf16.mxu0 0
    %1226 = vmatpush1.bf16.msra.mxu0 0
    %1227 = vmatprep.mubr.bf16.mxu0 0
    %1228 = vmatmul.mubr.bf16.gmra.mrb[0].mxu0 %v247
    %v1229 = vpop.f32.mrb[0].mxu0
    %v1230 = vadd.f32 0.0, %v1229
    %v1231 = vpop.f32.mrb[0].mxu0
    %v1232 = vadd.f32 0.0, %v1231
    %v1233 = vpop.f32.mrb[0].mxu0
    %v1234 = vadd.f32 0.0, %v1233
    %v1235 = vpop.f32.mrb[0].mxu0
    %v1236 = vadd.f32 0.0, %v1235
    %1237 = vmatprep.mubr.bf16.mxu0 0
    %1238 = vmatmul.mubr.bf16.gmra.mrb[0].mxu0 %v248
    %v1239 = vpop.f32.mrb[0].mxu0
    %v1240 = vadd.f32 0.0, %v1239
    %v1241 = vpop.f32.mrb[0].mxu0
    %v1242 = vadd.f32 0.0, %v1241
    %v1243 = vpop.f32.mrb[0].mxu0
    %v1244 = vadd.f32 0.0, %v1243
    %v1245 = vpop.f32.mrb[0].mxu0
    %v1246 = vadd.f32 0.0, %v1245
    %1247 = vmatprep.mubr.bf16.mxu0 0
    %1248 = vmatmul.mubr.bf16.gmra.mrb[0].mxu0 %v249
    %v1249 = vpop.f32.mrb[0].mxu0
    %v1250 = vadd.f32 0.0, %v1249
    %v1251 = vpop.f32.mrb[0].mxu0
    %v1252 = vadd.f32 0.0, %v1251
    %v1253 = vpop.f32.mrb[0].mxu0
    %v1254 = vadd.f32 0.0, %v1253
    %v1255 = vpop.f32.mrb[0].mxu0
    %v1256 = vadd.f32 0.0, %v1255
    %1257 = vmatprep.mubr.bf16.mxu0 0
    %1258 = vmatmul.mubr.bf16.gmra.mrb[0].mxu0 %v250
    %v1259 = vpop.f32.mrb[0].mxu0
    %v1260 = vadd.f32 0.0, %v1259
    %v1261 = vpop.f32.mrb[0].mxu0
    %v1262 = vadd.f32 0.0, %v1261
    %v1263 = vpop.f32.mrb[0].mxu0
    %v1264 = vadd.f32 0.0, %v1263
    %v1265 = vpop.f32.mrb[0].mxu0
    %v1266 = vadd.f32 0.0, %v1265
    %1267 = vmatprep.mubr.bf16.mxu0 0
    %1268 = vmatmul.mubr.bf16.gmra.mrb[0].mxu0 %v251
    %v1269 = vpop.f32.mrb[0].mxu0
    %v1270 = vadd.f32 0.0, %v1269
    %v1271 = vpop.f32.mrb[0].mxu0
    %v1272 = vadd.f32 0.0, %v1271
    %v1273 = vpop.f32.mrb[0].mxu0
    %v1274 = vadd.f32 0.0, %v1273
    %v1275 = vpop.f32.mrb[0].mxu0
    %v1276 = vadd.f32 0.0, %v1275
    %1277 = vmatprep.mubr.bf16.mxu0 0
    %1278 = vmatmul.mubr.bf16.gmra.mrb[0].mxu0 %v252
    %v1279 = vpop.f32.mrb[0].mxu0
    %v1280 = vadd.f32 0.0, %v1279
    %v1281 = vpop.f32.mrb[0].mxu0
    %v1282 = vadd.f32 0.0, %v1281
    %v1283 = vpop.f32.mrb[0].mxu0
    %v1284 = vadd.f32 0.0, %v1283
    %v1285 = vpop.f32.mrb[0].mxu0
    %v1286 = vadd.f32 0.0, %v1285
    %1287 = vmatprep.mubr.bf16.mxu0 0
    %1288 = vmatmul.mubr.bf16.gmra.mrb[0].mxu0 %v253
    %v1289 = vpop.f32.mrb[0].mxu0
    %v1290 = vadd.f32 0.0, %v1289
    %v1291 = vpop.f32.mrb[0].mxu0
    %v1292 = vadd.f32 0.0, %v1291
    %v1293 = vpop.f32.mrb[0].mxu0
    %v1294 = vadd.f32 0.0, %v1293
    %v1295 = vpop.f32.mrb[0].mxu0
    %v1296 = vadd.f32 0.0, %v1295
    %1297 = vmatprep.mubr.bf16.mxu0 0
    %1298 = vmatmul.mubr.bf16.gmra.mrb[0].mxu0 %v254
    %v1299 = vpop.f32.mrb[0].mxu0
    %v1300 = vadd.f32 0.0, %v1299
    %v1301 = vpop.f32.mrb[0].mxu0
    %v1302 = vadd.f32 0.0, %v1301
    %v1303 = vpop.f32.mrb[0].mxu0
    %v1304 = vadd.f32 0.0, %v1303
    %v1305 = vpop.f32.mrb[0].mxu0
    %v1306 = vadd.f32 0.0, %v1305
    %1307 = vdwg.mxu0
    %1308 = vmatprep.subr.bf16.mxu0 %v562
    %1309 = vmatpush1.bf16.msra.mxu0 %v561
    %1310 = vmatprep.subr.bf16.mxu0 %v574
    %1311 = vmatpush1.bf16.msra.mxu0 %v573
    %1312 = vmatprep.subr.bf16.mxu0 %v586
    %1313 = vmatpush1.bf16.msra.mxu0 %v585
    %1314 = vmatprep.subr.bf16.mxu0 %v598
    %1315 = vmatpush1.bf16.msra.mxu0 %v597
    %1316 = vmatprep.subr.bf16.mxu0 %v610
    %1317 = vmatpush1.bf16.msra.mxu0 %v609
    %1318 = vmatprep.subr.bf16.mxu0 %v622
    %1319 = vmatpush1.bf16.msra.mxu0 %v621
    %1320 = vmatprep.subr.bf16.mxu0 %v634
    %1321 = vmatpush1.bf16.msra.mxu0 %v633
    %1322 = vmatprep.subr.bf16.mxu0 %v646
    %1323 = vmatpush1.bf16.msra.mxu0 %v645
    %1324 = vmatprep.subr.bf16.mxu0 0
    %1325 = vmatpush1.bf16.msra.mxu0 0
    %1326 = vmatprep.subr.bf16.mxu0 0
    %1327 = vmatpush1.bf16.msra.mxu0 0
    %1328 = vmatprep.subr.bf16.mxu0 0
    %1329 = vmatpush1.bf16.msra.mxu0 0
    %1330 = vmatprep.subr.bf16.mxu0 0
    %1331 = vmatpush1.bf16.msra.mxu0 0
    %1332 = vmatprep.subr.bf16.mxu0 0
    %1333 = vmatpush1.bf16.msra.mxu0 0
    %1334 = vmatprep.subr.bf16.mxu0 0
    %1335 = vmatpush1.bf16.msra.mxu0 0
    %1336 = vmatprep.subr.bf16.mxu0 0
    %1337 = vmatpush1.bf16.msra.mxu0 0
    %1338 = vmatprep.subr.bf16.mxu0 0
    %1339 = vmatpush1.bf16.msra.mxu0 0
    %1340 = vmatprep.mubr.bf16.mxu0 0
    %1341 = vmatmul.mubr.bf16.gmra.mrb[0].mxu0 %v247
    %v1342 = vpop.f32.mrb[0].mxu0
    %v1343 = vadd.f32 0.0, %v1342
    %v1344 = vpop.f32.mrb[0].mxu0
    %v1345 = vadd.f32 0.0, %v1344
    %v1346 = vpop.f32.mrb[0].mxu0
    %v1347 = vadd.f32 0.0, %v1346
    %v1348 = vpop.f32.mrb[0].mxu0
    %v1349 = vadd.f32 0.0, %v1348
    %1350 = vmatprep.mubr.bf16.mxu0 0
    %1351 = vmatmul.mubr.bf16.gmra.mrb[0].mxu0 %v248
    %v1352 = vpop.f32.mrb[0].mxu0
    %v1353 = vadd.f32 0.0, %v1352
    %v1354 = vpop.f32.mrb[0].mxu0
    %v1355 = vadd.f32 0.0, %v1354
    %v1356 = vpop.f32.mrb[0].mxu0
    %v1357 = vadd.f32 0.0, %v1356
    %v1358 = vpop.f32.mrb[0].mxu0
    %v1359 = vadd.f32 0.0, %v1358
    %1360 = vmatprep.mubr.bf16.mxu0 0
    %1361 = vmatmul.mubr.bf16.gmra.mrb[0].mxu0 %v249
    %v1362 = vpop.f32.mrb[0].mxu0
    %v1363 = vadd.f32 0.0, %v1362
    %v1364 = vpop.f32.mrb[0].mxu0
    %v1365 = vadd.f32 0.0, %v1364
    %v1366 = vpop.f32.mrb[0].mxu0
    %v1367 = vadd.f32 0.0, %v1366
    %v1368 = vpop.f32.mrb[0].mxu0
    %v1369 = vadd.f32 0.0, %v1368
    %1370 = vmatprep.mubr.bf16.mxu0 0
    %1371 = vmatmul.mubr.bf16.gmra.mrb[0].mxu0 %v250
    %v1372 = vpop.f32.mrb[0].mxu0
    %v1373 = vadd.f32 0.0, %v1372
    %v1374 = vpop.f32.mrb[0].mxu0
    %v1375 = vadd.f32 0.0, %v1374
    %v1376 = vpop.f32.mrb[0].mxu0
    %v1377 = vadd.f32 0.0, %v1376
    %v1378 = vpop.f32.mrb[0].mxu0
    %v1379 = vadd.f32 0.0, %v1378
    %1380 = vmatprep.mubr.bf16.mxu0 0
    %1381 = vmatmul.mubr.bf16.gmra.mrb[0].mxu0 %v251
    %v1382 = vpop.f32.mrb[0].mxu0
    %v1383 = vadd.f32 0.0, %v1382
    %v1384 = vpop.f32.mrb[0].mxu0
    %v1385 = vadd.f32 0.0, %v1384
    %v1386 = vpop.f32.mrb[0].mxu0
    %v1387 = vadd.f32 0.0, %v1386
    %v1388 = vpop.f32.mrb[0].mxu0
    %v1389 = vadd.f32 0.0, %v1388
    %1390 = vmatprep.mubr.bf16.mxu0 0
    %1391 = vmatmul.mubr.bf16.gmra.mrb[0].mxu0 %v252
    %v1392 = vpop.f32.mrb[0].mxu0
    %v1393 = vadd.f32 0.0, %v1392
    %v1394 = vpop.f32.mrb[0].mxu0
    %v1395 = vadd.f32 0.0, %v1394
    %v1396 = vpop.f32.mrb[0].mxu0
    %v1397 = vadd.f32 0.0, %v1396
    %v1398 = vpop.f32.mrb[0].mxu0
    %v1399 = vadd.f32 0.0, %v1398
    %1400 = vmatprep.mubr.bf16.mxu0 0
    %1401 = vmatmul.mubr.bf16.gmra.mrb[0].mxu0 %v253
    %v1402 = vpop.f32.mrb[0].mxu0
    %v1403 = vadd.f32 0.0, %v1402
    %v1404 = vpop.f32.mrb[0].mxu0
    %v1405 = vadd.f32 0.0, %v1404
    %v1406 = vpop.f32.mrb[0].mxu0
    %v1407 = vadd.f32 0.0, %v1406
    %v1408 = vpop.f32.mrb[0].mxu0
    %v1409 = vadd.f32 0.0, %v1408
    %1410 = vmatprep.mubr.bf16.mxu0 0
    %1411 = vmatmul.mubr.bf16.gmra.mrb[0].mxu0 %v254
    %v1412 = vpop.f32.mrb[0].mxu0
    %v1413 = vadd.f32 0.0, %v1412
    %v1414 = vpop.f32.mrb[0].mxu0
    %v1415 = vadd.f32 0.0, %v1414
    %v1416 = vpop.f32.mrb[0].mxu0
    %v1417 = vadd.f32 0.0, %v1416
    %v1418 = vpop.f32.mrb[0].mxu0
    %v1419 = vadd.f32 0.0, %v1418
    %1420 = vdwg.mxu0
    %v1421 = vmul.f32 %v778, 0.2
    %v1422 = vmul.f32 %v780, 0.2
    %v1423 = vmul.f32 %v891, 0.2
    %v1424 = vmul.f32 %v893, 0.2
    %v1425 = vmul.f32 %v1004, 0.2
    %v1426 = vmul.f32 %v1006, 0.2
    %v1427 = vmul.f32 %v1117, 0.2
    %v1428 = vmul.f32 %v1119, 0.2
    %v1429 = vmul.f32 %v1230, 0.2
    %v1430 = vmul.f32 %v1232, 0.2
    %v1431 = vmul.f32 %v1343, 0.2
    %v1432 = vmul.f32 %v1345, 0.2
    %v1433 = vmul.f32 %v782, 0.2
    %v1434 = vmul.f32 %v784, 0.2
    %v1435 = vmul.f32 %v895, 0.2
    %v1436 = vmul.f32 %v897, 0.2
    %v1437 = vmul.f32 %v1008, 0.2
    %v1438 = vmul.f32 %v1010, 0.2
    %v1439 = vmul.f32 %v1121, 0.2
    %v1440 = vmul.f32 %v1123, 0.2
    %v1441 = vmul.f32 %v1234, 0.2
    %v1442 = vmul.f32 %v1236, 0.2
    %v1443 = vmul.f32 %v1347, 0.2
    %v1444 = vmul.f32 %v1349, 0.2
    %v1445 = vmul.f32 %v788, 0.2
    %v1446 = vmul.f32 %v790, 0.2
    %v1447 = vmul.f32 %v901, 0.2
    %v1448 = vmul.f32 %v903, 0.2
    %v1449 = vmul.f32 %v1014, 0.2
    %v1450 = vmul.f32 %v1016, 0.2
    %v1451 = vmul.f32 %v1127, 0.2
    %v1452 = vmul.f32 %v1129, 0.2
    %v1453 = vmul.f32 %v1240, 0.2
    %v1454 = vmul.f32 %v1242, 0.2
    %v1455 = vmul.f32 %v1353, 0.2
    %v1456 = vmul.f32 %v1355, 0.2
    %v1457 = vmul.f32 %v792, 0.2
    %v1458 = vmul.f32 %v794, 0.2
    %v1459 = vmul.f32 %v905, 0.2
    %v1460 = vmul.f32 %v907, 0.2
    %v1461 = vmul.f32 %v1018, 0.2
    %v1462 = vmul.f32 %v1020, 0.2
    %v1463 = vmul.f32 %v1131, 0.2
    %v1464 = vmul.f32 %v1133, 0.2
    %v1465 = vmul.f32 %v1244, 0.2
    %v1466 = vmul.f32 %v1246, 0.2
    %v1467 = vmul.f32 %v1357, 0.2
    %v1468 = vmul.f32 %v1359, 0.2
    %v1469 = vmul.f32 %v798, 0.2
    %v1470 = vmul.f32 %v800, 0.2
    %v1471 = vmul.f32 %v911, 0.2
    %v1472 = vmul.f32 %v913, 0.2
    %v1473 = vmul.f32 %v1024, 0.2
    %v1474 = vmul.f32 %v1026, 0.2
    %v1475 = vmul.f32 %v1137, 0.2
    %v1476 = vmul.f32 %v1139, 0.2
    %v1477 = vmul.f32 %v1250, 0.2
    %v1478 = vmul.f32 %v1252, 0.2
    %v1479 = vmul.f32 %v1363, 0.2
    %v1480 = vmul.f32 %v1365, 0.2
    %v1481 = vmul.f32 %v802, 0.2
    %v1482 = vmul.f32 %v804, 0.2
    %v1483 = vmul.f32 %v915, 0.2
    %v1484 = vmul.f32 %v917, 0.2
    %v1485 = vmul.f32 %v1028, 0.2
    %v1486 = vmul.f32 %v1030, 0.2
    %v1487 = vmul.f32 %v1141, 0.2
    %v1488 = vmul.f32 %v1143, 0.2
    %v1489 = vmul.f32 %v1254, 0.2
    %v1490 = vmul.f32 %v1256, 0.2
    %v1491 = vmul.f32 %v1367, 0.2
    %v1492 = vmul.f32 %v1369, 0.2
    %v1493 = vmul.f32 %v808, 0.2
    %v1494 = vmul.f32 %v810, 0.2
    %v1495 = vmul.f32 %v921, 0.2
    %v1496 = vmul.f32 %v923, 0.2
    %v1497 = vmul.f32 %v1034, 0.2
    %v1498 = vmul.f32 %v1036, 0.2
    %v1499 = vmul.f32 %v1147, 0.2
    %v1500 = vmul.f32 %v1149, 0.2
    %v1501 = vmul.f32 %v1260, 0.2
    %v1502 = vmul.f32 %v1262, 0.2
    %v1503 = vmul.f32 %v1373, 0.2
    %v1504 = vmul.f32 %v1375, 0.2
    %v1505 = vmul.f32 %v812, 0.2
    %v1506 = vmul.f32 %v814, 0.2
    %v1507 = vmul.f32 %v925, 0.2
    %v1508 = vmul.f32 %v927, 0.2
    %v1509 = vmul.f32 %v1038, 0.2
    %v1510 = vmul.f32 %v1040, 0.2
    %v1511 = vmul.f32 %v1151, 0.2
    %v1512 = vmul.f32 %v1153, 0.2
    %v1513 = vmul.f32 %v1264, 0.2
    %v1514 = vmul.f32 %v1266, 0.2
    %v1515 = vmul.f32 %v1377, 0.2
    %v1516 = vmul.f32 %v1379, 0.2
    %v1517 = vmul.f32 %v818, 0.2
    %v1518 = vmul.f32 %v820, 0.2
    %v1519 = vmul.f32 %v931, 0.2
    %v1520 = vmul.f32 %v933, 0.2
    %v1521 = vmul.f32 %v1044, 0.2
    %v1522 = vmul.f32 %v1046, 0.2
    %v1523 = vmul.f32 %v1157, 0.2
    %v1524 = vmul.f32 %v1159, 0.2
    %v1525 = vmul.f32 %v1270, 0.2
    %v1526 = vmul.f32 %v1272, 0.2
    %v1527 = vmul.f32 %v1383, 0.2
    %v1528 = vmul.f32 %v1385, 0.2
    %v1529 = vmul.f32 %v822, 0.2
    %v1530 = vmul.f32 %v824, 0.2
    %v1531 = vmul.f32 %v935, 0.2
    %v1532 = vmul.f32 %v937, 0.2
    %v1533 = vmul.f32 %v1048, 0.2
    %v1534 = vmul.f32 %v1050, 0.2
    %v1535 = vmul.f32 %v1161, 0.2
    %v1536 = vmul.f32 %v1163, 0.2
    %v1537 = vmul.f32 %v1274, 0.2
    %v1538 = vmul.f32 %v1276, 0.2
    %v1539 = vmul.f32 %v1387, 0.2
    %v1540 = vmul.f32 %v1389, 0.2
    %v1541 = vmul.f32 %v828, 0.2
    %v1542 = vmul.f32 %v830, 0.2
    %v1543 = vmul.f32 %v941, 0.2
    %v1544 = vmul.f32 %v943, 0.2
    %v1545 = vmul.f32 %v1054, 0.2
    %v1546 = vmul.f32 %v1056, 0.2
    %v1547 = vmul.f32 %v1167, 0.2
    %v1548 = vmul.f32 %v1169, 0.2
    %v1549 = vmul.f32 %v1280, 0.2
    %v1550 = vmul.f32 %v1282, 0.2
    %v1551 = vmul.f32 %v1393, 0.2
    %v1552 = vmul.f32 %v1395, 0.2
    %v1553 = vmul.f32 %v832, 0.2
    %v1554 = vmul.f32 %v834, 0.2
    %v1555 = vmul.f32 %v945, 0.2
    %v1556 = vmul.f32 %v947, 0.2
    %v1557 = vmul.f32 %v1058, 0.2
    %v1558 = vmul.f32 %v1060, 0.2
    %v1559 = vmul.f32 %v1171, 0.2
    %v1560 = vmul.f32 %v1173, 0.2
    %v1561 = vmul.f32 %v1284, 0.2
    %v1562 = vmul.f32 %v1286, 0.2
    %v1563 = vmul.f32 %v1397, 0.2
    %v1564 = vmul.f32 %v1399, 0.2
    %v1565 = vmul.f32 %v838, 0.2
    %v1566 = vmul.f32 %v840, 0.2
    %v1567 = vmul.f32 %v951, 0.2
    %v1568 = vmul.f32 %v953, 0.2
    %v1569 = vmul.f32 %v1064, 0.2
    %v1570 = vmul.f32 %v1066, 0.2
    %v1571 = vmul.f32 %v1177, 0.2
    %v1572 = vmul.f32 %v1179, 0.2
    %v1573 = vmul.f32 %v1290, 0.2
    %v1574 = vmul.f32 %v1292, 0.2
    %v1575 = vmul.f32 %v1403, 0.2
    %v1576 = vmul.f32 %v1405, 0.2
    %v1577 = vmul.f32 %v842, 0.2
    %v1578 = vmul.f32 %v844, 0.2
    %v1579 = vmul.f32 %v955, 0.2
    %v1580 = vmul.f32 %v957, 0.2
    %v1581 = vmul.f32 %v1068, 0.2
    %v1582 = vmul.f32 %v1070, 0.2
    %v1583 = vmul.f32 %v1181, 0.2
    %v1584 = vmul.f32 %v1183, 0.2
    %v1585 = vmul.f32 %v1294, 0.2
    %v1586 = vmul.f32 %v1296, 0.2
    %v1587 = vmul.f32 %v1407, 0.2
    %v1588 = vmul.f32 %v1409, 0.2
    %v1589 = vmul.f32 %v848, 0.2
    %v1590 = vmul.f32 %v850, 0.2
    %v1591 = vmul.f32 %v961, 0.2
    %v1592 = vmul.f32 %v963, 0.2
    %v1593 = vmul.f32 %v1074, 0.2
    %v1594 = vmul.f32 %v1076, 0.2
    %v1595 = vmul.f32 %v1187, 0.2
    %v1596 = vmul.f32 %v1189, 0.2
    %v1597 = vmul.f32 %v1300, 0.2
    %v1598 = vmul.f32 %v1302, 0.2
    %v1599 = vmul.f32 %v1413, 0.2
    %v1600 = vmul.f32 %v1415, 0.2
    %v1601 = vmul.f32 %v852, 0.2
    %v1602 = vmul.f32 %v854, 0.2
    %v1603 = vmul.f32 %v965, 0.2
    %v1604 = vmul.f32 %v967, 0.2
    %v1605 = vmul.f32 %v1078, 0.2
    %v1606 = vmul.f32 %v1080, 0.2
    %v1607 = vmul.f32 %v1191, 0.2
    %v1608 = vmul.f32 %v1193, 0.2
    %v1609 = vmul.f32 %v1304, 0.2
    %v1610 = vmul.f32 %v1306, 0.2
    %v1611 = vmul.f32 %v1417, 0.2
    %v1612 = vmul.f32 %v1419, 0.2
    %v1613 = vmax.f32 %v778, %v1421
    %v1614 = vmax.f32 %v780, %v1422
    %v1615 = vmax.f32 %v891, %v1423
    %v1616 = vmax.f32 %v893, %v1424
    %v1617 = vmax.f32 %v1004, %v1425
    %v1618 = vmax.f32 %v1006, %v1426
    %v1619 = vmax.f32 %v1117, %v1427
    %v1620 = vmax.f32 %v1119, %v1428
    %v1621 = vmax.f32 %v1230, %v1429
    %v1622 = vmax.f32 %v1232, %v1430
    %v1623 = vmax.f32 %v1343, %v1431
    %v1624 = vmax.f32 %v1345, %v1432
    %v1625 = vmax.f32 %v782, %v1433
    %v1626 = vmax.f32 %v784, %v1434
    %v1627 = vmax.f32 %v895, %v1435
    %v1628 = vmax.f32 %v897, %v1436
    %v1629 = vmax.f32 %v1008, %v1437
    %v1630 = vmax.f32 %v1010, %v1438
    %v1631 = vmax.f32 %v1121, %v1439
    %v1632 = vmax.f32 %v1123, %v1440
    %v1633 = vmax.f32 %v1234, %v1441
    %v1634 = vmax.f32 %v1236, %v1442
    %v1635 = vmax.f32 %v1347, %v1443
    %v1636 = vmax.f32 %v1349, %v1444
    %v1637 = vmax.f32 %v788, %v1445
    %v1638 = vmax.f32 %v790, %v1446
    %v1639 = vmax.f32 %v901, %v1447
    %v1640 = vmax.f32 %v903, %v1448
    %v1641 = vmax.f32 %v1014, %v1449
    %v1642 = vmax.f32 %v1016, %v1450
    %v1643 = vmax.f32 %v1127, %v1451
    %v1644 = vmax.f32 %v1129, %v1452
    %v1645 = vmax.f32 %v1240, %v1453
    %v1646 = vmax.f32 %v1242, %v1454
    %v1647 = vmax.f32 %v1353, %v1455
    %v1648 = vmax.f32 %v1355, %v1456
    %v1649 = vmax.f32 %v792, %v1457
    %v1650 = vmax.f32 %v794, %v1458
    %v1651 = vmax.f32 %v905, %v1459
    %v1652 = vmax.f32 %v907, %v1460
    %v1653 = vmax.f32 %v1018, %v1461
    %v1654 = vmax.f32 %v1020, %v1462
    %v1655 = vmax.f32 %v1131, %v1463
    %v1656 = vmax.f32 %v1133, %v1464
    %v1657 = vmax.f32 %v1244, %v1465
    %v1658 = vmax.f32 %v1246, %v1466
    %v1659 = vmax.f32 %v1357, %v1467
    %v1660 = vmax.f32 %v1359, %v1468
    %v1661 = vmax.f32 %v798, %v1469
    %v1662 = vmax.f32 %v800, %v1470
    %v1663 = vmax.f32 %v911, %v1471
    %v1664 = vmax.f32 %v913, %v1472
    %v1665 = vmax.f32 %v1024, %v1473
    %v1666 = vmax.f32 %v1026, %v1474
    %v1667 = vmax.f32 %v1137, %v1475
    %v1668 = vmax.f32 %v1139, %v1476
    %v1669 = vmax.f32 %v1250, %v1477
    %v1670 = vmax.f32 %v1252, %v1478
    %v1671 = vmax.f32 %v1363, %v1479
    %v1672 = vmax.f32 %v1365, %v1480
    %v1673 = vmax.f32 %v802, %v1481
    %v1674 = vmax.f32 %v804, %v1482
    %v1675 = vmax.f32 %v915, %v1483
    %v1676 = vmax.f32 %v917, %v1484
    %v1677 = vmax.f32 %v1028, %v1485
    %v1678 = vmax.f32 %v1030, %v1486
    %v1679 = vmax.f32 %v1141, %v1487
    %v1680 = vmax.f32 %v1143, %v1488
    %v1681 = vmax.f32 %v1254, %v1489
    %v1682 = vmax.f32 %v1256, %v1490
    %v1683 = vmax.f32 %v1367, %v1491
    %v1684 = vmax.f32 %v1369, %v1492
    %v1685 = vmax.f32 %v808, %v1493
    %v1686 = vmax.f32 %v810, %v1494
    %v1687 = vmax.f32 %v921, %v1495
    %v1688 = vmax.f32 %v923, %v1496
    %v1689 = vmax.f32 %v1034, %v1497
    %v1690 = vmax.f32 %v1036, %v1498
    %v1691 = vmax.f32 %v1147, %v1499
    %v1692 = vmax.f32 %v1149, %v1500
    %v1693 = vmax.f32 %v1260, %v1501
    %v1694 = vmax.f32 %v1262, %v1502
    %v1695 = vmax.f32 %v1373, %v1503
    %v1696 = vmax.f32 %v1375, %v1504
    %v1697 = vmax.f32 %v812, %v1505
    %v1698 = vmax.f32 %v814, %v1506
    %v1699 = vmax.f32 %v925, %v1507
    %v1700 = vmax.f32 %v927, %v1508
    %v1701 = vmax.f32 %v1038, %v1509
    %v1702 = vmax.f32 %v1040, %v1510
    %v1703 = vmax.f32 %v1151, %v1511
    %v1704 = vmax.f32 %v1153, %v1512
    %v1705 = vmax.f32 %v1264, %v1513
    %v1706 = vmax.f32 %v1266, %v1514
    %v1707 = vmax.f32 %v1377, %v1515
    %v1708 = vmax.f32 %v1379, %v1516
    %v1709 = vmax.f32 %v818, %v1517
    %v1710 = vmax.f32 %v820, %v1518
    %v1711 = vmax.f32 %v931, %v1519
    %v1712 = vmax.f32 %v933, %v1520
    %v1713 = vmax.f32 %v1044, %v1521
    %v1714 = vmax.f32 %v1046, %v1522
    %v1715 = vmax.f32 %v1157, %v1523
    %v1716 = vmax.f32 %v1159, %v1524
    %v1717 = vmax.f32 %v1270, %v1525
    %v1718 = vmax.f32 %v1272, %v1526
    %v1719 = vmax.f32 %v1383, %v1527
    %v1720 = vmax.f32 %v1385, %v1528
    %v1721 = vmax.f32 %v822, %v1529
    %v1722 = vmax.f32 %v824, %v1530
    %v1723 = vmax.f32 %v935, %v1531
    %v1724 = vmax.f32 %v937, %v1532
    %v1725 = vmax.f32 %v1048, %v1533
    %v1726 = vmax.f32 %v1050, %v1534
    %v1727 = vmax.f32 %v1161, %v1535
    %v1728 = vmax.f32 %v1163, %v1536
    %v1729 = vmax.f32 %v1274, %v1537
    %v1730 = vmax.f32 %v1276, %v1538
    %v1731 = vmax.f32 %v1387, %v1539
    %v1732 = vmax.f32 %v1389, %v1540
    %v1733 = vmax.f32 %v828, %v1541
    %v1734 = vmax.f32 %v830, %v1542
    %v1735 = vmax.f32 %v941, %v1543
    %v1736 = vmax.f32 %v943, %v1544
    %v1737 = vmax.f32 %v1054, %v1545
    %v1738 = vmax.f32 %v1056, %v1546
    %v1739 = vmax.f32 %v1167, %v1547
    %v1740 = vmax.f32 %v1169, %v1548
    %v1741 = vmax.f32 %v1280, %v1549
    %v1742 = vmax.f32 %v1282, %v1550
    %v1743 = vmax.f32 %v1393, %v1551
    %v1744 = vmax.f32 %v1395, %v1552
    %v1745 = vmax.f32 %v832, %v1553
    %v1746 = vmax.f32 %v834, %v1554
    %v1747 = vmax.f32 %v945, %v1555
    %v1748 = vmax.f32 %v947, %v1556
    %v1749 = vmax.f32 %v1058, %v1557
    %v1750 = vmax.f32 %v1060, %v1558
    %v1751 = vmax.f32 %v1171, %v1559
    %v1752 = vmax.f32 %v1173, %v1560
    %v1753 = vmax.f32 %v1284, %v1561
    %v1754 = vmax.f32 %v1286, %v1562
    %v1755 = vmax.f32 %v1397, %v1563
    %v1756 = vmax.f32 %v1399, %v1564
    %v1757 = vmax.f32 %v838, %v1565
    %v1758 = vmax.f32 %v840, %v1566
    %v1759 = vmax.f32 %v951, %v1567
    %v1760 = vmax.f32 %v953, %v1568
    %v1761 = vmax.f32 %v1064, %v1569
    %v1762 = vmax.f32 %v1066, %v1570
    %v1763 = vmax.f32 %v1177, %v1571
    %v1764 = vmax.f32 %v1179, %v1572
    %v1765 = vmax.f32 %v1290, %v1573
    %v1766 = vmax.f32 %v1292, %v1574
    %v1767 = vmax.f32 %v1403, %v1575
    %v1768 = vmax.f32 %v1405, %v1576
    %v1769 = vmax.f32 %v842, %v1577
    %v1770 = vmax.f32 %v844, %v1578
    %v1771 = vmax.f32 %v955, %v1579
    %v1772 = vmax.f32 %v957, %v1580
    %v1773 = vmax.f32 %v1068, %v1581
    %v1774 = vmax.f32 %v1070, %v1582
    %v1775 = vmax.f32 %v1181, %v1583
    %v1776 = vmax.f32 %v1183, %v1584
    %v1777 = vmax.f32 %v1294, %v1585
    %v1778 = vmax.f32 %v1296, %v1586
    %v1779 = vmax.f32 %v1407, %v1587
    %v1780 = vmax.f32 %v1409, %v1588
    %v1781 = vmax.f32 %v848, %v1589
    %v1782 = vmax.f32 %v850, %v1590
    %v1783 = vmax.f32 %v961, %v1591
    %v1784 = vmax.f32 %v963, %v1592
    %v1785 = vmax.f32 %v1074, %v1593
    %v1786 = vmax.f32 %v1076, %v1594
    %v1787 = vmax.f32 %v1187, %v1595
    %v1788 = vmax.f32 %v1189, %v1596
    %v1789 = vmax.f32 %v1300, %v1597
    %v1790 = vmax.f32 %v1302, %v1598
    %v1791 = vmax.f32 %v1413, %v1599
    %v1792 = vmax.f32 %v1415, %v1600
    %v1793 = vmax.f32 %v852, %v1601
    %v1794 = vmax.f32 %v854, %v1602
    %v1795 = vmax.f32 %v965, %v1603
    %v1796 = vmax.f32 %v967, %v1604
    %v1797 = vmax.f32 %v1078, %v1605
    %v1798 = vmax.f32 %v1080, %v1606
    %v1799 = vmax.f32 %v1191, %v1607
    %v1800 = vmax.f32 %v1193, %v1608
    %v1801 = vmax.f32 %v1304, %v1609
    %v1802 = vmax.f32 %v1306, %v1610
    %v1803 = vmax.f32 %v1417, %v1611
    %v1804 = vmax.f32 %v1419, %v1612
    %v1805 = vmax.f32 %v1613, %v1625
    %v1806 = vmax.f32 %v1805, %v1637
    %v1807 = vmax.f32 %v1806, %v1649
    %v1808 = vmax.f32 %v1807, %v1661
    %v1809 = vmax.f32 %v1808, %v1673
    %v1810 = vmax.f32 %v1809, %v1685
    %v1811 = vmax.f32 %v1810, %v1697
    %v1812 = vmax.f32 %v1811, %v1709
    %v1813 = vmax.f32 %v1812, %v1721
    %v1814 = vmax.f32 %v1813, %v1733
    %v1815 = vmax.f32 %v1814, %v1745
    %v1816 = vmax.f32 %v1815, %v1757
    %v1817 = vmax.f32 %v1816, %v1769
    %v1818 = vmax.f32 %v1817, %v1781
    %v1819 = vmax.f32 %v1818, %v1793
    %v1820 = vmax.f32 %v1614, %v1626
    %v1821 = vmax.f32 %v1820, %v1638
    %v1822 = vmax.f32 %v1821, %v1650
    %v1823 = vmax.f32 %v1822, %v1662
    %v1824 = vmax.f32 %v1823, %v1674
    %v1825 = vmax.f32 %v1824, %v1686
    %v1826 = vmax.f32 %v1825, %v1698
    %v1827 = vmax.f32 %v1826, %v1710
    %v1828 = vmax.f32 %v1827, %v1722
    %v1829 = vmax.f32 %v1828, %v1734
    %v1830 = vmax.f32 %v1829, %v1746
    %v1831 = vmax.f32 %v1830, %v1758
    %v1832 = vmax.f32 %v1831, %v1770
    %v1833 = vmax.f32 %v1832, %v1782
    %v1834 = vmax.f32 %v1833, %v1794
    %v1835 = vmax.f32 %v1615, %v1627
    %v1836 = vmax.f32 %v1835, %v1639
    %v1837 = vmax.f32 %v1836, %v1651
    %v1838 = vmax.f32 %v1837, %v1663
    %v1839 = vmax.f32 %v1838, %v1675
    %v1840 = vmax.f32 %v1839, %v1687
    %v1841 = vmax.f32 %v1840, %v1699
    %v1842 = vmax.f32 %v1841, %v1711
    %v1843 = vmax.f32 %v1842, %v1723
    %v1844 = vmax.f32 %v1843, %v1735
    %v1845 = vmax.f32 %v1844, %v1747
    %v1846 = vmax.f32 %v1845, %v1759
    %v1847 = vmax.f32 %v1846, %v1771
    %v1848 = vmax.f32 %v1847, %v1783
    %v1849 = vmax.f32 %v1848, %v1795
    %v1850 = vmax.f32 %v1616, %v1628
    %v1851 = vmax.f32 %v1850, %v1640
    %v1852 = vmax.f32 %v1851, %v1652
    %v1853 = vmax.f32 %v1852, %v1664
    %v1854 = vmax.f32 %v1853, %v1676
    %v1855 = vmax.f32 %v1854, %v1688
    %v1856 = vmax.f32 %v1855, %v1700
    %v1857 = vmax.f32 %v1856, %v1712
    %v1858 = vmax.f32 %v1857, %v1724
    %v1859 = vmax.f32 %v1858, %v1736
    %v1860 = vmax.f32 %v1859, %v1748
    %v1861 = vmax.f32 %v1860, %v1760
    %v1862 = vmax.f32 %v1861, %v1772
    %v1863 = vmax.f32 %v1862, %v1784
    %v1864 = vmax.f32 %v1863, %v1796
    %v1865 = vmax.f32 %v1617, %v1629
    %v1866 = vmax.f32 %v1865, %v1641
    %v1867 = vmax.f32 %v1866, %v1653
    %v1868 = vmax.f32 %v1867, %v1665
    %v1869 = vmax.f32 %v1868, %v1677
    %v1870 = vmax.f32 %v1869, %v1689
    %v1871 = vmax.f32 %v1870, %v1701
    %v1872 = vmax.f32 %v1871, %v1713
    %v1873 = vmax.f32 %v1872, %v1725
    %v1874 = vmax.f32 %v1873, %v1737
    %v1875 = vmax.f32 %v1874, %v1749
    %v1876 = vmax.f32 %v1875, %v1761
    %v1877 = vmax.f32 %v1876, %v1773
    %v1878 = vmax.f32 %v1877, %v1785
    %v1879 = vmax.f32 %v1878, %v1797
    %v1880 = vmax.f32 %v1618, %v1630
    %v1881 = vmax.f32 %v1880, %v1642
    %v1882 = vmax.f32 %v1881, %v1654
    %v1883 = vmax.f32 %v1882, %v1666
    %v1884 = vmax.f32 %v1883, %v1678
    %v1885 = vmax.f32 %v1884, %v1690
    %v1886 = vmax.f32 %v1885, %v1702
    %v1887 = vmax.f32 %v1886, %v1714
    %v1888 = vmax.f32 %v1887, %v1726
    %v1889 = vmax.f32 %v1888, %v1738
    %v1890 = vmax.f32 %v1889, %v1750
    %v1891 = vmax.f32 %v1890, %v1762
    %v1892 = vmax.f32 %v1891, %v1774
    %v1893 = vmax.f32 %v1892, %v1786
    %v1894 = vmax.f32 %v1893, %v1798
    %v1895 = vmax.f32 %v1619, %v1631
    %v1896 = vmax.f32 %v1895, %v1643
    %v1897 = vmax.f32 %v1896, %v1655
    %v1898 = vmax.f32 %v1897, %v1667
    %v1899 = vmax.f32 %v1898, %v1679
    %v1900 = vmax.f32 %v1899, %v1691
    %v1901 = vmax.f32 %v1900, %v1703
    %v1902 = vmax.f32 %v1901, %v1715
    %v1903 = vmax.f32 %v1902, %v1727
    %v1904 = vmax.f32 %v1903, %v1739
    %v1905 = vmax.f32 %v1904, %v1751
    %v1906 = vmax.f32 %v1905, %v1763
    %v1907 = vmax.f32 %v1906, %v1775
    %v1908 = vmax.f32 %v1907, %v1787
    %v1909 = vmax.f32 %v1908, %v1799
    %v1910 = vmax.f32 %v1620, %v1632
    %v1911 = vmax.f32 %v1910, %v1644
    %v1912 = vmax.f32 %v1911, %v1656
    %v1913 = vmax.f32 %v1912, %v1668
    %v1914 = vmax.f32 %v1913, %v1680
    %v1915 = vmax.f32 %v1914, %v1692
    %v1916 = vmax.f32 %v1915, %v1704
    %v1917 = vmax.f32 %v1916, %v1716
    %v1918 = vmax.f32 %v1917, %v1728
    %v1919 = vmax.f32 %v1918, %v1740
    %v1920 = vmax.f32 %v1919, %v1752
    %v1921 = vmax.f32 %v1920, %v1764
    %v1922 = vmax.f32 %v1921, %v1776
    %v1923 = vmax.f32 %v1922, %v1788
    %v1924 = vmax.f32 %v1923, %v1800
    %v1925 = vmax.f32 %v1621, %v1633
    %v1926 = vmax.f32 %v1925, %v1645
    %v1927 = vmax.f32 %v1926, %v1657
    %v1928 = vmax.f32 %v1927, %v1669
    %v1929 = vmax.f32 %v1928, %v1681
    %v1930 = vmax.f32 %v1929, %v1693
    %v1931 = vmax.f32 %v1930, %v1705
    %v1932 = vmax.f32 %v1931, %v1717
    %v1933 = vmax.f32 %v1932, %v1729
    %v1934 = vmax.f32 %v1933, %v1741
    %v1935 = vmax.f32 %v1934, %v1753
    %v1936 = vmax.f32 %v1935, %v1765
    %v1937 = vmax.f32 %v1936, %v1777
    %v1938 = vmax.f32 %v1937, %v1789
    %v1939 = vmax.f32 %v1938, %v1801
    %v1940 = vmax.f32 %v1622, %v1634
    %v1941 = vmax.f32 %v1940, %v1646
    %v1942 = vmax.f32 %v1941, %v1658
    %v1943 = vmax.f32 %v1942, %v1670
    %v1944 = vmax.f32 %v1943, %v1682
    %v1945 = vmax.f32 %v1944, %v1694
    %v1946 = vmax.f32 %v1945, %v1706
    %v1947 = vmax.f32 %v1946, %v1718
    %v1948 = vmax.f32 %v1947, %v1730
    %v1949 = vmax.f32 %v1948, %v1742
    %v1950 = vmax.f32 %v1949, %v1754
    %v1951 = vmax.f32 %v1950, %v1766
    %v1952 = vmax.f32 %v1951, %v1778
    %v1953 = vmax.f32 %v1952, %v1790
    %v1954 = vmax.f32 %v1953, %v1802
    %v1955 = vmax.f32 %v1623, %v1635
    %v1956 = vmax.f32 %v1955, %v1647
    %v1957 = vmax.f32 %v1956, %v1659
    %v1958 = vmax.f32 %v1957, %v1671
    %v1959 = vmax.f32 %v1958, %v1683
    %v1960 = vmax.f32 %v1959, %v1695
    %v1961 = vmax.f32 %v1960, %v1707
    %v1962 = vmax.f32 %v1961, %v1719
    %v1963 = vmax.f32 %v1962, %v1731
    %v1964 = vmax.f32 %v1963, %v1743
    %v1965 = vmax.f32 %v1964, %v1755
    %v1966 = vmax.f32 %v1965, %v1767
    %v1967 = vmax.f32 %v1966, %v1779
    %v1968 = vmax.f32 %v1967, %v1791
    %v1969 = vmax.f32 %v1968, %v1803
    %v1970 = vmax.f32 %v1624, %v1636
    %v1971 = vmax.f32 %v1970, %v1648
    %v1972 = vmax.f32 %v1971, %v1660
    %v1973 = vmax.f32 %v1972, %v1672
    %v1974 = vmax.f32 %v1973, %v1684
    %v1975 = vmax.f32 %v1974, %v1696
    %v1976 = vmax.f32 %v1975, %v1708
    %v1977 = vmax.f32 %v1976, %v1720
    %v1978 = vmax.f32 %v1977, %v1732
    %v1979 = vmax.f32 %v1978, %v1744
    %v1980 = vmax.f32 %v1979, %v1756
    %v1981 = vmax.f32 %v1980, %v1768
    %v1982 = vmax.f32 %v1981, %v1780
    %v1983 = vmax.f32 %v1982, %v1792
    %v1984 = vmax.f32 %v1983, %v1804
    %v1985 = vpack.c.bf16 %v1819, %v1819
    %v1986 = vpack.c.bf16 %v1834, %v1834
    %v1987 = vpack.c.bf16 %v1849, %v1849
    %v1988 = vpack.c.bf16 %v1864, %v1864
    %v1989 = vpack.c.bf16 %v1879, %v1879
    %v1990 = vpack.c.bf16 %v1894, %v1894
    %v1991 = vpack.c.bf16 %v1909, %v1909
    %v1992 = vpack.c.bf16 %v1924, %v1924
    %v1993 = vpack.c.bf16 %v1939, %v1939
    %v1994 = vpack.c.bf16 %v1954, %v1954
    %v1995 = vpack.c.bf16 %v1969, %v1969
    %v1996 = vpack.c.bf16 %v1984, %v1984
    %v1997 = vld [vmem:[#allocation7] sm:$0xff]
    %v1998 = vld [vmem:[#allocation7 + $0x8] sm:$0xff]
    %v1999 = vld [vmem:[#allocation7 + $0x10] sm:$0xff]
    %v2000 = vld [vmem:[#allocation7 + $0x18] sm:$0xff]
    %v2001 = vld [vmem:[#allocation7 + $0x20] sm:$0xff]
    %v2002 = vld [vmem:[#allocation7 + $0x28] sm:$0xff]
    %v2003 = vld [vmem:[#allocation7 + $0x30] sm:$0xff]
    %v2004 = vld [vmem:[#allocation7 + $0x38] sm:$0xff]
    %v2005 = vld [vmem:[#allocation7 + $0x40] sm:$0xff]
    %v2006 = vld [vmem:[#allocation7 + $0x48] sm:$0xff]
    %v2007 = vld [vmem:[#allocation7 + $0x50] sm:$0xff]
    %v2008 = vld [vmem:[#allocation7 + $0x58] sm:$0xff]
    %v2009 = vld [vmem:[#allocation7 + $0x60] sm:$0xff]
    %v2010 = vld [vmem:[#allocation7 + $0x68] sm:$0xff]
    %v2011 = vld [vmem:[#allocation7 + $0x70] sm:$0xff]
    %v2012 = vld [vmem:[#allocation7 + $0x78] sm:$0xff]
    %v2013 = vld [vmem:[#allocation7 + $0x80] sm:$0xff]
    %v2014 = vld [vmem:[#allocation7 + $0x88] sm:$0xff]
    %v2015 = vld [vmem:[#allocation7 + $0x90] sm:$0xff]
    %v2016 = vld [vmem:[#allocation7 + $0x98] sm:$0xff]
    %v2017 = vld [vmem:[#allocation7 + $0xa0] sm:$0xff]
    %v2018 = vld [vmem:[#allocation7 + $0xa8] sm:$0xff]
    %v2019 = vld [vmem:[#allocation7 + $0xb0] sm:$0xff]
    %v2020 = vld [vmem:[#allocation7 + $0xb8] sm:$0xff]
    %v2021 = vld [vmem:[#allocation7 + $0xc0] sm:$0xff]
    %v2022 = vld [vmem:[#allocation7 + $0xc8] sm:$0xff]
    %v2023 = vld [vmem:[#allocation7 + $0xd0] sm:$0xff]
    %v2024 = vld [vmem:[#allocation7 + $0xd8] sm:$0xff]
    %v2025 = vld [vmem:[#allocation7 + $0xe0] sm:$0xff]
    %v2026 = vld [vmem:[#allocation7 + $0xe8] sm:$0xff]
    %v2027 = vld [vmem:[#allocation7 + $0xf0] sm:$0xff]
    %v2028 = vld [vmem:[#allocation7 + $0xf8] sm:$0xff]
    %v2029 = vld [vmem:[#allocation7 + $0x100] sm:$0xff]
    %v2030 = vld [vmem:[#allocation7 + $0x108] sm:$0xff]
    %v2031 = vld [vmem:[#allocation7 + $0x110] sm:$0xff]
    %v2032 = vld [vmem:[#allocation7 + $0x118] sm:$0xff]
    %v2033 = vld [vmem:[#allocation7 + $0x120] sm:$0xff]
    %v2034 = vld [vmem:[#allocation7 + $0x128] sm:$0xff]
    %v2035 = vld [vmem:[#allocation7 + $0x130] sm:$0xff]
    %v2036 = vld [vmem:[#allocation7 + $0x138] sm:$0xff]
    %v2037 = vld [vmem:[#allocation7 + $0x140] sm:$0xff]
    %v2038 = vld [vmem:[#allocation7 + $0x148] sm:$0xff]
    %v2039 = vld [vmem:[#allocation7 + $0x150] sm:$0xff]
    %v2040 = vld [vmem:[#allocation7 + $0x158] sm:$0xff]
    %v2041 = vld [vmem:[#allocation7 + $0x160] sm:$0xff]
    %v2042 = vld [vmem:[#allocation7 + $0x168] sm:$0xff]
    %v2043 = vld [vmem:[#allocation7 + $0x170] sm:$0xff]
    %v2044 = vld [vmem:[#allocation7 + $0x178] sm:$0xff]
    %v2045 = vld [vmem:[#allocation7 + $0x180] sm:$0xff]
    %v2046 = vld [vmem:[#allocation7 + $0x188] sm:$0xff]
    %v2047 = vld [vmem:[#allocation7 + $0x190] sm:$0xff]
    %v2048 = vld [vmem:[#allocation7 + $0x198] sm:$0xff]
    %v2049 = vld [vmem:[#allocation7 + $0x1a0] sm:$0xff]
    %v2050 = vld [vmem:[#allocation7 + $0x1a8] sm:$0xff]
    %v2051 = vld [vmem:[#allocation7 + $0x1b0] sm:$0xff]
    %v2052 = vld [vmem:[#allocation7 + $0x1b8] sm:$0xff]
    %v2053 = vld [vmem:[#allocation7 + $0x1c0] sm:$0xff]
    %v2054 = vld [vmem:[#allocation7 + $0x1c8] sm:$0xff]
    %v2055 = vld [vmem:[#allocation7 + $0x1d0] sm:$0xff]
    %v2056 = vld [vmem:[#allocation7 + $0x1d8] sm:$0xff]
    %v2057 = vld [vmem:[#allocation7 + $0x1e0] sm:$0xff]
    %v2058 = vld [vmem:[#allocation7 + $0x1e8] sm:$0xff]
    %v2059 = vld [vmem:[#allocation7 + $0x1f0] sm:$0xff]
    %v2060 = vld [vmem:[#allocation7 + $0x1f8] sm:$0xff]
    %v2061 = vld [vmem:[#allocation7 + $0x200] sm:$0xff]
    %v2062 = vld [vmem:[#allocation7 + $0x208] sm:$0xff]
    %v2063 = vld [vmem:[#allocation7 + $0x210] sm:$0xff]
    %v2064 = vld [vmem:[#allocation7 + $0x218] sm:$0xff]
    %v2065 = vld [vmem:[#allocation7 + $0x220] sm:$0xff]
    %v2066 = vld [vmem:[#allocation7 + $0x228] sm:$0xff]
    %v2067 = vld [vmem:[#allocation7 + $0x230] sm:$0xff]
    %v2068 = vld [vmem:[#allocation7 + $0x238] sm:$0xff]
    %v2069 = vld [vmem:[#allocation7 + $0x240] sm:$0xff]
    %v2070 = vld [vmem:[#allocation7 + $0x248] sm:$0xff]
    %v2071 = vld [vmem:[#allocation7 + $0x250] sm:$0xff]
    %v2072 = vld [vmem:[#allocation7 + $0x258] sm:$0xff]
    %v2073 = vld [vmem:[#allocation7 + $0x260] sm:$0xff]
    %v2074 = vld [vmem:[#allocation7 + $0x268] sm:$0xff]
    %v2075 = vld [vmem:[#allocation7 + $0x270] sm:$0xff]
    %v2076 = vld [vmem:[#allocation7 + $0x278] sm:$0xff]
    %v2077 = vld [vmem:[#allocation7 + $0x280] sm:$0xff]
    %v2078 = vld [vmem:[#allocation7 + $0x288] sm:$0xff]
    %v2079 = vld [vmem:[#allocation7 + $0x290] sm:$0xff]
    %v2080 = vld [vmem:[#allocation7 + $0x298] sm:$0xff]
    %v2081 = vld [vmem:[#allocation7 + $0x2a0] sm:$0xff]
    %v2082 = vld [vmem:[#allocation7 + $0x2a8] sm:$0xff]
    %v2083 = vld [vmem:[#allocation7 + $0x2b0] sm:$0xff]
    %v2084 = vld [vmem:[#allocation7 + $0x2b8] sm:$0xff]
    %v2085 = vld [vmem:[#allocation7 + $0x2c0] sm:$0xff]
    %v2086 = vld [vmem:[#allocation7 + $0x2c8] sm:$0xff]
    %v2087 = vld [vmem:[#allocation7 + $0x2d0] sm:$0xff]
    %v2088 = vld [vmem:[#allocation7 + $0x2d8] sm:$0xff]
    %v2089 = vld [vmem:[#allocation7 + $0x2e0] sm:$0xff]
    %v2090 = vld [vmem:[#allocation7 + $0x2e8] sm:$0xff]
    %v2091 = vld [vmem:[#allocation7 + $0x2f0] sm:$0xff]
    %v2092 = vld [vmem:[#allocation7 + $0x2f8] sm:$0xff]
    %v2093 = vld [vmem:[#allocation7 + $0x300] sm:$0xff]
    %v2094 = vld [vmem:[#allocation7 + $0x308] sm:$0xff]
    %v2095 = vld [vmem:[#allocation7 + $0x310] sm:$0xff]
    %v2096 = vld [vmem:[#allocation7 + $0x318] sm:$0xff]
    %v2097 = vld [vmem:[#allocation7 + $0x320] sm:$0xff]
    %v2098 = vld [vmem:[#allocation7 + $0x328] sm:$0xff]
    %v2099 = vld [vmem:[#allocation7 + $0x330] sm:$0xff]
    %v2100 = vld [vmem:[#allocation7 + $0x338] sm:$0xff]
    %v2101 = vld [vmem:[#allocation7 + $0x340] sm:$0xff]
    %v2102 = vld [vmem:[#allocation7 + $0x348] sm:$0xff]
    %v2103 = vld [vmem:[#allocation7 + $0x350] sm:$0xff]
    %v2104 = vld [vmem:[#allocation7 + $0x358] sm:$0xff]
    %v2105 = vld [vmem:[#allocation7 + $0x360] sm:$0xff]
    %v2106 = vld [vmem:[#allocation7 + $0x368] sm:$0xff]
    %v2107 = vld [vmem:[#allocation7 + $0x370] sm:$0xff]
    %v2108 = vld [vmem:[#allocation7 + $0x378] sm:$0xff]
    %v2109 = vld [vmem:[#allocation7 + $0x380] sm:$0xff]
    %v2110 = vld [vmem:[#allocation7 + $0x388] sm:$0xff]
    %v2111 = vld [vmem:[#allocation7 + $0x390] sm:$0xff]
    %v2112 = vld [vmem:[#allocation7 + $0x398] sm:$0xff]
    %v2113 = vld [vmem:[#allocation7 + $0x3a0] sm:$0xff]
    %v2114 = vld [vmem:[#allocation7 + $0x3a8] sm:$0xff]
    %v2115 = vld [vmem:[#allocation7 + $0x3b0] sm:$0xff]
    %v2116 = vld [vmem:[#allocation7 + $0x3b8] sm:$0xff]
    %v2117 = vld [vmem:[#allocation7 + $0x3c0] sm:$0xff]
    %v2118 = vld [vmem:[#allocation7 + $0x3c8] sm:$0xff]
    %v2119 = vld [vmem:[#allocation7 + $0x3d0] sm:$0xff]
    %v2120 = vld [vmem:[#allocation7 + $0x3d8] sm:$0xff]
    %v2121 = vld [vmem:[#allocation7 + $0x3e0] sm:$0xff]
    %v2122 = vld [vmem:[#allocation7 + $0x3e8] sm:$0xff]
    %v2123 = vld [vmem:[#allocation7 + $0x3f0] sm:$0xff]
    %v2124 = vld [vmem:[#allocation7 + $0x3f8] sm:$0xff]
    %v2125 = vld [vmem:[#allocation7 + $0x400] sm:$0xff]
    %v2126 = vld [vmem:[#allocation7 + $0x408] sm:$0xff]
    %v2127 = vld [vmem:[#allocation7 + $0x410] sm:$0xff]
    %v2128 = vld [vmem:[#allocation7 + $0x418] sm:$0xff]
    %v2129 = vld [vmem:[#allocation7 + $0x420] sm:$0xff]
    %v2130 = vld [vmem:[#allocation7 + $0x428] sm:$0xff]
    %v2131 = vld [vmem:[#allocation7 + $0x430] sm:$0xff]
    %v2132 = vld [vmem:[#allocation7 + $0x438] sm:$0xff]
    %v2133 = vld [vmem:[#allocation7 + $0x440] sm:$0xff]
    %v2134 = vld [vmem:[#allocation7 + $0x448] sm:$0xff]
    %v2135 = vld [vmem:[#allocation7 + $0x450] sm:$0xff]
    %v2136 = vld [vmem:[#allocation7 + $0x458] sm:$0xff]
    %v2137 = vld [vmem:[#allocation7 + $0x460] sm:$0xff]
    %v2138 = vld [vmem:[#allocation7 + $0x468] sm:$0xff]
    %v2139 = vld [vmem:[#allocation7 + $0x470] sm:$0xff]
    %v2140 = vld [vmem:[#allocation7 + $0x478] sm:$0xff]
    %v2141 = vld [vmem:[#allocation7 + $0x480] sm:$0xff]
    %v2142 = vld [vmem:[#allocation7 + $0x488] sm:$0xff]
    %v2143 = vld [vmem:[#allocation7 + $0x490] sm:$0xff]
    %v2144 = vld [vmem:[#allocation7 + $0x498] sm:$0xff]
    %v2145 = vld [vmem:[#allocation7 + $0x4a0] sm:$0xff]
    %v2146 = vld [vmem:[#allocation7 + $0x4a8] sm:$0xff]
    %v2147 = vld [vmem:[#allocation7 + $0x4b0] sm:$0xff]
    %v2148 = vld [vmem:[#allocation7 + $0x4b8] sm:$0xff]
    %v2149 = vld [vmem:[#allocation7 + $0x4c0] sm:$0xff]
    %v2150 = vld [vmem:[#allocation7 + $0x4c8] sm:$0xff]
    %v2151 = vld [vmem:[#allocation7 + $0x4d0] sm:$0xff]
    %v2152 = vld [vmem:[#allocation7 + $0x4d8] sm:$0xff]
    %v2153 = vld [vmem:[#allocation7 + $0x4e0] sm:$0xff]
    %v2154 = vld [vmem:[#allocation7 + $0x4e8] sm:$0xff]
    %v2155 = vld [vmem:[#allocation7 + $0x4f0] sm:$0xff]
    %v2156 = vld [vmem:[#allocation7 + $0x4f8] sm:$0xff]
    %v2157 = vld [vmem:[#allocation7 + $0x500] sm:$0xff]
    %v2158 = vld [vmem:[#allocation7 + $0x508] sm:$0xff]
    %v2159 = vld [vmem:[#allocation7 + $0x510] sm:$0xff]
    %v2160 = vld [vmem:[#allocation7 + $0x518] sm:$0xff]
    %v2161 = vld [vmem:[#allocation7 + $0x520] sm:$0xff]
    %v2162 = vld [vmem:[#allocation7 + $0x528] sm:$0xff]
    %v2163 = vld [vmem:[#allocation7 + $0x530] sm:$0xff]
    %v2164 = vld [vmem:[#allocation7 + $0x538] sm:$0xff]
    %v2165 = vld [vmem:[#allocation7 + $0x540] sm:$0xff]
    %v2166 = vld [vmem:[#allocation7 + $0x548] sm:$0xff]
    %v2167 = vld [vmem:[#allocation7 + $0x550] sm:$0xff]
    %v2168 = vld [vmem:[#allocation7 + $0x558] sm:$0xff]
    %v2169 = vld [vmem:[#allocation7 + $0x560] sm:$0xff]
    %v2170 = vld [vmem:[#allocation7 + $0x568] sm:$0xff]
    %v2171 = vld [vmem:[#allocation7 + $0x570] sm:$0xff]
    %v2172 = vld [vmem:[#allocation7 + $0x578] sm:$0xff]
    %v2173 = vld [vmem:[#allocation7 + $0x580] sm:$0xff]
    %v2174 = vld [vmem:[#allocation7 + $0x588] sm:$0xff]
    %v2175 = vld [vmem:[#allocation7 + $0x590] sm:$0xff]
    %v2176 = vld [vmem:[#allocation7 + $0x598] sm:$0xff]
    %v2177 = vld [vmem:[#allocation7 + $0x5a0] sm:$0xff]
    %v2178 = vld [vmem:[#allocation7 + $0x5a8] sm:$0xff]
    %v2179 = vld [vmem:[#allocation7 + $0x5b0] sm:$0xff]
    %v2180 = vld [vmem:[#allocation7 + $0x5b8] sm:$0xff]
    %v2181 = vld [vmem:[#allocation7 + $0x5c0] sm:$0xff]
    %v2182 = vld [vmem:[#allocation7 + $0x5c8] sm:$0xff]
    %v2183 = vld [vmem:[#allocation7 + $0x5d0] sm:$0xff]
    %v2184 = vld [vmem:[#allocation7 + $0x5d8] sm:$0xff]
    %v2185 = vld [vmem:[#allocation7 + $0x5e0] sm:$0xff]
    %v2186 = vld [vmem:[#allocation7 + $0x5e8] sm:$0xff]
    %v2187 = vld [vmem:[#allocation7 + $0x5f0] sm:$0xff]
    %v2188 = vld [vmem:[#allocation7 + $0x5f8] sm:$0xff]
    %v2189 = vld [vmem:[#allocation7 + $0x600] sm:$0xff]
    %v2190 = vld [vmem:[#allocation7 + $0x608] sm:$0xff]
    %v2191 = vld [vmem:[#allocation7 + $0x610] sm:$0xff]
    %v2192 = vld [vmem:[#allocation7 + $0x618] sm:$0xff]
    %v2193 = vld [vmem:[#allocation7 + $0x620] sm:$0xff]
    %v2194 = vld [vmem:[#allocation7 + $0x628] sm:$0xff]
    %v2195 = vld [vmem:[#allocation7 + $0x630] sm:$0xff]
    %v2196 = vld [vmem:[#allocation7 + $0x638] sm:$0xff]
    %v2197 = vld [vmem:[#allocation7 + $0x640] sm:$0xff]
    %v2198 = vld [vmem:[#allocation7 + $0x648] sm:$0xff]
    %v2199 = vld [vmem:[#allocation7 + $0x650] sm:$0xff]
    %v2200 = vld [vmem:[#allocation7 + $0x658] sm:$0xff]
    %v2201 = vld [vmem:[#allocation7 + $0x660] sm:$0xff]
    %v2202 = vld [vmem:[#allocation7 + $0x668] sm:$0xff]
    %v2203 = vld [vmem:[#allocation7 + $0x670] sm:$0xff]
    %v2204 = vld [vmem:[#allocation7 + $0x678] sm:$0xff]
    %v2205 = vld [vmem:[#allocation7 + $0x680] sm:$0xff]
    %v2206 = vld [vmem:[#allocation7 + $0x688] sm:$0xff]
    %v2207 = vld [vmem:[#allocation7 + $0x690] sm:$0xff]
    %v2208 = vld [vmem:[#allocation7 + $0x698] sm:$0xff]
    %v2209 = vld [vmem:[#allocation7 + $0x6a0] sm:$0xff]
    %v2210 = vld [vmem:[#allocation7 + $0x6a8] sm:$0xff]
    %v2211 = vld [vmem:[#allocation7 + $0x6b0] sm:$0xff]
    %v2212 = vld [vmem:[#allocation7 + $0x6b8] sm:$0xff]
    %v2213 = vld [vmem:[#allocation7 + $0x6c0] sm:$0xff]
    %v2214 = vld [vmem:[#allocation7 + $0x6c8] sm:$0xff]
    %v2215 = vld [vmem:[#allocation7 + $0x6d0] sm:$0xff]
    %v2216 = vld [vmem:[#allocation7 + $0x6d8] sm:$0xff]
    %v2217 = vld [vmem:[#allocation7 + $0x6e0] sm:$0xff]
    %v2218 = vld [vmem:[#allocation7 + $0x6e8] sm:$0xff]
    %v2219 = vld [vmem:[#allocation7 + $0x6f0] sm:$0xff]
    %v2220 = vld [vmem:[#allocation7 + $0x6f8] sm:$0xff]
    %v2221 = vld [vmem:[#allocation7 + $0x700] sm:$0xff]
    %v2222 = vld [vmem:[#allocation7 + $0x708] sm:$0xff]
    %v2223 = vld [vmem:[#allocation7 + $0x710] sm:$0xff]
    %v2224 = vld [vmem:[#allocation7 + $0x718] sm:$0xff]
    %v2225 = vld [vmem:[#allocation7 + $0x720] sm:$0xff]
    %v2226 = vld [vmem:[#allocation7 + $0x728] sm:$0xff]
    %v2227 = vld [vmem:[#allocation7 + $0x730] sm:$0xff]
    %v2228 = vld [vmem:[#allocation7 + $0x738] sm:$0xff]
    %v2229 = vld [vmem:[#allocation7 + $0x740] sm:$0xff]
    %v2230 = vld [vmem:[#allocation7 + $0x748] sm:$0xff]
    %v2231 = vld [vmem:[#allocation7 + $0x750] sm:$0xff]
    %v2232 = vld [vmem:[#allocation7 + $0x758] sm:$0xff]
    %v2233 = vld [vmem:[#allocation7 + $0x760] sm:$0xff]
    %v2234 = vld [vmem:[#allocation7 + $0x768] sm:$0xff]
    %v2235 = vld [vmem:[#allocation7 + $0x770] sm:$0xff]
    %v2236 = vld [vmem:[#allocation7 + $0x778] sm:$0xff]
    %v2237 = vld [vmem:[#allocation7 + $0x780] sm:$0xff]
    %v2238 = vld [vmem:[#allocation7 + $0x788] sm:$0xff]
    %v2239 = vld [vmem:[#allocation7 + $0x790] sm:$0xff]
    %v2240 = vld [vmem:[#allocation7 + $0x798] sm:$0xff]
    %v2241 = vld [vmem:[#allocation7 + $0x7a0] sm:$0xff]
    %v2242 = vld [vmem:[#allocation7 + $0x7a8] sm:$0xff]
    %v2243 = vld [vmem:[#allocation7 + $0x7b0] sm:$0xff]
    %v2244 = vld [vmem:[#allocation7 + $0x7b8] sm:$0xff]
    %v2245 = vld [vmem:[#allocation7 + $0x7c0] sm:$0xff]
    %v2246 = vld [vmem:[#allocation7 + $0x7c8] sm:$0xff]
    %v2247 = vld [vmem:[#allocation7 + $0x7d0] sm:$0xff]
    %v2248 = vld [vmem:[#allocation7 + $0x7d8] sm:$0xff]
    %v2249 = vld [vmem:[#allocation7 + $0x7e0] sm:$0xff]
    %v2250 = vld [vmem:[#allocation7 + $0x7e8] sm:$0xff]
    %v2251 = vld [vmem:[#allocation7 + $0x7f0] sm:$0xff]
    %v2252 = vld [vmem:[#allocation7 + $0x7f8] sm:$0xff]
    %v2253 = vld [vmem:[#allocation7 + $0x800] sm:$0xff]
    %v2254 = vld [vmem:[#allocation7 + $0x808] sm:$0xff]
    %v2255 = vld [vmem:[#allocation7 + $0x810] sm:$0xff]
    %v2256 = vld [vmem:[#allocation7 + $0x818] sm:$0xff]
    %v2257 = vld [vmem:[#allocation7 + $0x820] sm:$0xff]
    %v2258 = vld [vmem:[#allocation7 + $0x828] sm:$0xff]
    %v2259 = vld [vmem:[#allocation7 + $0x830] sm:$0xff]
    %v2260 = vld [vmem:[#allocation7 + $0x838] sm:$0xff]
    %v2261 = vld [vmem:[#allocation7 + $0x840] sm:$0xff]
    %v2262 = vld [vmem:[#allocation7 + $0x848] sm:$0xff]
    %v2263 = vld [vmem:[#allocation7 + $0x850] sm:$0xff]
    %v2264 = vld [vmem:[#allocation7 + $0x858] sm:$0xff]
    %v2265 = vld [vmem:[#allocation7 + $0x860] sm:$0xff]
    %v2266 = vld [vmem:[#allocation7 + $0x868] sm:$0xff]
    %v2267 = vld [vmem:[#allocation7 + $0x870] sm:$0xff]
    %v2268 = vld [vmem:[#allocation7 + $0x878] sm:$0xff]
    %v2269 = vld [vmem:[#allocation7 + $0x880] sm:$0xff]
    %v2270 = vld [vmem:[#allocation7 + $0x888] sm:$0xff]
    %v2271 = vld [vmem:[#allocation7 + $0x890] sm:$0xff]
    %v2272 = vld [vmem:[#allocation7 + $0x898] sm:$0xff]
    %v2273 = vld [vmem:[#allocation7 + $0x8a0] sm:$0xff]
    %v2274 = vld [vmem:[#allocation7 + $0x8a8] sm:$0xff]
    %v2275 = vld [vmem:[#allocation7 + $0x8b0] sm:$0xff]
    %v2276 = vld [vmem:[#allocation7 + $0x8b8] sm:$0xff]
    %v2277 = vld [vmem:[#allocation7 + $0x8c0] sm:$0xff]
    %v2278 = vld [vmem:[#allocation7 + $0x8c8] sm:$0xff]
    %v2279 = vld [vmem:[#allocation7 + $0x8d0] sm:$0xff]
    %v2280 = vld [vmem:[#allocation7 + $0x8d8] sm:$0xff]
    %v2281 = vld [vmem:[#allocation7 + $0x8e0] sm:$0xff]
    %v2282 = vld [vmem:[#allocation7 + $0x8e8] sm:$0xff]
    %v2283 = vld [vmem:[#allocation7 + $0x8f0] sm:$0xff]
    %v2284 = vld [vmem:[#allocation7 + $0x8f8] sm:$0xff]
    %v2285 = vld [vmem:[#allocation7 + $0x900] sm:$0xff]
    %v2286 = vld [vmem:[#allocation7 + $0x908] sm:$0xff]
    %v2287 = vld [vmem:[#allocation7 + $0x910] sm:$0xff]
    %v2288 = vld [vmem:[#allocation7 + $0x918] sm:$0xff]
    %v2289 = vld [vmem:[#allocation7 + $0x920] sm:$0xff]
    %v2290 = vld [vmem:[#allocation7 + $0x928] sm:$0xff]
    %v2291 = vld [vmem:[#allocation7 + $0x930] sm:$0xff]
    %v2292 = vld [vmem:[#allocation7 + $0x938] sm:$0xff]
    %v2293 = vld [vmem:[#allocation7 + $0x940] sm:$0xff]
    %v2294 = vld [vmem:[#allocation7 + $0x948] sm:$0xff]
    %v2295 = vld [vmem:[#allocation7 + $0x950] sm:$0xff]
    %v2296 = vld [vmem:[#allocation7 + $0x958] sm:$0xff]
    %v2297 = vld [vmem:[#allocation7 + $0x960] sm:$0xff]
    %v2298 = vld [vmem:[#allocation7 + $0x968] sm:$0xff]
    %v2299 = vld [vmem:[#allocation7 + $0x970] sm:$0xff]
    %v2300 = vld [vmem:[#allocation7 + $0x978] sm:$0xff]
    %v2301 = vld [vmem:[#allocation7 + $0x980] sm:$0xff]
    %v2302 = vld [vmem:[#allocation7 + $0x988] sm:$0xff]
    %v2303 = vld [vmem:[#allocation7 + $0x990] sm:$0xff]
    %v2304 = vld [vmem:[#allocation7 + $0x998] sm:$0xff]
    %v2305 = vld [vmem:[#allocation7 + $0x9a0] sm:$0xff]
    %v2306 = vld [vmem:[#allocation7 + $0x9a8] sm:$0xff]
    %v2307 = vld [vmem:[#allocation7 + $0x9b0] sm:$0xff]
    %v2308 = vld [vmem:[#allocation7 + $0x9b8] sm:$0xff]
    %v2309 = vld [vmem:[#allocation7 + $0x9c0] sm:$0xff]
    %v2310 = vld [vmem:[#allocation7 + $0x9c8] sm:$0xff]
    %v2311 = vld [vmem:[#allocation7 + $0x9d0] sm:$0xff]
    %v2312 = vld [vmem:[#allocation7 + $0x9d8] sm:$0xff]
    %v2313 = vld [vmem:[#allocation7 + $0x9e0] sm:$0xff]
    %v2314 = vld [vmem:[#allocation7 + $0x9e8] sm:$0xff]
    %v2315 = vld [vmem:[#allocation7 + $0x9f0] sm:$0xff]
    %v2316 = vld [vmem:[#allocation7 + $0x9f8] sm:$0xff]
    %v2317 = vld [vmem:[#allocation7 + $0xa00] sm:$0xff]
    %v2318 = vld [vmem:[#allocation7 + $0xa08] sm:$0xff]
    %v2319 = vld [vmem:[#allocation7 + $0xa10] sm:$0xff]
    %v2320 = vld [vmem:[#allocation7 + $0xa18] sm:$0xff]
    %v2321 = vld [vmem:[#allocation7 + $0xa20] sm:$0xff]
    %v2322 = vld [vmem:[#allocation7 + $0xa28] sm:$0xff]
    %v2323 = vld [vmem:[#allocation7 + $0xa30] sm:$0xff]
    %v2324 = vld [vmem:[#allocation7 + $0xa38] sm:$0xff]
    %v2325 = vld [vmem:[#allocation7 + $0xa40] sm:$0xff]
    %v2326 = vld [vmem:[#allocation7 + $0xa48] sm:$0xff]
    %v2327 = vld [vmem:[#allocation7 + $0xa50] sm:$0xff]
    %v2328 = vld [vmem:[#allocation7 + $0xa58] sm:$0xff]
    %v2329 = vld [vmem:[#allocation7 + $0xa60] sm:$0xff]
    %v2330 = vld [vmem:[#allocation7 + $0xa68] sm:$0xff]
    %v2331 = vld [vmem:[#allocation7 + $0xa70] sm:$0xff]
    %v2332 = vld [vmem:[#allocation7 + $0xa78] sm:$0xff]
    %v2333 = vld [vmem:[#allocation7 + $0xa80] sm:$0xff]
    %v2334 = vld [vmem:[#allocation7 + $0xa88] sm:$0xff]
    %v2335 = vld [vmem:[#allocation7 + $0xa90] sm:$0xff]
    %v2336 = vld [vmem:[#allocation7 + $0xa98] sm:$0xff]
    %v2337 = vld [vmem:[#allocation7 + $0xaa0] sm:$0xff]
    %v2338 = vld [vmem:[#allocation7 + $0xaa8] sm:$0xff]
    %v2339 = vld [vmem:[#allocation7 + $0xab0] sm:$0xff]
    %v2340 = vld [vmem:[#allocation7 + $0xab8] sm:$0xff]
    %v2341 = vld [vmem:[#allocation7 + $0xac0] sm:$0xff]
    %v2342 = vld [vmem:[#allocation7 + $0xac8] sm:$0xff]
    %v2343 = vld [vmem:[#allocation7 + $0xad0] sm:$0xff]
    %v2344 = vld [vmem:[#allocation7 + $0xad8] sm:$0xff]
    %v2345 = vld [vmem:[#allocation7 + $0xae0] sm:$0xff]
    %v2346 = vld [vmem:[#allocation7 + $0xae8] sm:$0xff]
    %v2347 = vld [vmem:[#allocation7 + $0xaf0] sm:$0xff]
    %v2348 = vld [vmem:[#allocation7 + $0xaf8] sm:$0xff]
    %v2349 = vld [vmem:[#allocation7 + $0xb00] sm:$0xff]
    %v2350 = vld [vmem:[#allocation7 + $0xb08] sm:$0xff]
    %v2351 = vld [vmem:[#allocation7 + $0xb10] sm:$0xff]
    %v2352 = vld [vmem:[#allocation7 + $0xb18] sm:$0xff]
    %v2353 = vld [vmem:[#allocation7 + $0xb20] sm:$0xff]
    %v2354 = vld [vmem:[#allocation7 + $0xb28] sm:$0xff]
    %v2355 = vld [vmem:[#allocation7 + $0xb30] sm:$0xff]
    %v2356 = vld [vmem:[#allocation7 + $0xb38] sm:$0xff]
    %v2357 = vld [vmem:[#allocation7 + $0xb40] sm:$0xff]
    %v2358 = vld [vmem:[#allocation7 + $0xb48] sm:$0xff]
    %v2359 = vld [vmem:[#allocation7 + $0xb50] sm:$0xff]
    %v2360 = vld [vmem:[#allocation7 + $0xb58] sm:$0xff]
    %v2361 = vld [vmem:[#allocation7 + $0xb60] sm:$0xff]
    %v2362 = vld [vmem:[#allocation7 + $0xb68] sm:$0xff]
    %v2363 = vld [vmem:[#allocation7 + $0xb70] sm:$0xff]
    %v2364 = vld [vmem:[#allocation7 + $0xb78] sm:$0xff]
    %v2365 = vld [vmem:[#allocation7 + $0xb80] sm:$0xff]
    %v2366 = vld [vmem:[#allocation7 + $0xb88] sm:$0xff]
    %v2367 = vld [vmem:[#allocation7 + $0xb90] sm:$0xff]
    %v2368 = vld [vmem:[#allocation7 + $0xb98] sm:$0xff]
    %v2369 = vld [vmem:[#allocation7 + $0xba0] sm:$0xff]
    %v2370 = vld [vmem:[#allocation7 + $0xba8] sm:$0xff]
    %v2371 = vld [vmem:[#allocation7 + $0xbb0] sm:$0xff]
    %v2372 = vld [vmem:[#allocation7 + $0xbb8] sm:$0xff]
    %v2373 = vld [vmem:[#allocation7 + $0xbc0] sm:$0xff]
    %v2374 = vld [vmem:[#allocation7 + $0xbc8] sm:$0xff]
    %v2375 = vld [vmem:[#allocation7 + $0xbd0] sm:$0xff]
    %v2376 = vld [vmem:[#allocation7 + $0xbd8] sm:$0xff]
    %v2377 = vld [vmem:[#allocation7 + $0xbe0] sm:$0xff]
    %v2378 = vld [vmem:[#allocation7 + $0xbe8] sm:$0xff]
    %v2379 = vld [vmem:[#allocation7 + $0xbf0] sm:$0xff]
    %v2380 = vld [vmem:[#allocation7 + $0xbf8] sm:$0xff]
    %v2381 = vld [vmem:[#allocation8] sm:$0xf]
    %v2383 = vlaneseq
    %v2384 = vshrl.u32 %v2383, 7
    %v2385 = vsub.s32 0, %v2384
    %v2386 = vrot.slane %v2381, %v2385
    %v2387 = vlaneseq
    %v2388 = vshrl.u32 %v2387, 7
    %v2389 = vsub.s32 1, %v2388
    %v2390 = vrot.slane %v2381, %v2389
    %v2391 = vlaneseq
    %v2392 = vshrl.u32 %v2391, 7
    %v2393 = vsub.s32 2, %v2392
    %v2394 = vrot.slane %v2381, %v2393
    %v2395 = vlaneseq
    %v2396 = vshrl.u32 %v2395, 7
    %v2397 = vsub.s32 3, %v2396
    %v2398 = vrot.slane %v2381, %v2397
    %v2787 = vunpack.c.l.b16 %v1997
    %v2788 = vunpack.c.h.b16 %v1997
    %v2789 = vunpack.c.l.b16 %v1998
    %v2790 = vunpack.c.h.b16 %v1998
    %v2791 = vunpack.c.l.b16 %v1999
    %v2792 = vunpack.c.h.b16 %v1999
    %v2793 = vunpack.c.l.b16 %v2000
    %v2794 = vunpack.c.h.b16 %v2000
    %v2795 = vunpack.c.l.b16 %v2001
    %v2796 = vunpack.c.h.b16 %v2001
    %v2797 = vunpack.c.l.b16 %v2002
    %v2798 = vunpack.c.h.b16 %v2002
    %v2799 = vunpack.c.l.b16 %v2003
    %v2800 = vunpack.c.h.b16 %v2003
    %v2801 = vunpack.c.l.b16 %v2004
    %v2802 = vunpack.c.h.b16 %v2004
    %v2803 = vunpack.c.l.b16 %v2005
    %v2804 = vunpack.c.h.b16 %v2005
    %v2805 = vunpack.c.l.b16 %v2006
    %v2806 = vunpack.c.h.b16 %v2006
    %v2807 = vunpack.c.l.b16 %v2007
    %v2808 = vunpack.c.h.b16 %v2007
    %v2809 = vunpack.c.l.b16 %v2008
    %v2810 = vunpack.c.h.b16 %v2008
    %v2811 = vunpack.c.l.b16 %v2009
    %v2812 = vunpack.c.h.b16 %v2009
    %v2813 = vunpack.c.l.b16 %v2010
    %v2814 = vunpack.c.h.b16 %v2010
    %v2815 = vunpack.c.l.b16 %v2011
    %v2816 = vunpack.c.h.b16 %v2011
    %v2817 = vunpack.c.l.b16 %v2012
    %v2818 = vunpack.c.h.b16 %v2012
    %v2819 = vunpack.c.l.b16 %v2013
    %v2820 = vunpack.c.h.b16 %v2013
    %v2821 = vunpack.c.l.b16 %v2014
    %v2822 = vunpack.c.h.b16 %v2014
    %v2823 = vunpack.c.l.b16 %v2015
    %v2824 = vunpack.c.h.b16 %v2015
    %v2825 = vunpack.c.l.b16 %v2016
    %v2826 = vunpack.c.h.b16 %v2016
    %v2827 = vunpack.c.l.b16 %v2017
    %v2828 = vunpack.c.h.b16 %v2017
    %v2829 = vunpack.c.l.b16 %v2018
    %v2830 = vunpack.c.h.b16 %v2018
    %v2831 = vunpack.c.l.b16 %v2019
    %v2832 = vunpack.c.h.b16 %v2019
    %v2833 = vunpack.c.l.b16 %v2020
    %v2834 = vunpack.c.h.b16 %v2020
    %v2835 = vunpack.c.l.b16 %v2021
    %v2836 = vunpack.c.h.b16 %v2021
    %v2837 = vunpack.c.l.b16 %v2022
    %v2838 = vunpack.c.h.b16 %v2022
    %v2839 = vunpack.c.l.b16 %v2023
    %v2840 = vunpack.c.h.b16 %v2023
    %v2841 = vunpack.c.l.b16 %v2024
    %v2842 = vunpack.c.h.b16 %v2024
    %v2843 = vunpack.c.l.b16 %v2025
    %v2844 = vunpack.c.h.b16 %v2025
    %v2845 = vunpack.c.l.b16 %v2026
    %v2846 = vunpack.c.h.b16 %v2026
    %v2847 = vunpack.c.l.b16 %v2027
    %v2848 = vunpack.c.h.b16 %v2027
    %v2849 = vunpack.c.l.b16 %v2028
    %v2850 = vunpack.c.h.b16 %v2028
    %v2851 = vunpack.c.l.b16 %v2029
    %v2852 = vunpack.c.h.b16 %v2029
    %v2853 = vunpack.c.l.b16 %v2030
    %v2854 = vunpack.c.h.b16 %v2030
    %v2855 = vunpack.c.l.b16 %v2031
    %v2856 = vunpack.c.h.b16 %v2031
    %v2857 = vunpack.c.l.b16 %v2032
    %v2858 = vunpack.c.h.b16 %v2032
    %v2859 = vunpack.c.l.b16 %v2033
    %v2860 = vunpack.c.h.b16 %v2033
    %v2861 = vunpack.c.l.b16 %v2034
    %v2862 = vunpack.c.h.b16 %v2034
    %v2863 = vunpack.c.l.b16 %v2035
    %v2864 = vunpack.c.h.b16 %v2035
    %v2865 = vunpack.c.l.b16 %v2036
    %v2866 = vunpack.c.h.b16 %v2036
    %v2867 = vunpack.c.l.b16 %v2037
    %v2868 = vunpack.c.h.b16 %v2037
    %v2869 = vunpack.c.l.b16 %v2038
    %v2870 = vunpack.c.h.b16 %v2038
    %v2871 = vunpack.c.l.b16 %v2039
    %v2872 = vunpack.c.h.b16 %v2039
    %v2873 = vunpack.c.l.b16 %v2040
    %v2874 = vunpack.c.h.b16 %v2040
    %v2875 = vunpack.c.l.b16 %v2041
    %v2876 = vunpack.c.h.b16 %v2041
    %v2877 = vunpack.c.l.b16 %v2042
    %v2878 = vunpack.c.h.b16 %v2042
    %v2879 = vunpack.c.l.b16 %v2043
    %v2880 = vunpack.c.h.b16 %v2043
    %v2881 = vunpack.c.l.b16 %v2044
    %v2882 = vunpack.c.h.b16 %v2044
    %v2883 = vunpack.c.l.b16 %v2045
    %v2884 = vunpack.c.h.b16 %v2045
    %v2885 = vunpack.c.l.b16 %v2046
    %v2886 = vunpack.c.h.b16 %v2046
    %v2887 = vunpack.c.l.b16 %v2047
    %v2888 = vunpack.c.h.b16 %v2047
    %v2889 = vunpack.c.l.b16 %v2048
    %v2890 = vunpack.c.h.b16 %v2048
    %v2891 = vunpack.c.l.b16 %v2049
    %v2892 = vunpack.c.h.b16 %v2049
    %v2893 = vunpack.c.l.b16 %v2050
    %v2894 = vunpack.c.h.b16 %v2050
    %v2895 = vunpack.c.l.b16 %v2051
    %v2896 = vunpack.c.h.b16 %v2051
    %v2897 = vunpack.c.l.b16 %v2052
    %v2898 = vunpack.c.h.b16 %v2052
    %v2899 = vunpack.c.l.b16 %v2053
    %v2900 = vunpack.c.h.b16 %v2053
    %v2901 = vunpack.c.l.b16 %v2054
    %v2902 = vunpack.c.h.b16 %v2054
    %v2903 = vunpack.c.l.b16 %v2055
    %v2904 = vunpack.c.h.b16 %v2055
    %v2905 = vunpack.c.l.b16 %v2056
    %v2906 = vunpack.c.h.b16 %v2056
    %v2907 = vunpack.c.l.b16 %v2057
    %v2908 = vunpack.c.h.b16 %v2057
    %v2909 = vunpack.c.l.b16 %v2058
    %v2910 = vunpack.c.h.b16 %v2058
    %v2911 = vunpack.c.l.b16 %v2059
    %v2912 = vunpack.c.h.b16 %v2059
    %v2913 = vunpack.c.l.b16 %v2060
    %v2914 = vunpack.c.h.b16 %v2060
    %v2915 = vunpack.c.l.b16 %v2061
    %v2916 = vunpack.c.h.b16 %v2061
    %v2917 = vunpack.c.l.b16 %v2062
    %v2918 = vunpack.c.h.b16 %v2062
    %v2919 = vunpack.c.l.b16 %v2063
    %v2920 = vunpack.c.h.b16 %v2063
    %v2921 = vunpack.c.l.b16 %v2064
    %v2922 = vunpack.c.h.b16 %v2064
    %v2923 = vunpack.c.l.b16 %v2065
    %v2924 = vunpack.c.h.b16 %v2065
    %v2925 = vunpack.c.l.b16 %v2066
    %v2926 = vunpack.c.h.b16 %v2066
    %v2927 = vunpack.c.l.b16 %v2067
    %v2928 = vunpack.c.h.b16 %v2067
    %v2929 = vunpack.c.l.b16 %v2068
    %v2930 = vunpack.c.h.b16 %v2068
    %v2931 = vunpack.c.l.b16 %v2069
    %v2932 = vunpack.c.h.b16 %v2069
    %v2933 = vunpack.c.l.b16 %v2070
    %v2934 = vunpack.c.h.b16 %v2070
    %v2935 = vunpack.c.l.b16 %v2071
    %v2936 = vunpack.c.h.b16 %v2071
    %v2937 = vunpack.c.l.b16 %v2072
    %v2938 = vunpack.c.h.b16 %v2072
    %v2939 = vunpack.c.l.b16 %v2073
    %v2940 = vunpack.c.h.b16 %v2073
    %v2941 = vunpack.c.l.b16 %v2074
    %v2942 = vunpack.c.h.b16 %v2074
    %v2943 = vunpack.c.l.b16 %v2075
    %v2944 = vunpack.c.h.b16 %v2075
    %v2945 = vunpack.c.l.b16 %v2076
    %v2946 = vunpack.c.h.b16 %v2076
    %v2947 = vunpack.c.l.b16 %v2077
    %v2948 = vunpack.c.h.b16 %v2077
    %v2949 = vunpack.c.l.b16 %v2078
    %v2950 = vunpack.c.h.b16 %v2078
    %v2951 = vunpack.c.l.b16 %v2079
    %v2952 = vunpack.c.h.b16 %v2079
    %v2953 = vunpack.c.l.b16 %v2080
    %v2954 = vunpack.c.h.b16 %v2080
    %v2955 = vunpack.c.l.b16 %v2081
    %v2956 = vunpack.c.h.b16 %v2081
    %v2957 = vunpack.c.l.b16 %v2082
    %v2958 = vunpack.c.h.b16 %v2082
    %v2959 = vunpack.c.l.b16 %v2083
    %v2960 = vunpack.c.h.b16 %v2083
    %v2961 = vunpack.c.l.b16 %v2084
    %v2962 = vunpack.c.h.b16 %v2084
    %v2963 = vunpack.c.l.b16 %v2085
    %v2964 = vunpack.c.h.b16 %v2085
    %v2965 = vunpack.c.l.b16 %v2086
    %v2966 = vunpack.c.h.b16 %v2086
    %v2967 = vunpack.c.l.b16 %v2087
    %v2968 = vunpack.c.h.b16 %v2087
    %v2969 = vunpack.c.l.b16 %v2088
    %v2970 = vunpack.c.h.b16 %v2088
    %v2971 = vunpack.c.l.b16 %v2089
    %v2972 = vunpack.c.h.b16 %v2089
    %v2973 = vunpack.c.l.b16 %v2090
    %v2974 = vunpack.c.h.b16 %v2090
    %v2975 = vunpack.c.l.b16 %v2091
    %v2976 = vunpack.c.h.b16 %v2091
    %v2977 = vunpack.c.l.b16 %v2092
    %v2978 = vunpack.c.h.b16 %v2092
    %v2979 = vunpack.c.l.b16 %v2093
    %v2980 = vunpack.c.h.b16 %v2093
    %v2981 = vunpack.c.l.b16 %v2094
    %v2982 = vunpack.c.h.b16 %v2094
    %v2983 = vunpack.c.l.b16 %v2095
    %v2984 = vunpack.c.h.b16 %v2095
    %v2985 = vunpack.c.l.b16 %v2096
    %v2986 = vunpack.c.h.b16 %v2096
    %v2987 = vunpack.c.l.b16 %v2097
    %v2988 = vunpack.c.h.b16 %v2097
    %v2989 = vunpack.c.l.b16 %v2098
    %v2990 = vunpack.c.h.b16 %v2098
    %v2991 = vunpack.c.l.b16 %v2099
    %v2992 = vunpack.c.h.b16 %v2099
    %v2993 = vunpack.c.l.b16 %v2100
    %v2994 = vunpack.c.h.b16 %v2100
    %v2995 = vunpack.c.l.b16 %v2101
    %v2996 = vunpack.c.h.b16 %v2101
    %v2997 = vunpack.c.l.b16 %v2102
    %v2998 = vunpack.c.h.b16 %v2102
    %v2999 = vunpack.c.l.b16 %v2103
    %v3000 = vunpack.c.h.b16 %v2103
    %v3001 = vunpack.c.l.b16 %v2104
    %v3002 = vunpack.c.h.b16 %v2104
    %v3003 = vunpack.c.l.b16 %v2105
    %v3004 = vunpack.c.h.b16 %v2105
    %v3005 = vunpack.c.l.b16 %v2106
    %v3006 = vunpack.c.h.b16 %v2106
    %v3007 = vunpack.c.l.b16 %v2107
    %v3008 = vunpack.c.h.b16 %v2107
    %v3009 = vunpack.c.l.b16 %v2108
    %v3010 = vunpack.c.h.b16 %v2108
    %v3011 = vunpack.c.l.b16 %v2109
    %v3012 = vunpack.c.h.b16 %v2109
    %v3013 = vunpack.c.l.b16 %v2110
    %v3014 = vunpack.c.h.b16 %v2110
    %v3015 = vunpack.c.l.b16 %v2111
    %v3016 = vunpack.c.h.b16 %v2111
    %v3017 = vunpack.c.l.b16 %v2112
    %v3018 = vunpack.c.h.b16 %v2112
    %v3019 = vunpack.c.l.b16 %v2113
    %v3020 = vunpack.c.h.b16 %v2113
    %v3021 = vunpack.c.l.b16 %v2114
    %v3022 = vunpack.c.h.b16 %v2114
    %v3023 = vunpack.c.l.b16 %v2115
    %v3024 = vunpack.c.h.b16 %v2115
    %v3025 = vunpack.c.l.b16 %v2116
    %v3026 = vunpack.c.h.b16 %v2116
    %v3027 = vunpack.c.l.b16 %v2117
    %v3028 = vunpack.c.h.b16 %v2117
    %v3029 = vunpack.c.l.b16 %v2118
    %v3030 = vunpack.c.h.b16 %v2118
    %v3031 = vunpack.c.l.b16 %v2119
    %v3032 = vunpack.c.h.b16 %v2119
    %v3033 = vunpack.c.l.b16 %v2120
    %v3034 = vunpack.c.h.b16 %v2120
    %v3035 = vunpack.c.l.b16 %v2121
    %v3036 = vunpack.c.h.b16 %v2121
    %v3037 = vunpack.c.l.b16 %v2122
    %v3038 = vunpack.c.h.b16 %v2122
    %v3039 = vunpack.c.l.b16 %v2123
    %v3040 = vunpack.c.h.b16 %v2123
    %v3041 = vunpack.c.l.b16 %v2124
    %v3042 = vunpack.c.h.b16 %v2124
    %v3043 = vunpack.c.l.b16 %v2125
    %v3044 = vunpack.c.h.b16 %v2125
    %v3045 = vunpack.c.l.b16 %v2126
    %v3046 = vunpack.c.h.b16 %v2126
    %v3047 = vunpack.c.l.b16 %v2127
    %v3048 = vunpack.c.h.b16 %v2127
    %v3049 = vunpack.c.l.b16 %v2128
    %v3050 = vunpack.c.h.b16 %v2128
    %v3051 = vunpack.c.l.b16 %v2129
    %v3052 = vunpack.c.h.b16 %v2129
    %v3053 = vunpack.c.l.b16 %v2130
    %v3054 = vunpack.c.h.b16 %v2130
    %v3055 = vunpack.c.l.b16 %v2131
    %v3056 = vunpack.c.h.b16 %v2131
    %v3057 = vunpack.c.l.b16 %v2132
    %v3058 = vunpack.c.h.b16 %v2132
    %v3059 = vunpack.c.l.b16 %v2133
    %v3060 = vunpack.c.h.b16 %v2133
    %v3061 = vunpack.c.l.b16 %v2134
    %v3062 = vunpack.c.h.b16 %v2134
    %v3063 = vunpack.c.l.b16 %v2135
    %v3064 = vunpack.c.h.b16 %v2135
    %v3065 = vunpack.c.l.b16 %v2136
    %v3066 = vunpack.c.h.b16 %v2136
    %v3067 = vunpack.c.l.b16 %v2137
    %v3068 = vunpack.c.h.b16 %v2137
    %v3069 = vunpack.c.l.b16 %v2138
    %v3070 = vunpack.c.h.b16 %v2138
    %v3071 = vunpack.c.l.b16 %v2139
    %v3072 = vunpack.c.h.b16 %v2139
    %v3073 = vunpack.c.l.b16 %v2140
    %v3074 = vunpack.c.h.b16 %v2140
    %v3075 = vunpack.c.l.b16 %v2141
    %v3076 = vunpack.c.h.b16 %v2141
    %v3077 = vunpack.c.l.b16 %v2142
    %v3078 = vunpack.c.h.b16 %v2142
    %v3079 = vunpack.c.l.b16 %v2143
    %v3080 = vunpack.c.h.b16 %v2143
    %v3081 = vunpack.c.l.b16 %v2144
    %v3082 = vunpack.c.h.b16 %v2144
    %v3083 = vunpack.c.l.b16 %v2145
    %v3084 = vunpack.c.h.b16 %v2145
    %v3085 = vunpack.c.l.b16 %v2146
    %v3086 = vunpack.c.h.b16 %v2146
    %v3087 = vunpack.c.l.b16 %v2147
    %v3088 = vunpack.c.h.b16 %v2147
    %v3089 = vunpack.c.l.b16 %v2148
    %v3090 = vunpack.c.h.b16 %v2148
    %v3091 = vunpack.c.l.b16 %v2149
    %v3092 = vunpack.c.h.b16 %v2149
    %v3093 = vunpack.c.l.b16 %v2150
    %v3094 = vunpack.c.h.b16 %v2150
    %v3095 = vunpack.c.l.b16 %v2151
    %v3096 = vunpack.c.h.b16 %v2151
    %v3097 = vunpack.c.l.b16 %v2152
    %v3098 = vunpack.c.h.b16 %v2152
    %v3099 = vunpack.c.l.b16 %v2153
    %v3100 = vunpack.c.h.b16 %v2153
    %v3101 = vunpack.c.l.b16 %v2154
    %v3102 = vunpack.c.h.b16 %v2154
    %v3103 = vunpack.c.l.b16 %v2155
    %v3104 = vunpack.c.h.b16 %v2155
    %v3105 = vunpack.c.l.b16 %v2156
    %v3106 = vunpack.c.h.b16 %v2156
    %v3107 = vunpack.c.l.b16 %v2157
    %v3108 = vunpack.c.h.b16 %v2157
    %v3109 = vunpack.c.l.b16 %v2158
    %v3110 = vunpack.c.h.b16 %v2158
    %v3111 = vunpack.c.l.b16 %v2159
    %v3112 = vunpack.c.h.b16 %v2159
    %v3113 = vunpack.c.l.b16 %v2160
    %v3114 = vunpack.c.h.b16 %v2160
    %v3115 = vunpack.c.l.b16 %v2161
    %v3116 = vunpack.c.h.b16 %v2161
    %v3117 = vunpack.c.l.b16 %v2162
    %v3118 = vunpack.c.h.b16 %v2162
    %v3119 = vunpack.c.l.b16 %v2163
    %v3120 = vunpack.c.h.b16 %v2163
    %v3121 = vunpack.c.l.b16 %v2164
    %v3122 = vunpack.c.h.b16 %v2164
    %v3123 = vunpack.c.l.b16 %v2165
    %v3124 = vunpack.c.h.b16 %v2165
    %v3125 = vunpack.c.l.b16 %v2166
    %v3126 = vunpack.c.h.b16 %v2166
    %v3127 = vunpack.c.l.b16 %v2167
    %v3128 = vunpack.c.h.b16 %v2167
    %v3129 = vunpack.c.l.b16 %v2168
    %v3130 = vunpack.c.h.b16 %v2168
    %v3131 = vunpack.c.l.b16 %v2169
    %v3132 = vunpack.c.h.b16 %v2169
    %v3133 = vunpack.c.l.b16 %v2170
    %v3134 = vunpack.c.h.b16 %v2170
    %v3135 = vunpack.c.l.b16 %v2171
    %v3136 = vunpack.c.h.b16 %v2171
    %v3137 = vunpack.c.l.b16 %v2172
    %v3138 = vunpack.c.h.b16 %v2172
    %v3139 = vunpack.c.l.b16 %v2173
    %v3140 = vunpack.c.h.b16 %v2173
    %v3141 = vunpack.c.l.b16 %v2174
    %v3142 = vunpack.c.h.b16 %v2174
    %v3143 = vunpack.c.l.b16 %v2175
    %v3144 = vunpack.c.h.b16 %v2175
    %v3145 = vunpack.c.l.b16 %v2176
    %v3146 = vunpack.c.h.b16 %v2176
    %v3147 = vunpack.c.l.b16 %v2177
    %v3148 = vunpack.c.h.b16 %v2177
    %v3149 = vunpack.c.l.b16 %v2178
    %v3150 = vunpack.c.h.b16 %v2178
    %v3151 = vunpack.c.l.b16 %v2179
    %v3152 = vunpack.c.h.b16 %v2179
    %v3153 = vunpack.c.l.b16 %v2180
    %v3154 = vunpack.c.h.b16 %v2180
    %v3155 = vunpack.c.l.b16 %v2181
    %v3156 = vunpack.c.h.b16 %v2181
    %v3157 = vunpack.c.l.b16 %v2182
    %v3158 = vunpack.c.h.b16 %v2182
    %v3159 = vunpack.c.l.b16 %v2183
    %v3160 = vunpack.c.h.b16 %v2183
    %v3161 = vunpack.c.l.b16 %v2184
    %v3162 = vunpack.c.h.b16 %v2184
    %v3163 = vunpack.c.l.b16 %v2185
    %v3164 = vunpack.c.h.b16 %v2185
    %v3165 = vunpack.c.l.b16 %v2186
    %v3166 = vunpack.c.h.b16 %v2186
    %v3167 = vunpack.c.l.b16 %v2187
    %v3168 = vunpack.c.h.b16 %v2187
    %v3169 = vunpack.c.l.b16 %v2188
    %v3170 = vunpack.c.h.b16 %v2188
    %v3171 = vunpack.c.l.b16 %v2189
    %v3172 = vunpack.c.h.b16 %v2189
    %v3173 = vunpack.c.l.b16 %v2190
    %v3174 = vunpack.c.h.b16 %v2190
    %v3175 = vunpack.c.l.b16 %v2191
    %v3176 = vunpack.c.h.b16 %v2191
    %v3177 = vunpack.c.l.b16 %v2192
    %v3178 = vunpack.c.h.b16 %v2192
    %v3179 = vunpack.c.l.b16 %v2193
    %v3180 = vunpack.c.h.b16 %v2193
    %v3181 = vunpack.c.l.b16 %v2194
    %v3182 = vunpack.c.h.b16 %v2194
    %v3183 = vunpack.c.l.b16 %v2195
    %v3184 = vunpack.c.h.b16 %v2195
    %v3185 = vunpack.c.l.b16 %v2196
    %v3186 = vunpack.c.h.b16 %v2196
    %v3187 = vunpack.c.l.b16 %v2197
    %v3188 = vunpack.c.h.b16 %v2197
    %v3189 = vunpack.c.l.b16 %v2198
    %v3190 = vunpack.c.h.b16 %v2198
    %v3191 = vunpack.c.l.b16 %v2199
    %v3192 = vunpack.c.h.b16 %v2199
    %v3193 = vunpack.c.l.b16 %v2200
    %v3194 = vunpack.c.h.b16 %v2200
    %v3195 = vunpack.c.l.b16 %v2201
    %v3196 = vunpack.c.h.b16 %v2201
    %v3197 = vunpack.c.l.b16 %v2202
    %v3198 = vunpack.c.h.b16 %v2202
    %v3199 = vunpack.c.l.b16 %v2203
    %v3200 = vunpack.c.h.b16 %v2203
    %v3201 = vunpack.c.l.b16 %v2204
    %v3202 = vunpack.c.h.b16 %v2204
    %v3203 = vunpack.c.l.b16 %v2205
    %v3204 = vunpack.c.h.b16 %v2205
    %v3205 = vunpack.c.l.b16 %v2206
    %v3206 = vunpack.c.h.b16 %v2206
    %v3207 = vunpack.c.l.b16 %v2207
    %v3208 = vunpack.c.h.b16 %v2207
    %v3209 = vunpack.c.l.b16 %v2208
    %v3210 = vunpack.c.h.b16 %v2208
    %v3211 = vunpack.c.l.b16 %v2209
    %v3212 = vunpack.c.h.b16 %v2209
    %v3213 = vunpack.c.l.b16 %v2210
    %v3214 = vunpack.c.h.b16 %v2210
    %v3215 = vunpack.c.l.b16 %v2211
    %v3216 = vunpack.c.h.b16 %v2211
    %v3217 = vunpack.c.l.b16 %v2212
    %v3218 = vunpack.c.h.b16 %v2212
    %v3219 = vunpack.c.l.b16 %v2213
    %v3220 = vunpack.c.h.b16 %v2213
    %v3221 = vunpack.c.l.b16 %v2214
    %v3222 = vunpack.c.h.b16 %v2214
    %v3223 = vunpack.c.l.b16 %v2215
    %v3224 = vunpack.c.h.b16 %v2215
    %v3225 = vunpack.c.l.b16 %v2216
    %v3226 = vunpack.c.h.b16 %v2216
    %v3227 = vunpack.c.l.b16 %v2217
    %v3228 = vunpack.c.h.b16 %v2217
    %v3229 = vunpack.c.l.b16 %v2218
    %v3230 = vunpack.c.h.b16 %v2218
    %v3231 = vunpack.c.l.b16 %v2219
    %v3232 = vunpack.c.h.b16 %v2219
    %v3233 = vunpack.c.l.b16 %v2220
    %v3234 = vunpack.c.h.b16 %v2220
    %v3235 = vunpack.c.l.b16 %v2221
    %v3236 = vunpack.c.h.b16 %v2221
    %v3237 = vunpack.c.l.b16 %v2222
    %v3238 = vunpack.c.h.b16 %v2222
    %v3239 = vunpack.c.l.b16 %v2223
    %v3240 = vunpack.c.h.b16 %v2223
    %v3241 = vunpack.c.l.b16 %v2224
    %v3242 = vunpack.c.h.b16 %v2224
    %v3243 = vunpack.c.l.b16 %v2225
    %v3244 = vunpack.c.h.b16 %v2225
    %v3245 = vunpack.c.l.b16 %v2226
    %v3246 = vunpack.c.h.b16 %v2226
    %v3247 = vunpack.c.l.b16 %v2227
    %v3248 = vunpack.c.h.b16 %v2227
    %v3249 = vunpack.c.l.b16 %v2228
    %v3250 = vunpack.c.h.b16 %v2228
    %v3251 = vunpack.c.l.b16 %v2229
    %v3252 = vunpack.c.h.b16 %v2229
    %v3253 = vunpack.c.l.b16 %v2230
    %v3254 = vunpack.c.h.b16 %v2230
    %v3255 = vunpack.c.l.b16 %v2231
    %v3256 = vunpack.c.h.b16 %v2231
    %v3257 = vunpack.c.l.b16 %v2232
    %v3258 = vunpack.c.h.b16 %v2232
    %v3259 = vunpack.c.l.b16 %v2233
    %v3260 = vunpack.c.h.b16 %v2233
    %v3261 = vunpack.c.l.b16 %v2234
    %v3262 = vunpack.c.h.b16 %v2234
    %v3263 = vunpack.c.l.b16 %v2235
    %v3264 = vunpack.c.h.b16 %v2235
    %v3265 = vunpack.c.l.b16 %v2236
    %v3266 = vunpack.c.h.b16 %v2236
    %v3267 = vunpack.c.l.b16 %v2237
    %v3268 = vunpack.c.h.b16 %v2237
    %v3269 = vunpack.c.l.b16 %v2238
    %v3270 = vunpack.c.h.b16 %v2238
    %v3271 = vunpack.c.l.b16 %v2239
    %v3272 = vunpack.c.h.b16 %v2239
    %v3273 = vunpack.c.l.b16 %v2240
    %v3274 = vunpack.c.h.b16 %v2240
    %v3275 = vunpack.c.l.b16 %v2241
    %v3276 = vunpack.c.h.b16 %v2241
    %v3277 = vunpack.c.l.b16 %v2242
    %v3278 = vunpack.c.h.b16 %v2242
    %v3279 = vunpack.c.l.b16 %v2243
    %v3280 = vunpack.c.h.b16 %v2243
    %v3281 = vunpack.c.l.b16 %v2244
    %v3282 = vunpack.c.h.b16 %v2244
    %v3283 = vunpack.c.l.b16 %v2245
    %v3284 = vunpack.c.h.b16 %v2245
    %v3285 = vunpack.c.l.b16 %v2246
    %v3286 = vunpack.c.h.b16 %v2246
    %v3287 = vunpack.c.l.b16 %v2247
    %v3288 = vunpack.c.h.b16 %v2247
    %v3289 = vunpack.c.l.b16 %v2248
    %v3290 = vunpack.c.h.b16 %v2248
    %v3291 = vunpack.c.l.b16 %v2249
    %v3292 = vunpack.c.h.b16 %v2249
    %v3293 = vunpack.c.l.b16 %v2250
    %v3294 = vunpack.c.h.b16 %v2250
    %v3295 = vunpack.c.l.b16 %v2251
    %v3296 = vunpack.c.h.b16 %v2251
    %v3297 = vunpack.c.l.b16 %v2252
    %v3298 = vunpack.c.h.b16 %v2252
    %v3299 = vunpack.c.l.b16 %v2253
    %v3300 = vunpack.c.h.b16 %v2253
    %v3301 = vunpack.c.l.b16 %v2254
    %v3302 = vunpack.c.h.b16 %v2254
    %v3303 = vunpack.c.l.b16 %v2255
    %v3304 = vunpack.c.h.b16 %v2255
    %v3305 = vunpack.c.l.b16 %v2256
    %v3306 = vunpack.c.h.b16 %v2256
    %v3307 = vunpack.c.l.b16 %v2257
    %v3308 = vunpack.c.h.b16 %v2257
    %v3309 = vunpack.c.l.b16 %v2258
    %v3310 = vunpack.c.h.b16 %v2258
    %v3311 = vunpack.c.l.b16 %v2259
    %v3312 = vunpack.c.h.b16 %v2259
    %v3313 = vunpack.c.l.b16 %v2260
    %v3314 = vunpack.c.h.b16 %v2260
    %v3315 = vunpack.c.l.b16 %v2261
    %v3316 = vunpack.c.h.b16 %v2261
    %v3317 = vunpack.c.l.b16 %v2262
    %v3318 = vunpack.c.h.b16 %v2262
    %v3319 = vunpack.c.l.b16 %v2263
    %v3320 = vunpack.c.h.b16 %v2263
    %v3321 = vunpack.c.l.b16 %v2264
    %v3322 = vunpack.c.h.b16 %v2264
    %v3323 = vunpack.c.l.b16 %v2265
    %v3324 = vunpack.c.h.b16 %v2265
    %v3325 = vunpack.c.l.b16 %v2266
    %v3326 = vunpack.c.h.b16 %v2266
    %v3327 = vunpack.c.l.b16 %v2267
    %v3328 = vunpack.c.h.b16 %v2267
    %v3329 = vunpack.c.l.b16 %v2268
    %v3330 = vunpack.c.h.b16 %v2268
    %v3331 = vunpack.c.l.b16 %v2269
    %v3332 = vunpack.c.h.b16 %v2269
    %v3333 = vunpack.c.l.b16 %v2270
    %v3334 = vunpack.c.h.b16 %v2270
    %v3335 = vunpack.c.l.b16 %v2271
    %v3336 = vunpack.c.h.b16 %v2271
    %v3337 = vunpack.c.l.b16 %v2272
    %v3338 = vunpack.c.h.b16 %v2272
    %v3339 = vunpack.c.l.b16 %v2273
    %v3340 = vunpack.c.h.b16 %v2273
    %v3341 = vunpack.c.l.b16 %v2274
    %v3342 = vunpack.c.h.b16 %v2274
    %v3343 = vunpack.c.l.b16 %v2275
    %v3344 = vunpack.c.h.b16 %v2275
    %v3345 = vunpack.c.l.b16 %v2276
    %v3346 = vunpack.c.h.b16 %v2276
    %v3347 = vunpack.c.l.b16 %v2277
    %v3348 = vunpack.c.h.b16 %v2277
    %v3349 = vunpack.c.l.b16 %v2278
    %v3350 = vunpack.c.h.b16 %v2278
    %v3351 = vunpack.c.l.b16 %v2279
    %v3352 = vunpack.c.h.b16 %v2279
    %v3353 = vunpack.c.l.b16 %v2280
    %v3354 = vunpack.c.h.b16 %v2280
    %v3355 = vunpack.c.l.b16 %v2281
    %v3356 = vunpack.c.h.b16 %v2281
    %v3357 = vunpack.c.l.b16 %v2282
    %v3358 = vunpack.c.h.b16 %v2282
    %v3359 = vunpack.c.l.b16 %v2283
    %v3360 = vunpack.c.h.b16 %v2283
    %v3361 = vunpack.c.l.b16 %v2284
    %v3362 = vunpack.c.h.b16 %v2284
    %v3363 = vunpack.c.l.b16 %v2285
    %v3364 = vunpack.c.h.b16 %v2285
    %v3365 = vunpack.c.l.b16 %v2286
    %v3366 = vunpack.c.h.b16 %v2286
    %v3367 = vunpack.c.l.b16 %v2287
    %v3368 = vunpack.c.h.b16 %v2287
    %v3369 = vunpack.c.l.b16 %v2288
    %v3370 = vunpack.c.h.b16 %v2288
    %v3371 = vunpack.c.l.b16 %v2289
    %v3372 = vunpack.c.h.b16 %v2289
    %v3373 = vunpack.c.l.b16 %v2290
    %v3374 = vunpack.c.h.b16 %v2290
    %v3375 = vunpack.c.l.b16 %v2291
    %v3376 = vunpack.c.h.b16 %v2291
    %v3377 = vunpack.c.l.b16 %v2292
    %v3378 = vunpack.c.h.b16 %v2292
    %v3379 = vunpack.c.l.b16 %v2293
    %v3380 = vunpack.c.h.b16 %v2293
    %v3381 = vunpack.c.l.b16 %v2294
    %v3382 = vunpack.c.h.b16 %v2294
    %v3383 = vunpack.c.l.b16 %v2295
    %v3384 = vunpack.c.h.b16 %v2295
    %v3385 = vunpack.c.l.b16 %v2296
    %v3386 = vunpack.c.h.b16 %v2296
    %v3387 = vunpack.c.l.b16 %v2297
    %v3388 = vunpack.c.h.b16 %v2297
    %v3389 = vunpack.c.l.b16 %v2298
    %v3390 = vunpack.c.h.b16 %v2298
    %v3391 = vunpack.c.l.b16 %v2299
    %v3392 = vunpack.c.h.b16 %v2299
    %v3393 = vunpack.c.l.b16 %v2300
    %v3394 = vunpack.c.h.b16 %v2300
    %v3395 = vunpack.c.l.b16 %v2301
    %v3396 = vunpack.c.h.b16 %v2301
    %v3397 = vunpack.c.l.b16 %v2302
    %v3398 = vunpack.c.h.b16 %v2302
    %v3399 = vunpack.c.l.b16 %v2303
    %v3400 = vunpack.c.h.b16 %v2303
    %v3401 = vunpack.c.l.b16 %v2304
    %v3402 = vunpack.c.h.b16 %v2304
    %v3403 = vunpack.c.l.b16 %v2305
    %v3404 = vunpack.c.h.b16 %v2305
    %v3405 = vunpack.c.l.b16 %v2306
    %v3406 = vunpack.c.h.b16 %v2306
    %v3407 = vunpack.c.l.b16 %v2307
    %v3408 = vunpack.c.h.b16 %v2307
    %v3409 = vunpack.c.l.b16 %v2308
    %v3410 = vunpack.c.h.b16 %v2308
    %v3411 = vunpack.c.l.b16 %v2309
    %v3412 = vunpack.c.h.b16 %v2309
    %v3413 = vunpack.c.l.b16 %v2310
    %v3414 = vunpack.c.h.b16 %v2310
    %v3415 = vunpack.c.l.b16 %v2311
    %v3416 = vunpack.c.h.b16 %v2311
    %v3417 = vunpack.c.l.b16 %v2312
    %v3418 = vunpack.c.h.b16 %v2312
    %v3419 = vunpack.c.l.b16 %v2313
    %v3420 = vunpack.c.h.b16 %v2313
    %v3421 = vunpack.c.l.b16 %v2314
    %v3422 = vunpack.c.h.b16 %v2314
    %v3423 = vunpack.c.l.b16 %v2315
    %v3424 = vunpack.c.h.b16 %v2315
    %v3425 = vunpack.c.l.b16 %v2316
    %v3426 = vunpack.c.h.b16 %v2316
    %v3427 = vunpack.c.l.b16 %v2317
    %v3428 = vunpack.c.h.b16 %v2317
    %v3429 = vunpack.c.l.b16 %v2318
    %v3430 = vunpack.c.h.b16 %v2318
    %v3431 = vunpack.c.l.b16 %v2319
    %v3432 = vunpack.c.h.b16 %v2319
    %v3433 = vunpack.c.l.b16 %v2320
    %v3434 = vunpack.c.h.b16 %v2320
    %v3435 = vunpack.c.l.b16 %v2321
    %v3436 = vunpack.c.h.b16 %v2321
    %v3437 = vunpack.c.l.b16 %v2322
    %v3438 = vunpack.c.h.b16 %v2322
    %v3439 = vunpack.c.l.b16 %v2323
    %v3440 = vunpack.c.h.b16 %v2323
    %v3441 = vunpack.c.l.b16 %v2324
    %v3442 = vunpack.c.h.b16 %v2324
    %v3443 = vunpack.c.l.b16 %v2325
    %v3444 = vunpack.c.h.b16 %v2325
    %v3445 = vunpack.c.l.b16 %v2326
    %v3446 = vunpack.c.h.b16 %v2326
    %v3447 = vunpack.c.l.b16 %v2327
    %v3448 = vunpack.c.h.b16 %v2327
    %v3449 = vunpack.c.l.b16 %v2328
    %v3450 = vunpack.c.h.b16 %v2328
    %v3451 = vunpack.c.l.b16 %v2329
    %v3452 = vunpack.c.h.b16 %v2329
    %v3453 = vunpack.c.l.b16 %v2330
    %v3454 = vunpack.c.h.b16 %v2330
    %v3455 = vunpack.c.l.b16 %v2331
    %v3456 = vunpack.c.h.b16 %v2331
    %v3457 = vunpack.c.l.b16 %v2332
    %v3458 = vunpack.c.h.b16 %v2332
    %v3459 = vunpack.c.l.b16 %v2333
    %v3460 = vunpack.c.h.b16 %v2333
    %v3461 = vunpack.c.l.b16 %v2334
    %v3462 = vunpack.c.h.b16 %v2334
    %v3463 = vunpack.c.l.b16 %v2335
    %v3464 = vunpack.c.h.b16 %v2335
    %v3465 = vunpack.c.l.b16 %v2336
    %v3466 = vunpack.c.h.b16 %v2336
    %v3467 = vunpack.c.l.b16 %v2337
    %v3468 = vunpack.c.h.b16 %v2337
    %v3469 = vunpack.c.l.b16 %v2338
    %v3470 = vunpack.c.h.b16 %v2338
    %v3471 = vunpack.c.l.b16 %v2339
    %v3472 = vunpack.c.h.b16 %v2339
    %v3473 = vunpack.c.l.b16 %v2340
    %v3474 = vunpack.c.h.b16 %v2340
    %v3475 = vunpack.c.l.b16 %v2341
    %v3476 = vunpack.c.h.b16 %v2341
    %v3477 = vunpack.c.l.b16 %v2342
    %v3478 = vunpack.c.h.b16 %v2342
    %v3479 = vunpack.c.l.b16 %v2343
    %v3480 = vunpack.c.h.b16 %v2343
    %v3481 = vunpack.c.l.b16 %v2344
    %v3482 = vunpack.c.h.b16 %v2344
    %v3483 = vunpack.c.l.b16 %v2345
    %v3484 = vunpack.c.h.b16 %v2345
    %v3485 = vunpack.c.l.b16 %v2346
    %v3486 = vunpack.c.h.b16 %v2346
    %v3487 = vunpack.c.l.b16 %v2347
    %v3488 = vunpack.c.h.b16 %v2347
    %v3489 = vunpack.c.l.b16 %v2348
    %v3490 = vunpack.c.h.b16 %v2348
    %v3491 = vunpack.c.l.b16 %v2349
    %v3492 = vunpack.c.h.b16 %v2349
    %v3493 = vunpack.c.l.b16 %v2350
    %v3494 = vunpack.c.h.b16 %v2350
    %v3495 = vunpack.c.l.b16 %v2351
    %v3496 = vunpack.c.h.b16 %v2351
    %v3497 = vunpack.c.l.b16 %v2352
    %v3498 = vunpack.c.h.b16 %v2352
    %v3499 = vunpack.c.l.b16 %v2353
    %v3500 = vunpack.c.h.b16 %v2353
    %v3501 = vunpack.c.l.b16 %v2354
    %v3502 = vunpack.c.h.b16 %v2354
    %v3503 = vunpack.c.l.b16 %v2355
    %v3504 = vunpack.c.h.b16 %v2355
    %v3505 = vunpack.c.l.b16 %v2356
    %v3506 = vunpack.c.h.b16 %v2356
    %v3507 = vunpack.c.l.b16 %v2357
    %v3508 = vunpack.c.h.b16 %v2357
    %v3509 = vunpack.c.l.b16 %v2358
    %v3510 = vunpack.c.h.b16 %v2358
    %v3511 = vunpack.c.l.b16 %v2359
    %v3512 = vunpack.c.h.b16 %v2359
    %v3513 = vunpack.c.l.b16 %v2360
    %v3514 = vunpack.c.h.b16 %v2360
    %v3515 = vunpack.c.l.b16 %v2361
    %v3516 = vunpack.c.h.b16 %v2361
    %v3517 = vunpack.c.l.b16 %v2362
    %v3518 = vunpack.c.h.b16 %v2362
    %v3519 = vunpack.c.l.b16 %v2363
    %v3520 = vunpack.c.h.b16 %v2363
    %v3521 = vunpack.c.l.b16 %v2364
    %v3522 = vunpack.c.h.b16 %v2364
    %v3523 = vunpack.c.l.b16 %v2365
    %v3524 = vunpack.c.h.b16 %v2365
    %v3525 = vunpack.c.l.b16 %v2366
    %v3526 = vunpack.c.h.b16 %v2366
    %v3527 = vunpack.c.l.b16 %v2367
    %v3528 = vunpack.c.h.b16 %v2367
    %v3529 = vunpack.c.l.b16 %v2368
    %v3530 = vunpack.c.h.b16 %v2368
    %v3531 = vunpack.c.l.b16 %v2369
    %v3532 = vunpack.c.h.b16 %v2369
    %v3533 = vunpack.c.l.b16 %v2370
    %v3534 = vunpack.c.h.b16 %v2370
    %v3535 = vunpack.c.l.b16 %v2371
    %v3536 = vunpack.c.h.b16 %v2371
    %v3537 = vunpack.c.l.b16 %v2372
    %v3538 = vunpack.c.h.b16 %v2372
    %v3539 = vunpack.c.l.b16 %v2373
    %v3540 = vunpack.c.h.b16 %v2373
    %v3541 = vunpack.c.l.b16 %v2374
    %v3542 = vunpack.c.h.b16 %v2374
    %v3543 = vunpack.c.l.b16 %v2375
    %v3544 = vunpack.c.h.b16 %v2375
    %v3545 = vunpack.c.l.b16 %v2376
    %v3546 = vunpack.c.h.b16 %v2376
    %v3547 = vunpack.c.l.b16 %v2377
    %v3548 = vunpack.c.h.b16 %v2377
    %v3549 = vunpack.c.l.b16 %v2378
    %v3550 = vunpack.c.h.b16 %v2378
    %v3551 = vunpack.c.l.b16 %v2379
    %v3552 = vunpack.c.h.b16 %v2379
    %v3553 = vunpack.c.l.b16 %v2380
    %v3554 = vunpack.c.h.b16 %v2380
    %v3555 = vpack.c.b16 %v2791, %v2787
    %v3556 = vpack.c.b16 %v2792, %v2788
    %v3557 = vpack.c.b16 %v2793, %v2789
    %v3558 = vpack.c.b16 %v2794, %v2790
    %v3559 = vpack.c.b16 %v2799, %v2795
    %v3560 = vpack.c.b16 %v2800, %v2796
    %v3561 = vpack.c.b16 %v2801, %v2797
    %v3562 = vpack.c.b16 %v2802, %v2798
    %v3563 = vpack.c.b16 %v2807, %v2803
    %v3564 = vpack.c.b16 %v2808, %v2804
    %v3565 = vpack.c.b16 %v2809, %v2805
    %v3566 = vpack.c.b16 %v2810, %v2806
    %v3567 = vpack.c.b16 %v2815, %v2811
    %v3568 = vpack.c.b16 %v2816, %v2812
    %v3569 = vpack.c.b16 %v2817, %v2813
    %v3570 = vpack.c.b16 %v2818, %v2814
    %v3571 = vpack.c.b16 %v2823, %v2819
    %v3572 = vpack.c.b16 %v2824, %v2820
    %v3573 = vpack.c.b16 %v2825, %v2821
    %v3574 = vpack.c.b16 %v2826, %v2822
    %v3575 = vpack.c.b16 %v2831, %v2827
    %v3576 = vpack.c.b16 %v2832, %v2828
    %v3577 = vpack.c.b16 %v2833, %v2829
    %v3578 = vpack.c.b16 %v2834, %v2830
    %v3579 = vpack.c.b16 %v2839, %v2835
    %v3580 = vpack.c.b16 %v2840, %v2836
    %v3581 = vpack.c.b16 %v2841, %v2837
    %v3582 = vpack.c.b16 %v2842, %v2838
    %v3583 = vpack.c.b16 %v2847, %v2843
    %v3584 = vpack.c.b16 %v2848, %v2844
    %v3585 = vpack.c.b16 %v2849, %v2845
    %v3586 = vpack.c.b16 %v2850, %v2846
    %v3587 = vpack.c.b16 %v2855, %v2851
    %v3588 = vpack.c.b16 %v2856, %v2852
    %v3589 = vpack.c.b16 %v2857, %v2853
    %v3590 = vpack.c.b16 %v2858, %v2854
    %v3591 = vpack.c.b16 %v2863, %v2859
    %v3592 = vpack.c.b16 %v2864, %v2860
    %v3593 = vpack.c.b16 %v2865, %v2861
    %v3594 = vpack.c.b16 %v2866, %v2862
    %v3595 = vpack.c.b16 %v2871, %v2867
    %v3596 = vpack.c.b16 %v2872, %v2868
    %v3597 = vpack.c.b16 %v2873, %v2869
    %v3598 = vpack.c.b16 %v2874, %v2870
    %v3599 = vpack.c.b16 %v2879, %v2875
    %v3600 = vpack.c.b16 %v2880, %v2876
    %v3601 = vpack.c.b16 %v2881, %v2877
    %v3602 = vpack.c.b16 %v2882, %v2878
    %v3603 = vpack.c.b16 %v2887, %v2883
    %v3604 = vpack.c.b16 %v2888, %v2884
    %v3605 = vpack.c.b16 %v2889, %v2885
    %v3606 = vpack.c.b16 %v2890, %v2886
    %v3607 = vpack.c.b16 %v2895, %v2891
    %v3608 = vpack.c.b16 %v2896, %v2892
    %v3609 = vpack.c.b16 %v2897, %v2893
    %v3610 = vpack.c.b16 %v2898, %v2894
    %v3611 = vpack.c.b16 %v2903, %v2899
    %v3612 = vpack.c.b16 %v2904, %v2900
    %v3613 = vpack.c.b16 %v2905, %v2901
    %v3614 = vpack.c.b16 %v2906, %v2902
    %v3615 = vpack.c.b16 %v2911, %v2907
    %v3616 = vpack.c.b16 %v2912, %v2908
    %v3617 = vpack.c.b16 %v2913, %v2909
    %v3618 = vpack.c.b16 %v2914, %v2910
    %v3619 = vpack.c.b16 %v2919, %v2915
    %v3620 = vpack.c.b16 %v2920, %v2916
    %v3621 = vpack.c.b16 %v2921, %v2917
    %v3622 = vpack.c.b16 %v2922, %v2918
    %v3623 = vpack.c.b16 %v2927, %v2923
    %v3624 = vpack.c.b16 %v2928, %v2924
    %v3625 = vpack.c.b16 %v2929, %v2925
    %v3626 = vpack.c.b16 %v2930, %v2926
    %v3627 = vpack.c.b16 %v2935, %v2931
    %v3628 = vpack.c.b16 %v2936, %v2932
    %v3629 = vpack.c.b16 %v2937, %v2933
    %v3630 = vpack.c.b16 %v2938, %v2934
    %v3631 = vpack.c.b16 %v2943, %v2939
    %v3632 = vpack.c.b16 %v2944, %v2940
    %v3633 = vpack.c.b16 %v2945, %v2941
    %v3634 = vpack.c.b16 %v2946, %v2942
    %v3635 = vpack.c.b16 %v2951, %v2947
    %v3636 = vpack.c.b16 %v2952, %v2948
    %v3637 = vpack.c.b16 %v2953, %v2949
    %v3638 = vpack.c.b16 %v2954, %v2950
    %v3639 = vpack.c.b16 %v2959, %v2955
    %v3640 = vpack.c.b16 %v2960, %v2956
    %v3641 = vpack.c.b16 %v2961, %v2957
    %v3642 = vpack.c.b16 %v2962, %v2958
    %v3643 = vpack.c.b16 %v2967, %v2963
    %v3644 = vpack.c.b16 %v2968, %v2964
    %v3645 = vpack.c.b16 %v2969, %v2965
    %v3646 = vpack.c.b16 %v2970, %v2966
    %v3647 = vpack.c.b16 %v2975, %v2971
    %v3648 = vpack.c.b16 %v2976, %v2972
    %v3649 = vpack.c.b16 %v2977, %v2973
    %v3650 = vpack.c.b16 %v2978, %v2974
    %v3651 = vpack.c.b16 %v2983, %v2979
    %v3652 = vpack.c.b16 %v2984, %v2980
    %v3653 = vpack.c.b16 %v2985, %v2981
    %v3654 = vpack.c.b16 %v2986, %v2982
    %v3655 = vpack.c.b16 %v2991, %v2987
    %v3656 = vpack.c.b16 %v2992, %v2988
    %v3657 = vpack.c.b16 %v2993, %v2989
    %v3658 = vpack.c.b16 %v2994, %v2990
    %v3659 = vpack.c.b16 %v2999, %v2995
    %v3660 = vpack.c.b16 %v3000, %v2996
    %v3661 = vpack.c.b16 %v3001, %v2997
    %v3662 = vpack.c.b16 %v3002, %v2998
    %v3663 = vpack.c.b16 %v3007, %v3003
    %v3664 = vpack.c.b16 %v3008, %v3004
    %v3665 = vpack.c.b16 %v3009, %v3005
    %v3666 = vpack.c.b16 %v3010, %v3006
    %v3667 = vpack.c.b16 %v3015, %v3011
    %v3668 = vpack.c.b16 %v3016, %v3012
    %v3669 = vpack.c.b16 %v3017, %v3013
    %v3670 = vpack.c.b16 %v3018, %v3014
    %v3671 = vpack.c.b16 %v3023, %v3019
    %v3672 = vpack.c.b16 %v3024, %v3020
    %v3673 = vpack.c.b16 %v3025, %v3021
    %v3674 = vpack.c.b16 %v3026, %v3022
    %v3675 = vpack.c.b16 %v3031, %v3027
    %v3676 = vpack.c.b16 %v3032, %v3028
    %v3677 = vpack.c.b16 %v3033, %v3029
    %v3678 = vpack.c.b16 %v3034, %v3030
    %v3679 = vpack.c.b16 %v3039, %v3035
    %v3680 = vpack.c.b16 %v3040, %v3036
    %v3681 = vpack.c.b16 %v3041, %v3037
    %v3682 = vpack.c.b16 %v3042, %v3038
    %v3683 = vpack.c.b16 %v3047, %v3043
    %v3684 = vpack.c.b16 %v3048, %v3044
    %v3685 = vpack.c.b16 %v3049, %v3045
    %v3686 = vpack.c.b16 %v3050, %v3046
    %v3687 = vpack.c.b16 %v3055, %v3051
    %v3688 = vpack.c.b16 %v3056, %v3052
    %v3689 = vpack.c.b16 %v3057, %v3053
    %v3690 = vpack.c.b16 %v3058, %v3054
    %v3691 = vpack.c.b16 %v3063, %v3059
    %v3692 = vpack.c.b16 %v3064, %v3060
    %v3693 = vpack.c.b16 %v3065, %v3061
    %v3694 = vpack.c.b16 %v3066, %v3062
    %v3695 = vpack.c.b16 %v3071, %v3067
    %v3696 = vpack.c.b16 %v3072, %v3068
    %v3697 = vpack.c.b16 %v3073, %v3069
    %v3698 = vpack.c.b16 %v3074, %v3070
    %v3699 = vpack.c.b16 %v3079, %v3075
    %v3700 = vpack.c.b16 %v3080, %v3076
    %v3701 = vpack.c.b16 %v3081, %v3077
    %v3702 = vpack.c.b16 %v3082, %v3078
    %v3703 = vpack.c.b16 %v3087, %v3083
    %v3704 = vpack.c.b16 %v3088, %v3084
    %v3705 = vpack.c.b16 %v3089, %v3085
    %v3706 = vpack.c.b16 %v3090, %v3086
    %v3707 = vpack.c.b16 %v3095, %v3091
    %v3708 = vpack.c.b16 %v3096, %v3092
    %v3709 = vpack.c.b16 %v3097, %v3093
    %v3710 = vpack.c.b16 %v3098, %v3094
    %v3711 = vpack.c.b16 %v3103, %v3099
    %v3712 = vpack.c.b16 %v3104, %v3100
    %v3713 = vpack.c.b16 %v3105, %v3101
    %v3714 = vpack.c.b16 %v3106, %v3102
    %v3715 = vpack.c.b16 %v3111, %v3107
    %v3716 = vpack.c.b16 %v3112, %v3108
    %v3717 = vpack.c.b16 %v3113, %v3109
    %v3718 = vpack.c.b16 %v3114, %v3110
    %v3719 = vpack.c.b16 %v3119, %v3115
    %v3720 = vpack.c.b16 %v3120, %v3116
    %v3721 = vpack.c.b16 %v3121, %v3117
    %v3722 = vpack.c.b16 %v3122, %v3118
    %v3723 = vpack.c.b16 %v3127, %v3123
    %v3724 = vpack.c.b16 %v3128, %v3124
    %v3725 = vpack.c.b16 %v3129, %v3125
    %v3726 = vpack.c.b16 %v3130, %v3126
    %v3727 = vpack.c.b16 %v3135, %v3131
    %v3728 = vpack.c.b16 %v3136, %v3132
    %v3729 = vpack.c.b16 %v3137, %v3133
    %v3730 = vpack.c.b16 %v3138, %v3134
    %v3731 = vpack.c.b16 %v3143, %v3139
    %v3732 = vpack.c.b16 %v3144, %v3140
    %v3733 = vpack.c.b16 %v3145, %v3141
    %v3734 = vpack.c.b16 %v3146, %v3142
    %v3735 = vpack.c.b16 %v3151, %v3147
    %v3736 = vpack.c.b16 %v3152, %v3148
    %v3737 = vpack.c.b16 %v3153, %v3149
    %v3738 = vpack.c.b16 %v3154, %v3150
    %v3739 = vpack.c.b16 %v3159, %v3155
    %v3740 = vpack.c.b16 %v3160, %v3156
    %v3741 = vpack.c.b16 %v3161, %v3157
    %v3742 = vpack.c.b16 %v3162, %v3158
    %v3743 = vpack.c.b16 %v3167, %v3163
    %v3744 = vpack.c.b16 %v3168, %v3164
    %v3745 = vpack.c.b16 %v3169, %v3165
    %v3746 = vpack.c.b16 %v3170, %v3166
    %v3747 = vpack.c.b16 %v3175, %v3171
    %v3748 = vpack.c.b16 %v3176, %v3172
    %v3749 = vpack.c.b16 %v3177, %v3173
    %v3750 = vpack.c.b16 %v3178, %v3174
    %v3751 = vpack.c.b16 %v3183, %v3179
    %v3752 = vpack.c.b16 %v3184, %v3180
    %v3753 = vpack.c.b16 %v3185, %v3181
    %v3754 = vpack.c.b16 %v3186, %v3182
    %v3755 = vpack.c.b16 %v3191, %v3187
    %v3756 = vpack.c.b16 %v3192, %v3188
    %v3757 = vpack.c.b16 %v3193, %v3189
    %v3758 = vpack.c.b16 %v3194, %v3190
    %v3759 = vpack.c.b16 %v3199, %v3195
    %v3760 = vpack.c.b16 %v3200, %v3196
    %v3761 = vpack.c.b16 %v3201, %v3197
    %v3762 = vpack.c.b16 %v3202, %v3198
    %v3763 = vpack.c.b16 %v3207, %v3203
    %v3764 = vpack.c.b16 %v3208, %v3204
    %v3765 = vpack.c.b16 %v3209, %v3205
    %v3766 = vpack.c.b16 %v3210, %v3206
    %v3767 = vpack.c.b16 %v3215, %v3211
    %v3768 = vpack.c.b16 %v3216, %v3212
    %v3769 = vpack.c.b16 %v3217, %v3213
    %v3770 = vpack.c.b16 %v3218, %v3214
    %v3771 = vpack.c.b16 %v3223, %v3219
    %v3772 = vpack.c.b16 %v3224, %v3220
    %v3773 = vpack.c.b16 %v3225, %v3221
    %v3774 = vpack.c.b16 %v3226, %v3222
    %v3775 = vpack.c.b16 %v3231, %v3227
    %v3776 = vpack.c.b16 %v3232, %v3228
    %v3777 = vpack.c.b16 %v3233, %v3229
    %v3778 = vpack.c.b16 %v3234, %v3230
    %v3779 = vpack.c.b16 %v3239, %v3235
    %v3780 = vpack.c.b16 %v3240, %v3236
    %v3781 = vpack.c.b16 %v3241, %v3237
    %v3782 = vpack.c.b16 %v3242, %v3238
    %v3783 = vpack.c.b16 %v3247, %v3243
    %v3784 = vpack.c.b16 %v3248, %v3244
    %v3785 = vpack.c.b16 %v3249, %v3245
    %v3786 = vpack.c.b16 %v3250, %v3246
    %v3787 = vpack.c.b16 %v3255, %v3251
    %v3788 = vpack.c.b16 %v3256, %v3252
    %v3789 = vpack.c.b16 %v3257, %v3253
    %v3790 = vpack.c.b16 %v3258, %v3254
    %v3791 = vpack.c.b16 %v3263, %v3259
    %v3792 = vpack.c.b16 %v3264, %v3260
    %v3793 = vpack.c.b16 %v3265, %v3261
    %v3794 = vpack.c.b16 %v3266, %v3262
    %v3795 = vpack.c.b16 %v3271, %v3267
    %v3796 = vpack.c.b16 %v3272, %v3268
    %v3797 = vpack.c.b16 %v3273, %v3269
    %v3798 = vpack.c.b16 %v3274, %v3270
    %v3799 = vpack.c.b16 %v3279, %v3275
    %v3800 = vpack.c.b16 %v3280, %v3276
    %v3801 = vpack.c.b16 %v3281, %v3277
    %v3802 = vpack.c.b16 %v3282, %v3278
    %v3803 = vpack.c.b16 %v3287, %v3283
    %v3804 = vpack.c.b16 %v3288, %v3284
    %v3805 = vpack.c.b16 %v3289, %v3285
    %v3806 = vpack.c.b16 %v3290, %v3286
    %v3807 = vpack.c.b16 %v3295, %v3291
    %v3808 = vpack.c.b16 %v3296, %v3292
    %v3809 = vpack.c.b16 %v3297, %v3293
    %v3810 = vpack.c.b16 %v3298, %v3294
    %v3811 = vpack.c.b16 %v3303, %v3299
    %v3812 = vpack.c.b16 %v3304, %v3300
    %v3813 = vpack.c.b16 %v3305, %v3301
    %v3814 = vpack.c.b16 %v3306, %v3302
    %v3815 = vpack.c.b16 %v3311, %v3307
    %v3816 = vpack.c.b16 %v3312, %v3308
    %v3817 = vpack.c.b16 %v3313, %v3309
    %v3818 = vpack.c.b16 %v3314, %v3310
    %v3819 = vpack.c.b16 %v3319, %v3315
    %v3820 = vpack.c.b16 %v3320, %v3316
    %v3821 = vpack.c.b16 %v3321, %v3317
    %v3822 = vpack.c.b16 %v3322, %v3318
    %v3823 = vpack.c.b16 %v3327, %v3323
    %v3824 = vpack.c.b16 %v3328, %v3324
    %v3825 = vpack.c.b16 %v3329, %v3325
    %v3826 = vpack.c.b16 %v3330, %v3326
    %v3827 = vpack.c.b16 %v3335, %v3331
    %v3828 = vpack.c.b16 %v3336, %v3332
    %v3829 = vpack.c.b16 %v3337, %v3333
    %v3830 = vpack.c.b16 %v3338, %v3334
    %v3831 = vpack.c.b16 %v3343, %v3339
    %v3832 = vpack.c.b16 %v3344, %v3340
    %v3833 = vpack.c.b16 %v3345, %v3341
    %v3834 = vpack.c.b16 %v3346, %v3342
    %v3835 = vpack.c.b16 %v3351, %v3347
    %v3836 = vpack.c.b16 %v3352, %v3348
    %v3837 = vpack.c.b16 %v3353, %v3349
    %v3838 = vpack.c.b16 %v3354, %v3350
    %v3839 = vpack.c.b16 %v3359, %v3355
    %v3840 = vpack.c.b16 %v3360, %v3356
    %v3841 = vpack.c.b16 %v3361, %v3357
    %v3842 = vpack.c.b16 %v3362, %v3358
    %v3843 = vpack.c.b16 %v3367, %v3363
    %v3844 = vpack.c.b16 %v3368, %v3364
    %v3845 = vpack.c.b16 %v3369, %v3365
    %v3846 = vpack.c.b16 %v3370, %v3366
    %v3847 = vpack.c.b16 %v3375, %v3371
    %v3848 = vpack.c.b16 %v3376, %v3372
    %v3849 = vpack.c.b16 %v3377, %v3373
    %v3850 = vpack.c.b16 %v3378, %v3374
    %v3851 = vpack.c.b16 %v3383, %v3379
    %v3852 = vpack.c.b16 %v3384, %v3380
    %v3853 = vpack.c.b16 %v3385, %v3381
    %v3854 = vpack.c.b16 %v3386, %v3382
    %v3855 = vpack.c.b16 %v3391, %v3387
    %v3856 = vpack.c.b16 %v3392, %v3388
    %v3857 = vpack.c.b16 %v3393, %v3389
    %v3858 = vpack.c.b16 %v3394, %v3390
    %v3859 = vpack.c.b16 %v3399, %v3395
    %v3860 = vpack.c.b16 %v3400, %v3396
    %v3861 = vpack.c.b16 %v3401, %v3397
    %v3862 = vpack.c.b16 %v3402, %v3398
    %v3863 = vpack.c.b16 %v3407, %v3403
    %v3864 = vpack.c.b16 %v3408, %v3404
    %v3865 = vpack.c.b16 %v3409, %v3405
    %v3866 = vpack.c.b16 %v3410, %v3406
    %v3867 = vpack.c.b16 %v3415, %v3411
    %v3868 = vpack.c.b16 %v3416, %v3412
    %v3869 = vpack.c.b16 %v3417, %v3413
    %v3870 = vpack.c.b16 %v3418, %v3414
    %v3871 = vpack.c.b16 %v3423, %v3419
    %v3872 = vpack.c.b16 %v3424, %v3420
    %v3873 = vpack.c.b16 %v3425, %v3421
    %v3874 = vpack.c.b16 %v3426, %v3422
    %v3875 = vpack.c.b16 %v3431, %v3427
    %v3876 = vpack.c.b16 %v3432, %v3428
    %v3877 = vpack.c.b16 %v3433, %v3429
    %v3878 = vpack.c.b16 %v3434, %v3430
    %v3879 = vpack.c.b16 %v3439, %v3435
    %v3880 = vpack.c.b16 %v3440, %v3436
    %v3881 = vpack.c.b16 %v3441, %v3437
    %v3882 = vpack.c.b16 %v3442, %v3438
    %v3883 = vpack.c.b16 %v3447, %v3443
    %v3884 = vpack.c.b16 %v3448, %v3444
    %v3885 = vpack.c.b16 %v3449, %v3445
    %v3886 = vpack.c.b16 %v3450, %v3446
    %v3887 = vpack.c.b16 %v3455, %v3451
    %v3888 = vpack.c.b16 %v3456, %v3452
    %v3889 = vpack.c.b16 %v3457, %v3453
    %v3890 = vpack.c.b16 %v3458, %v3454
    %v3891 = vpack.c.b16 %v3463, %v3459
    %v3892 = vpack.c.b16 %v3464, %v3460
    %v3893 = vpack.c.b16 %v3465, %v3461
    %v3894 = vpack.c.b16 %v3466, %v3462
    %v3895 = vpack.c.b16 %v3471, %v3467
    %v3896 = vpack.c.b16 %v3472, %v3468
    %v3897 = vpack.c.b16 %v3473, %v3469
    %v3898 = vpack.c.b16 %v3474, %v3470
    %v3899 = vpack.c.b16 %v3479, %v3475
    %v3900 = vpack.c.b16 %v3480, %v3476
    %v3901 = vpack.c.b16 %v3481, %v3477
    %v3902 = vpack.c.b16 %v3482, %v3478
    %v3903 = vpack.c.b16 %v3487, %v3483
    %v3904 = vpack.c.b16 %v3488, %v3484
    %v3905 = vpack.c.b16 %v3489, %v3485
    %v3906 = vpack.c.b16 %v3490, %v3486
    %v3907 = vpack.c.b16 %v3495, %v3491
    %v3908 = vpack.c.b16 %v3496, %v3492
    %v3909 = vpack.c.b16 %v3497, %v3493
    %v3910 = vpack.c.b16 %v3498, %v3494
    %v3911 = vpack.c.b16 %v3503, %v3499
    %v3912 = vpack.c.b16 %v3504, %v3500
    %v3913 = vpack.c.b16 %v3505, %v3501
    %v3914 = vpack.c.b16 %v3506, %v3502
    %v3915 = vpack.c.b16 %v3511, %v3507
    %v3916 = vpack.c.b16 %v3512, %v3508
    %v3917 = vpack.c.b16 %v3513, %v3509
    %v3918 = vpack.c.b16 %v3514, %v3510
    %v3919 = vpack.c.b16 %v3519, %v3515
    %v3920 = vpack.c.b16 %v3520, %v3516
    %v3921 = vpack.c.b16 %v3521, %v3517
    %v3922 = vpack.c.b16 %v3522, %v3518
    %v3923 = vpack.c.b16 %v3527, %v3523
    %v3924 = vpack.c.b16 %v3528, %v3524
    %v3925 = vpack.c.b16 %v3529, %v3525
    %v3926 = vpack.c.b16 %v3530, %v3526
    %v3927 = vpack.c.b16 %v3535, %v3531
    %v3928 = vpack.c.b16 %v3536, %v3532
    %v3929 = vpack.c.b16 %v3537, %v3533
    %v3930 = vpack.c.b16 %v3538, %v3534
    %v3931 = vpack.c.b16 %v3543, %v3539
    %v3932 = vpack.c.b16 %v3544, %v3540
    %v3933 = vpack.c.b16 %v3545, %v3541
    %v3934 = vpack.c.b16 %v3546, %v3542
    %v3935 = vpack.c.b16 %v3551, %v3547
    %v3936 = vpack.c.b16 %v3552, %v3548
    %v3937 = vpack.c.b16 %v3553, %v3549
    %v3938 = vpack.c.b16 %v3554, %v3550
    %4323 = vmatprep.subr.bf16.mxu0 %v3556
    %4324 = vmatpush1.bf16.msra.mxu0 %v3555
    %4325 = vmatprep.subr.bf16.mxu0 %v3560
    %4326 = vmatpush1.bf16.msra.mxu0 %v3559
    %4327 = vmatprep.subr.bf16.mxu0 %v3564
    %4328 = vmatpush1.bf16.msra.mxu0 %v3563
    %4329 = vmatprep.subr.bf16.mxu0 %v3568
    %4330 = vmatpush1.bf16.msra.mxu0 %v3567
    %4331 = vmatprep.subr.bf16.mxu0 %v3572
    %4332 = vmatpush1.bf16.msra.mxu0 %v3571
    %4333 = vmatprep.subr.bf16.mxu0 %v3576
    %4334 = vmatpush1.bf16.msra.mxu0 %v3575
    %4335 = vmatprep.subr.bf16.mxu0 %v3580
    %4336 = vmatpush1.bf16.msra.mxu0 %v3579
    %4337 = vmatprep.subr.bf16.mxu0 %v3584
    %4338 = vmatpush1.bf16.msra.mxu0 %v3583
    %4339 = vmatprep.subr.bf16.mxu0 %v3588
    %4340 = vmatpush1.bf16.msra.mxu0 %v3587
    %4341 = vmatprep.subr.bf16.mxu0 %v3592
    %4342 = vmatpush1.bf16.msra.mxu0 %v3591
    %4343 = vmatprep.subr.bf16.mxu0 %v3596
    %4344 = vmatpush1.bf16.msra.mxu0 %v3595
    %4345 = vmatprep.subr.bf16.mxu0 %v3600
    %4346 = vmatpush1.bf16.msra.mxu0 %v3599
    %4347 = vmatprep.subr.bf16.mxu0 %v3604
    %4348 = vmatpush1.bf16.msra.mxu0 %v3603
    %4349 = vmatprep.subr.bf16.mxu0 %v3608
    %4350 = vmatpush1.bf16.msra.mxu0 %v3607
    %4351 = vmatprep.subr.bf16.mxu0 %v3612
    %4352 = vmatpush1.bf16.msra.mxu0 %v3611
    %4353 = vmatprep.subr.bf16.mxu0 %v3616
    %4354 = vmatpush1.bf16.msra.mxu0 %v3615
    %4355 = vmatprep.mubr.bf16.mxu0 %v1986
    %4356 = vmatmul.mubr.bf16.gmra.mrb[0].mxu0 %v1985
    %v4357 = vpop.f32.mrb[0].mxu0
    %v4358 = vadd.f32 %v2386, %v4357
    %v4359 = vpop.f32.mrb[0].mxu0
    %v4360 = vadd.f32 %v2390, %v4359
    %v4361 = vpop.f32.mrb[0].mxu0
    %v4362 = vpop.f32.mrb[0].mxu0
    %4363 = vdwg.mxu0
    %4364 = vmatprep.subr.bf16.mxu0 %v3620
    %4365 = vmatpush1.bf16.msra.mxu0 %v3619
    %4366 = vmatprep.subr.bf16.mxu0 %v3624
    %4367 = vmatpush1.bf16.msra.mxu0 %v3623
    %4368 = vmatprep.subr.bf16.mxu0 %v3628
    %4369 = vmatpush1.bf16.msra.mxu0 %v3627
    %4370 = vmatprep.subr.bf16.mxu0 %v3632
    %4371 = vmatpush1.bf16.msra.mxu0 %v3631
    %4372 = vmatprep.subr.bf16.mxu0 %v3636
    %4373 = vmatpush1.bf16.msra.mxu0 %v3635
    %4374 = vmatprep.subr.bf16.mxu0 %v3640
    %4375 = vmatpush1.bf16.msra.mxu0 %v3639
    %4376 = vmatprep.subr.bf16.mxu0 %v3644
    %4377 = vmatpush1.bf16.msra.mxu0 %v3643
    %4378 = vmatprep.subr.bf16.mxu0 %v3648
    %4379 = vmatpush1.bf16.msra.mxu0 %v3647
    %4380 = vmatprep.subr.bf16.mxu0 %v3652
    %4381 = vmatpush1.bf16.msra.mxu0 %v3651
    %4382 = vmatprep.subr.bf16.mxu0 %v3656
    %4383 = vmatpush1.bf16.msra.mxu0 %v3655
    %4384 = vmatprep.subr.bf16.mxu0 %v3660
    %4385 = vmatpush1.bf16.msra.mxu0 %v3659
    %4386 = vmatprep.subr.bf16.mxu0 %v3664
    %4387 = vmatpush1.bf16.msra.mxu0 %v3663
    %4388 = vmatprep.subr.bf16.mxu0 %v3668
    %4389 = vmatpush1.bf16.msra.mxu0 %v3667
    %4390 = vmatprep.subr.bf16.mxu0 %v3672
    %4391 = vmatpush1.bf16.msra.mxu0 %v3671
    %4392 = vmatprep.subr.bf16.mxu0 %v3676
    %4393 = vmatpush1.bf16.msra.mxu0 %v3675
    %4394 = vmatprep.subr.bf16.mxu0 %v3680
    %4395 = vmatpush1.bf16.msra.mxu0 %v3679
    %4396 = vmatprep.mubr.bf16.mxu0 %v1988
    %4397 = vmatmul.mubr.bf16.gmra.mrb[0].mxu0 %v1987
    %v4398 = vpop.f32.mrb[0].mxu0
    %v4399 = vadd.f32 %v4358, %v4398
    %v4400 = vpop.f32.mrb[0].mxu0
    %v4401 = vadd.f32 %v4360, %v4400
    %v4402 = vpop.f32.mrb[0].mxu0
    %v4403 = vpop.f32.mrb[0].mxu0
    %4404 = vdwg.mxu0
    %4405 = vmatprep.subr.bf16.mxu0 %v3684
    %4406 = vmatpush1.bf16.msra.mxu0 %v3683
    %4407 = vmatprep.subr.bf16.mxu0 %v3688
    %4408 = vmatpush1.bf16.msra.mxu0 %v3687
    %4409 = vmatprep.subr.bf16.mxu0 %v3692
    %4410 = vmatpush1.bf16.msra.mxu0 %v3691
    %4411 = vmatprep.subr.bf16.mxu0 %v3696
    %4412 = vmatpush1.bf16.msra.mxu0 %v3695
    %4413 = vmatprep.subr.bf16.mxu0 %v3700
    %4414 = vmatpush1.bf16.msra.mxu0 %v3699
    %4415 = vmatprep.subr.bf16.mxu0 %v3704
    %4416 = vmatpush1.bf16.msra.mxu0 %v3703
    %4417 = vmatprep.subr.bf16.mxu0 %v3708
    %4418 = vmatpush1.bf16.msra.mxu0 %v3707
    %4419 = vmatprep.subr.bf16.mxu0 %v3712
    %4420 = vmatpush1.bf16.msra.mxu0 %v3711
    %4421 = vmatprep.subr.bf16.mxu0 %v3716
    %4422 = vmatpush1.bf16.msra.mxu0 %v3715
    %4423 = vmatprep.subr.bf16.mxu0 %v3720
    %4424 = vmatpush1.bf16.msra.mxu0 %v3719
    %4425 = vmatprep.subr.bf16.mxu0 %v3724
    %4426 = vmatpush1.bf16.msra.mxu0 %v3723
    %4427 = vmatprep.subr.bf16.mxu0 %v3728
    %4428 = vmatpush1.bf16.msra.mxu0 %v3727
    %4429 = vmatprep.subr.bf16.mxu0 %v3732
    %4430 = vmatpush1.bf16.msra.mxu0 %v3731
    %4431 = vmatprep.subr.bf16.mxu0 %v3736
    %4432 = vmatpush1.bf16.msra.mxu0 %v3735
    %4433 = vmatprep.subr.bf16.mxu0 %v3740
    %4434 = vmatpush1.bf16.msra.mxu0 %v3739
    %4435 = vmatprep.subr.bf16.mxu0 %v3744
    %4436 = vmatpush1.bf16.msra.mxu0 %v3743
    %4437 = vmatprep.mubr.bf16.mxu0 %v1990
    %4438 = vmatmul.mubr.bf16.gmra.mrb[0].mxu0 %v1989
    %v4439 = vpop.f32.mrb[0].mxu0
    %v4440 = vadd.f32 %v4399, %v4439
    %v4441 = vpop.f32.mrb[0].mxu0
    %v4442 = vadd.f32 %v4401, %v4441
    %v4443 = vpop.f32.mrb[0].mxu0
    %v4444 = vpop.f32.mrb[0].mxu0
    %4445 = vdwg.mxu0
    %4446 = vmatprep.subr.bf16.mxu0 %v3748
    %4447 = vmatpush1.bf16.msra.mxu0 %v3747
    %4448 = vmatprep.subr.bf16.mxu0 %v3752
    %4449 = vmatpush1.bf16.msra.mxu0 %v3751
    %4450 = vmatprep.subr.bf16.mxu0 %v3756
    %4451 = vmatpush1.bf16.msra.mxu0 %v3755
    %4452 = vmatprep.subr.bf16.mxu0 %v3760
    %4453 = vmatpush1.bf16.msra.mxu0 %v3759
    %4454 = vmatprep.subr.bf16.mxu0 %v3764
    %4455 = vmatpush1.bf16.msra.mxu0 %v3763
    %4456 = vmatprep.subr.bf16.mxu0 %v3768
    %4457 = vmatpush1.bf16.msra.mxu0 %v3767
    %4458 = vmatprep.subr.bf16.mxu0 %v3772
    %4459 = vmatpush1.bf16.msra.mxu0 %v3771
    %4460 = vmatprep.subr.bf16.mxu0 %v3776
    %4461 = vmatpush1.bf16.msra.mxu0 %v3775
    %4462 = vmatprep.subr.bf16.mxu0 %v3780
    %4463 = vmatpush1.bf16.msra.mxu0 %v3779
    %4464 = vmatprep.subr.bf16.mxu0 %v3784
    %4465 = vmatpush1.bf16.msra.mxu0 %v3783
    %4466 = vmatprep.subr.bf16.mxu0 %v3788
    %4467 = vmatpush1.bf16.msra.mxu0 %v3787
    %4468 = vmatprep.subr.bf16.mxu0 %v3792
    %4469 = vmatpush1.bf16.msra.mxu0 %v3791
    %4470 = vmatprep.subr.bf16.mxu0 %v3796
    %4471 = vmatpush1.bf16.msra.mxu0 %v3795
    %4472 = vmatprep.subr.bf16.mxu0 %v3800
    %4473 = vmatpush1.bf16.msra.mxu0 %v3799
    %4474 = vmatprep.subr.bf16.mxu0 %v3804
    %4475 = vmatpush1.bf16.msra.mxu0 %v3803
    %4476 = vmatprep.subr.bf16.mxu0 %v3808
    %4477 = vmatpush1.bf16.msra.mxu0 %v3807
    %4478 = vmatprep.mubr.bf16.mxu0 %v1992
    %4479 = vmatmul.mubr.bf16.gmra.mrb[0].mxu0 %v1991
    %v4480 = vpop.f32.mrb[0].mxu0
    %v4481 = vadd.f32 %v4440, %v4480
    %v4482 = vpop.f32.mrb[0].mxu0
    %v4483 = vadd.f32 %v4442, %v4482
    %v4484 = vpop.f32.mrb[0].mxu0
    %v4485 = vpop.f32.mrb[0].mxu0
    %4486 = vdwg.mxu0
    %4487 = vmatprep.subr.bf16.mxu0 %v3812
    %4488 = vmatpush1.bf16.msra.mxu0 %v3811
    %4489 = vmatprep.subr.bf16.mxu0 %v3816
    %4490 = vmatpush1.bf16.msra.mxu0 %v3815
    %4491 = vmatprep.subr.bf16.mxu0 %v3820
    %4492 = vmatpush1.bf16.msra.mxu0 %v3819
    %4493 = vmatprep.subr.bf16.mxu0 %v3824
    %4494 = vmatpush1.bf16.msra.mxu0 %v3823
    %4495 = vmatprep.subr.bf16.mxu0 %v3828
    %4496 = vmatpush1.bf16.msra.mxu0 %v3827
    %4497 = vmatprep.subr.bf16.mxu0 %v3832
    %4498 = vmatpush1.bf16.msra.mxu0 %v3831
    %4499 = vmatprep.subr.bf16.mxu0 %v3836
    %4500 = vmatpush1.bf16.msra.mxu0 %v3835
    %4501 = vmatprep.subr.bf16.mxu0 %v3840
    %4502 = vmatpush1.bf16.msra.mxu0 %v3839
    %4503 = vmatprep.subr.bf16.mxu0 %v3844
    %4504 = vmatpush1.bf16.msra.mxu0 %v3843
    %4505 = vmatprep.subr.bf16.mxu0 %v3848
    %4506 = vmatpush1.bf16.msra.mxu0 %v3847
    %4507 = vmatprep.subr.bf16.mxu0 %v3852
    %4508 = vmatpush1.bf16.msra.mxu0 %v3851
    %4509 = vmatprep.subr.bf16.mxu0 %v3856
    %4510 = vmatpush1.bf16.msra.mxu0 %v3855
    %4511 = vmatprep.subr.bf16.mxu0 %v3860
    %4512 = vmatpush1.bf16.msra.mxu0 %v3859
    %4513 = vmatprep.subr.bf16.mxu0 %v3864
    %4514 = vmatpush1.bf16.msra.mxu0 %v3863
    %4515 = vmatprep.subr.bf16.mxu0 %v3868
    %4516 = vmatpush1.bf16.msra.mxu0 %v3867
    %4517 = vmatprep.subr.bf16.mxu0 %v3872
    %4518 = vmatpush1.bf16.msra.mxu0 %v3871
    %4519 = vmatprep.mubr.bf16.mxu0 %v1994
    %4520 = vmatmul.mubr.bf16.gmra.mrb[0].mxu0 %v1993
    %v4521 = vpop.f32.mrb[0].mxu0
    %v4522 = vadd.f32 %v4481, %v4521
    %v4523 = vpop.f32.mrb[0].mxu0
    %v4524 = vadd.f32 %v4483, %v4523
    %v4525 = vpop.f32.mrb[0].mxu0
    %v4526 = vpop.f32.mrb[0].mxu0
    %4527 = vdwg.mxu0
    %4528 = vmatprep.subr.bf16.mxu0 %v3876
    %4529 = vmatpush1.bf16.msra.mxu0 %v3875
    %4530 = vmatprep.subr.bf16.mxu0 %v3880
    %4531 = vmatpush1.bf16.msra.mxu0 %v3879
    %4532 = vmatprep.subr.bf16.mxu0 %v3884
    %4533 = vmatpush1.bf16.msra.mxu0 %v3883
    %4534 = vmatprep.subr.bf16.mxu0 %v3888
    %4535 = vmatpush1.bf16.msra.mxu0 %v3887
    %4536 = vmatprep.subr.bf16.mxu0 %v3892
    %4537 = vmatpush1.bf16.msra.mxu0 %v3891
    %4538 = vmatprep.subr.bf16.mxu0 %v3896
    %4539 = vmatpush1.bf16.msra.mxu0 %v3895
    %4540 = vmatprep.subr.bf16.mxu0 %v3900
    %4541 = vmatpush1.bf16.msra.mxu0 %v3899
    %4542 = vmatprep.subr.bf16.mxu0 %v3904
    %4543 = vmatpush1.bf16.msra.mxu0 %v3903
    %4544 = vmatprep.subr.bf16.mxu0 %v3908
    %4545 = vmatpush1.bf16.msra.mxu0 %v3907
    %4546 = vmatprep.subr.bf16.mxu0 %v3912
    %4547 = vmatpush1.bf16.msra.mxu0 %v3911
    %4548 = vmatprep.subr.bf16.mxu0 %v3916
    %4549 = vmatpush1.bf16.msra.mxu0 %v3915
    %4550 = vmatprep.subr.bf16.mxu0 %v3920
    %4551 = vmatpush1.bf16.msra.mxu0 %v3919
    %4552 = vmatprep.subr.bf16.mxu0 %v3924
    %4553 = vmatpush1.bf16.msra.mxu0 %v3923
    %4554 = vmatprep.subr.bf16.mxu0 %v3928
    %4555 = vmatpush1.bf16.msra.mxu0 %v3927
    %4556 = vmatprep.subr.bf16.mxu0 %v3932
    %4557 = vmatpush1.bf16.msra.mxu0 %v3931
    %4558 = vmatprep.subr.bf16.mxu0 %v3936
    %4559 = vmatpush1.bf16.msra.mxu0 %v3935
    %4560 = vmatprep.mubr.bf16.mxu0 %v1996
    %4561 = vmatmul.mubr.bf16.gmra.mrb[0].mxu0 %v1995
    %v4562 = vpop.f32.mrb[0].mxu0
    %v4563 = vadd.f32 %v4522, %v4562
    %v4564 = vpop.f32.mrb[0].mxu0
    %v4565 = vadd.f32 %v4524, %v4564
    %v4566 = vpop.f32.mrb[0].mxu0
    %v4567 = vpop.f32.mrb[0].mxu0
    %4568 = vdwg.mxu0
    %4569 = vmatprep.subr.bf16.mxu0 %v3558
    %4570 = vmatpush1.bf16.msra.mxu0 %v3557
    %4571 = vmatprep.subr.bf16.mxu0 %v3562
    %4572 = vmatpush1.bf16.msra.mxu0 %v3561
    %4573 = vmatprep.subr.bf16.mxu0 %v3566
    %4574 = vmatpush1.bf16.msra.mxu0 %v3565
    %4575 = vmatprep.subr.bf16.mxu0 %v3570
    %4576 = vmatpush1.bf16.msra.mxu0 %v3569
    %4577 = vmatprep.subr.bf16.mxu0 %v3574
    %4578 = vmatpush1.bf16.msra.mxu0 %v3573
    %4579 = vmatprep.subr.bf16.mxu0 %v3578
    %4580 = vmatpush1.bf16.msra.mxu0 %v3577
    %4581 = vmatprep.subr.bf16.mxu0 %v3582
    %4582 = vmatpush1.bf16.msra.mxu0 %v3581
    %4583 = vmatprep.subr.bf16.mxu0 %v3586
    %4584 = vmatpush1.bf16.msra.mxu0 %v3585
    %4585 = vmatprep.subr.bf16.mxu0 %v3590
    %4586 = vmatpush1.bf16.msra.mxu0 %v3589
    %4587 = vmatprep.subr.bf16.mxu0 %v3594
    %4588 = vmatpush1.bf16.msra.mxu0 %v3593
    %4589 = vmatprep.subr.bf16.mxu0 %v3598
    %4590 = vmatpush1.bf16.msra.mxu0 %v3597
    %4591 = vmatprep.subr.bf16.mxu0 %v3602
    %4592 = vmatpush1.bf16.msra.mxu0 %v3601
    %4593 = vmatprep.subr.bf16.mxu0 %v3606
    %4594 = vmatpush1.bf16.msra.mxu0 %v3605
    %4595 = vmatprep.subr.bf16.mxu0 %v3610
    %4596 = vmatpush1.bf16.msra.mxu0 %v3609
    %4597 = vmatprep.subr.bf16.mxu0 %v3614
    %4598 = vmatpush1.bf16.msra.mxu0 %v3613
    %4599 = vmatprep.subr.bf16.mxu0 %v3618
    %4600 = vmatpush1.bf16.msra.mxu0 %v3617
    %4601 = vmatprep.mubr.bf16.mxu0 %v1986
    %4602 = vmatmul.mubr.bf16.gmra.mrb[0].mxu0 %v1985
    %v4603 = vpop.f32.mrb[0].mxu0
    %v4604 = vadd.f32 %v2394, %v4603
    %v4605 = vpop.f32.mrb[0].mxu0
    %v4606 = vadd.f32 %v2398, %v4605
    %v4607 = vpop.f32.mrb[0].mxu0
    %v4608 = vpop.f32.mrb[0].mxu0
    %4609 = vdwg.mxu0
    %4610 = vmatprep.subr.bf16.mxu0 %v3622
    %4611 = vmatpush1.bf16.msra.mxu0 %v3621
    %4612 = vmatprep.subr.bf16.mxu0 %v3626
    %4613 = vmatpush1.bf16.msra.mxu0 %v3625
    %4614 = vmatprep.subr.bf16.mxu0 %v3630
    %4615 = vmatpush1.bf16.msra.mxu0 %v3629
    %4616 = vmatprep.subr.bf16.mxu0 %v3634
    %4617 = vmatpush1.bf16.msra.mxu0 %v3633
    %4618 = vmatprep.subr.bf16.mxu0 %v3638
    %4619 = vmatpush1.bf16.msra.mxu0 %v3637
    %4620 = vmatprep.subr.bf16.mxu0 %v3642
    %4621 = vmatpush1.bf16.msra.mxu0 %v3641
    %4622 = vmatprep.subr.bf16.mxu0 %v3646
    %4623 = vmatpush1.bf16.msra.mxu0 %v3645
    %4624 = vmatprep.subr.bf16.mxu0 %v3650
    %4625 = vmatpush1.bf16.msra.mxu0 %v3649
    %4626 = vmatprep.subr.bf16.mxu0 %v3654
    %4627 = vmatpush1.bf16.msra.mxu0 %v3653
    %4628 = vmatprep.subr.bf16.mxu0 %v3658
    %4629 = vmatpush1.bf16.msra.mxu0 %v3657
    %4630 = vmatprep.subr.bf16.mxu0 %v3662
    %4631 = vmatpush1.bf16.msra.mxu0 %v3661
    %4632 = vmatprep.subr.bf16.mxu0 %v3666
    %4633 = vmatpush1.bf16.msra.mxu0 %v3665
    %4634 = vmatprep.subr.bf16.mxu0 %v3670
    %4635 = vmatpush1.bf16.msra.mxu0 %v3669
    %4636 = vmatprep.subr.bf16.mxu0 %v3674
    %4637 = vmatpush1.bf16.msra.mxu0 %v3673
    %4638 = vmatprep.subr.bf16.mxu0 %v3678
    %4639 = vmatpush1.bf16.msra.mxu0 %v3677
    %4640 = vmatprep.subr.bf16.mxu0 %v3682
    %4641 = vmatpush1.bf16.msra.mxu0 %v3681
    %4642 = vmatprep.mubr.bf16.mxu0 %v1988
    %4643 = vmatmul.mubr.bf16.gmra.mrb[0].mxu0 %v1987
    %v4644 = vpop.f32.mrb[0].mxu0
    %v4645 = vadd.f32 %v4604, %v4644
    %v4646 = vpop.f32.mrb[0].mxu0
    %v4647 = vadd.f32 %v4606, %v4646
    %v4648 = vpop.f32.mrb[0].mxu0
    %v4649 = vpop.f32.mrb[0].mxu0
    %4650 = vdwg.mxu0
    %4651 = vmatprep.subr.bf16.mxu0 %v3686
    %4652 = vmatpush1.bf16.msra.mxu0 %v3685
    %4653 = vmatprep.subr.bf16.mxu0 %v3690
    %4654 = vmatpush1.bf16.msra.mxu0 %v3689
    %4655 = vmatprep.subr.bf16.mxu0 %v3694
    %4656 = vmatpush1.bf16.msra.mxu0 %v3693
    %4657 = vmatprep.subr.bf16.mxu0 %v3698
    %4658 = vmatpush1.bf16.msra.mxu0 %v3697
    %4659 = vmatprep.subr.bf16.mxu0 %v3702
    %4660 = vmatpush1.bf16.msra.mxu0 %v3701
    %4661 = vmatprep.subr.bf16.mxu0 %v3706
    %4662 = vmatpush1.bf16.msra.mxu0 %v3705
    %4663 = vmatprep.subr.bf16.mxu0 %v3710
    %4664 = vmatpush1.bf16.msra.mxu0 %v3709
    %4665 = vmatprep.subr.bf16.mxu0 %v3714
    %4666 = vmatpush1.bf16.msra.mxu0 %v3713
    %4667 = vmatprep.subr.bf16.mxu0 %v3718
    %4668 = vmatpush1.bf16.msra.mxu0 %v3717
    %4669 = vmatprep.subr.bf16.mxu0 %v3722
    %4670 = vmatpush1.bf16.msra.mxu0 %v3721
    %4671 = vmatprep.subr.bf16.mxu0 %v3726
    %4672 = vmatpush1.bf16.msra.mxu0 %v3725
    %4673 = vmatprep.subr.bf16.mxu0 %v3730
    %4674 = vmatpush1.bf16.msra.mxu0 %v3729
    %4675 = vmatprep.subr.bf16.mxu0 %v3734
    %4676 = vmatpush1.bf16.msra.mxu0 %v3733
    %4677 = vmatprep.subr.bf16.mxu0 %v3738
    %4678 = vmatpush1.bf16.msra.mxu0 %v3737
    %4679 = vmatprep.subr.bf16.mxu0 %v3742
    %4680 = vmatpush1.bf16.msra.mxu0 %v3741
    %4681 = vmatprep.subr.bf16.mxu0 %v3746
    %4682 = vmatpush1.bf16.msra.mxu0 %v3745
    %4683 = vmatprep.mubr.bf16.mxu0 %v1990
    %4684 = vmatmul.mubr.bf16.gmra.mrb[0].mxu0 %v1989
    %v4685 = vpop.f32.mrb[0].mxu0
    %v4686 = vadd.f32 %v4645, %v4685
    %v4687 = vpop.f32.mrb[0].mxu0
    %v4688 = vadd.f32 %v4647, %v4687
    %v4689 = vpop.f32.mrb[0].mxu0
    %v4690 = vpop.f32.mrb[0].mxu0
    %4691 = vdwg.mxu0
    %4692 = vmatprep.subr.bf16.mxu0 %v3750
    %4693 = vmatpush1.bf16.msra.mxu0 %v3749
    %4694 = vmatprep.subr.bf16.mxu0 %v3754
    %4695 = vmatpush1.bf16.msra.mxu0 %v3753
    %4696 = vmatprep.subr.bf16.mxu0 %v3758
    %4697 = vmatpush1.bf16.msra.mxu0 %v3757
    %4698 = vmatprep.subr.bf16.mxu0 %v3762
    %4699 = vmatpush1.bf16.msra.mxu0 %v3761
    %4700 = vmatprep.subr.bf16.mxu0 %v3766
    %4701 = vmatpush1.bf16.msra.mxu0 %v3765
    %4702 = vmatprep.subr.bf16.mxu0 %v3770
    %4703 = vmatpush1.bf16.msra.mxu0 %v3769
    %4704 = vmatprep.subr.bf16.mxu0 %v3774
    %4705 = vmatpush1.bf16.msra.mxu0 %v3773
    %4706 = vmatprep.subr.bf16.mxu0 %v3778
    %4707 = vmatpush1.bf16.msra.mxu0 %v3777
    %4708 = vmatprep.subr.bf16.mxu0 %v3782
    %4709 = vmatpush1.bf16.msra.mxu0 %v3781
    %4710 = vmatprep.subr.bf16.mxu0 %v3786
    %4711 = vmatpush1.bf16.msra.mxu0 %v3785
    %4712 = vmatprep.subr.bf16.mxu0 %v3790
    %4713 = vmatpush1.bf16.msra.mxu0 %v3789
    %4714 = vmatprep.subr.bf16.mxu0 %v3794
    %4715 = vmatpush1.bf16.msra.mxu0 %v3793
    %4716 = vmatprep.subr.bf16.mxu0 %v3798
    %4717 = vmatpush1.bf16.msra.mxu0 %v3797
    %4718 = vmatprep.subr.bf16.mxu0 %v3802
    %4719 = vmatpush1.bf16.msra.mxu0 %v3801
    %4720 = vmatprep.subr.bf16.mxu0 %v3806
    %4721 = vmatpush1.bf16.msra.mxu0 %v3805
    %4722 = vmatprep.subr.bf16.mxu0 %v3810
    %4723 = vmatpush1.bf16.msra.mxu0 %v3809
    %4724 = vmatprep.mubr.bf16.mxu0 %v1992
    %4725 = vmatmul.mubr.bf16.gmra.mrb[0].mxu0 %v1991
    %v4726 = vpop.f32.mrb[0].mxu0
    %v4727 = vadd.f32 %v4686, %v4726
    %v4728 = vpop.f32.mrb[0].mxu0
    %v4729 = vadd.f32 %v4688, %v4728
    %v4730 = vpop.f32.mrb[0].mxu0
    %v4731 = vpop.f32.mrb[0].mxu0
    %4732 = vdwg.mxu0
    %4733 = vmatprep.subr.bf16.mxu0 %v3814
    %4734 = vmatpush1.bf16.msra.mxu0 %v3813
    %4735 = vmatprep.subr.bf16.mxu0 %v3818
    %4736 = vmatpush1.bf16.msra.mxu0 %v3817
    %4737 = vmatprep.subr.bf16.mxu0 %v3822
    %4738 = vmatpush1.bf16.msra.mxu0 %v3821
    %4739 = vmatprep.subr.bf16.mxu0 %v3826
    %4740 = vmatpush1.bf16.msra.mxu0 %v3825
    %4741 = vmatprep.subr.bf16.mxu0 %v3830
    %4742 = vmatpush1.bf16.msra.mxu0 %v3829
    %4743 = vmatprep.subr.bf16.mxu0 %v3834
    %4744 = vmatpush1.bf16.msra.mxu0 %v3833
    %4745 = vmatprep.subr.bf16.mxu0 %v3838
    %4746 = vmatpush1.bf16.msra.mxu0 %v3837
    %4747 = vmatprep.subr.bf16.mxu0 %v3842
    %4748 = vmatpush1.bf16.msra.mxu0 %v3841
    %4749 = vmatprep.subr.bf16.mxu0 %v3846
    %4750 = vmatpush1.bf16.msra.mxu0 %v3845
    %4751 = vmatprep.subr.bf16.mxu0 %v3850
    %4752 = vmatpush1.bf16.msra.mxu0 %v3849
    %4753 = vmatprep.subr.bf16.mxu0 %v3854
    %4754 = vmatpush1.bf16.msra.mxu0 %v3853
    %4755 = vmatprep.subr.bf16.mxu0 %v3858
    %4756 = vmatpush1.bf16.msra.mxu0 %v3857
    %4757 = vmatprep.subr.bf16.mxu0 %v3862
    %4758 = vmatpush1.bf16.msra.mxu0 %v3861
    %4759 = vmatprep.subr.bf16.mxu0 %v3866
    %4760 = vmatpush1.bf16.msra.mxu0 %v3865
    %4761 = vmatprep.subr.bf16.mxu0 %v3870
    %4762 = vmatpush1.bf16.msra.mxu0 %v3869
    %4763 = vmatprep.subr.bf16.mxu0 %v3874
    %4764 = vmatpush1.bf16.msra.mxu0 %v3873
    %4765 = vmatprep.mubr.bf16.mxu0 %v1994
    %4766 = vmatmul.mubr.bf16.gmra.mrb[0].mxu0 %v1993
    %v4767 = vpop.f32.mrb[0].mxu0
    %v4768 = vadd.f32 %v4727, %v4767
    %v4769 = vpop.f32.mrb[0].mxu0
    %v4770 = vadd.f32 %v4729, %v4769
    %v4771 = vpop.f32.mrb[0].mxu0
    %v4772 = vpop.f32.mrb[0].mxu0
    %4773 = vdwg.mxu0
    %4774 = vmatprep.subr.bf16.mxu0 %v3878
    %4775 = vmatpush1.bf16.msra.mxu0 %v3877
    %4776 = vmatprep.subr.bf16.mxu0 %v3882
    %4777 = vmatpush1.bf16.msra.mxu0 %v3881
    %4778 = vmatprep.subr.bf16.mxu0 %v3886
    %4779 = vmatpush1.bf16.msra.mxu0 %v3885
    %4780 = vmatprep.subr.bf16.mxu0 %v3890
    %4781 = vmatpush1.bf16.msra.mxu0 %v3889
    %4782 = vmatprep.subr.bf16.mxu0 %v3894
    %4783 = vmatpush1.bf16.msra.mxu0 %v3893
    %4784 = vmatprep.subr.bf16.mxu0 %v3898
    %4785 = vmatpush1.bf16.msra.mxu0 %v3897
    %4786 = vmatprep.subr.bf16.mxu0 %v3902
    %4787 = vmatpush1.bf16.msra.mxu0 %v3901
    %4788 = vmatprep.subr.bf16.mxu0 %v3906
    %4789 = vmatpush1.bf16.msra.mxu0 %v3905
    %4790 = vmatprep.subr.bf16.mxu0 %v3910
    %4791 = vmatpush1.bf16.msra.mxu0 %v3909
    %4792 = vmatprep.subr.bf16.mxu0 %v3914
    %4793 = vmatpush1.bf16.msra.mxu0 %v3913
    %4794 = vmatprep.subr.bf16.mxu0 %v3918
    %4795 = vmatpush1.bf16.msra.mxu0 %v3917
    %4796 = vmatprep.subr.bf16.mxu0 %v3922
    %4797 = vmatpush1.bf16.msra.mxu0 %v3921
    %4798 = vmatprep.subr.bf16.mxu0 %v3926
    %4799 = vmatpush1.bf16.msra.mxu0 %v3925
    %4800 = vmatprep.subr.bf16.mxu0 %v3930
    %4801 = vmatpush1.bf16.msra.mxu0 %v3929
    %4802 = vmatprep.subr.bf16.mxu0 %v3934
    %4803 = vmatpush1.bf16.msra.mxu0 %v3933
    %4804 = vmatprep.subr.bf16.mxu0 %v3938
    %4805 = vmatpush1.bf16.msra.mxu0 %v3937
    %4806 = vmatprep.mubr.bf16.mxu0 %v1996
    %4807 = vmatmul.mubr.bf16.gmra.mrb[0].mxu0 %v1995
    %v4808 = vpop.f32.mrb[0].mxu0
    %v4809 = vadd.f32 %v4768, %v4808
    %v4810 = vpop.f32.mrb[0].mxu0
    %v4811 = vadd.f32 %v4770, %v4810
    %v4812 = vpop.f32.mrb[0].mxu0
    %v4813 = vpop.f32.mrb[0].mxu0
    %4814 = vdwg.mxu0
    %v4815 = vmul.f32 %v4563, 0.2
    %v4816 = vmul.f32 %v4565, 0.2
    %v4817 = vmul.f32 %v4809, 0.2
    %v4818 = vmul.f32 %v4811, 0.2
    %v4819 = vmax.f32 %v4563, %v4815
    %v4820 = vmax.f32 %v4565, %v4816
    %v4821 = vmax.f32 %v4809, %v4817
    %v4822 = vmax.f32 %v4811, %v4818
    %v4823 = vpack.c.bf16 %v4819, %v4819
    %v4824 = vpack.c.bf16 %v4820, %v4820
    %v4825 = vpack.c.bf16 %v4821, %v4821
    %v4826 = vpack.c.bf16 %v4822, %v4822
    %v4827 = vld [vmem:[#allocation10] sm:$0xf]
    %v4828 = vld [vmem:[#allocation10 + $0x4] sm:$0xf]
    %v4829 = vld [vmem:[#allocation10 + $0x8] sm:$0xf]
    %v4830 = vld [vmem:[#allocation10 + $0xc] sm:$0xf]
    %v4831 = vld [vmem:[#allocation10 + $0x10] sm:$0xf]
    %v4832 = vld [vmem:[#allocation10 + $0x14] sm:$0xf]
    %v4833 = vld [vmem:[#allocation10 + $0x18] sm:$0xf]
    %v4834 = vld [vmem:[#allocation10 + $0x1c] sm:$0xf]
    %v4835 = vld [vmem:[#allocation10 + $0x20] sm:$0xf]
    %v4836 = vld [vmem:[#allocation10 + $0x24] sm:$0xf]
    %v4837 = vld [vmem:[#allocation10 + $0x28] sm:$0xf]
    %v4838 = vld [vmem:[#allocation10 + $0x2c] sm:$0xf]
    %v4839 = vld [vmem:[#allocation10 + $0x30] sm:$0xf]
    %v4840 = vld [vmem:[#allocation10 + $0x34] sm:$0xf]
    %v4841 = vld [vmem:[#allocation10 + $0x38] sm:$0xf]
    %v4842 = vld [vmem:[#allocation10 + $0x3c] sm:$0xf]
    %v4843 = vld [vmem:[#allocation10 + $0x40] sm:$0xf]
    %v4844 = vld [vmem:[#allocation10 + $0x44] sm:$0xf]
    %v4845 = vld [vmem:[#allocation10 + $0x48] sm:$0xf]
    %v4846 = vld [vmem:[#allocation10 + $0x4c] sm:$0xf]
    %v4847 = vld [vmem:[#allocation10 + $0x50] sm:$0xf]
    %v4848 = vld [vmem:[#allocation10 + $0x54] sm:$0xf]
    %v4849 = vld [vmem:[#allocation10 + $0x58] sm:$0xf]
    %v4850 = vld [vmem:[#allocation10 + $0x5c] sm:$0xf]
    %v4851 = vld [vmem:[#allocation10 + $0x60] sm:$0xf]
    %v4852 = vld [vmem:[#allocation10 + $0x64] sm:$0xf]
    %v4853 = vld [vmem:[#allocation10 + $0x68] sm:$0xf]
    %v4854 = vld [vmem:[#allocation10 + $0x6c] sm:$0xf]
    %v4855 = vld [vmem:[#allocation10 + $0x70] sm:$0xf]
    %v4856 = vld [vmem:[#allocation10 + $0x74] sm:$0xf]
    %v4857 = vld [vmem:[#allocation10 + $0x78] sm:$0xf]
    %v4858 = vld [vmem:[#allocation10 + $0x7c] sm:$0xf]
    %v4859 = vld [vmem:[#allocation10 + $0x80] sm:$0xf]
    %v4860 = vld [vmem:[#allocation10 + $0x84] sm:$0xf]
    %v4861 = vld [vmem:[#allocation10 + $0x88] sm:$0xf]
    %v4862 = vld [vmem:[#allocation10 + $0x8c] sm:$0xf]
    %v4863 = vld [vmem:[#allocation10 + $0x90] sm:$0xf]
    %v4864 = vld [vmem:[#allocation10 + $0x94] sm:$0xf]
    %v4865 = vld [vmem:[#allocation10 + $0x98] sm:$0xf]
    %v4866 = vld [vmem:[#allocation10 + $0x9c] sm:$0xf]
    %v4867 = vld [vmem:[#allocation10 + $0xa0] sm:$0xf]
    %v4868 = vld [vmem:[#allocation10 + $0xa4] sm:$0xf]
    %v4869 = vld [vmem:[#allocation10 + $0xa8] sm:$0xf]
    %v4870 = vld [vmem:[#allocation10 + $0xac] sm:$0xf]
    %v4871 = vld [vmem:[#allocation10 + $0xb0] sm:$0xf]
    %v4872 = vld [vmem:[#allocation10 + $0xb4] sm:$0xf]
    %v4873 = vld [vmem:[#allocation10 + $0xb8] sm:$0xf]
    %v4874 = vld [vmem:[#allocation10 + $0xbc] sm:$0xf]
    %v4875 = vld [vmem:[#allocation10 + $0xc0] sm:$0xf]
    %v4876 = vld [vmem:[#allocation10 + $0xc4] sm:$0xf]
    %v4877 = vld [vmem:[#allocation10 + $0xc8] sm:$0xf]
    %v4878 = vld [vmem:[#allocation10 + $0xcc] sm:$0xf]
    %v4879 = vld [vmem:[#allocation10 + $0xd0] sm:$0xf]
    %v4880 = vld [vmem:[#allocation10 + $0xd4] sm:$0xf]
    %v4881 = vld [vmem:[#allocation10 + $0xd8] sm:$0xf]
    %v4882 = vld [vmem:[#allocation10 + $0xdc] sm:$0xf]
    %v4883 = vld [vmem:[#allocation10 + $0xe0] sm:$0xf]
    %v4884 = vld [vmem:[#allocation10 + $0xe4] sm:$0xf]
    %v4885 = vld [vmem:[#allocation10 + $0xe8] sm:$0xf]
    %v4886 = vld [vmem:[#allocation10 + $0xec] sm:$0xf]
    %v4887 = vld [vmem:[#allocation10 + $0xf0] sm:$0xf]
    %v4888 = vld [vmem:[#allocation10 + $0xf4] sm:$0xf]
    %v4889 = vld [vmem:[#allocation10 + $0xf8] sm:$0xf]
    %v4890 = vld [vmem:[#allocation10 + $0xfc] sm:$0xf]
    %v4891 = vld [vmem:[#allocation11] sm:$0x1]
    %v4893 = vlaneseq
    %v4894 = vshrl.u32 %v4893, 7
    %v4895 = vsub.s32 0, %v4894
    %v4896 = vrot.slane %v4891, %v4895
    %v4962 = vunpack.c.l.b16 %v4827
    %v4963 = vunpack.c.l.b16 %v4828
    %v4964 = vunpack.c.l.b16 %v4829
    %v4965 = vunpack.c.l.b16 %v4830
    %v4966 = vunpack.c.l.b16 %v4831
    %v4967 = vunpack.c.l.b16 %v4832
    %v4968 = vunpack.c.l.b16 %v4833
    %v4969 = vunpack.c.l.b16 %v4834
    %v4970 = vunpack.c.l.b16 %v4835
    %v4971 = vunpack.c.l.b16 %v4836
    %v4972 = vunpack.c.l.b16 %v4837
    %v4973 = vunpack.c.l.b16 %v4838
    %v4974 = vunpack.c.l.b16 %v4839
    %v4975 = vunpack.c.l.b16 %v4840
    %v4976 = vunpack.c.l.b16 %v4841
    %v4977 = vunpack.c.l.b16 %v4842
    %v4978 = vunpack.c.l.b16 %v4843
    %v4979 = vunpack.c.l.b16 %v4844
    %v4980 = vunpack.c.l.b16 %v4845
    %v4981 = vunpack.c.l.b16 %v4846
    %v4982 = vunpack.c.l.b16 %v4847
    %v4983 = vunpack.c.l.b16 %v4848
    %v4984 = vunpack.c.l.b16 %v4849
    %v4985 = vunpack.c.l.b16 %v4850
    %v4986 = vunpack.c.l.b16 %v4851
    %v4987 = vunpack.c.l.b16 %v4852
    %v4988 = vunpack.c.l.b16 %v4853
    %v4989 = vunpack.c.l.b16 %v4854
    %v4990 = vunpack.c.l.b16 %v4855
    %v4991 = vunpack.c.l.b16 %v4856
    %v4992 = vunpack.c.l.b16 %v4857
    %v4993 = vunpack.c.l.b16 %v4858
    %v4994 = vunpack.c.l.b16 %v4859
    %v4995 = vunpack.c.l.b16 %v4860
    %v4996 = vunpack.c.l.b16 %v4861
    %v4997 = vunpack.c.l.b16 %v4862
    %v4998 = vunpack.c.l.b16 %v4863
    %v4999 = vunpack.c.l.b16 %v4864
    %v5000 = vunpack.c.l.b16 %v4865
    %v5001 = vunpack.c.l.b16 %v4866
    %v5002 = vunpack.c.l.b16 %v4867
    %v5003 = vunpack.c.l.b16 %v4868
    %v5004 = vunpack.c.l.b16 %v4869
    %v5005 = vunpack.c.l.b16 %v4870
    %v5006 = vunpack.c.l.b16 %v4871
    %v5007 = vunpack.c.l.b16 %v4872
    %v5008 = vunpack.c.l.b16 %v4873
    %v5009 = vunpack.c.l.b16 %v4874
    %v5010 = vunpack.c.l.b16 %v4875
    %v5011 = vunpack.c.l.b16 %v4876
    %v5012 = vunpack.c.l.b16 %v4877
    %v5013 = vunpack.c.l.b16 %v4878
    %v5014 = vunpack.c.l.b16 %v4879
    %v5015 = vunpack.c.l.b16 %v4880
    %v5016 = vunpack.c.l.b16 %v4881
    %v5017 = vunpack.c.l.b16 %v4882
    %v5018 = vunpack.c.l.b16 %v4883
    %v5019 = vunpack.c.l.b16 %v4884
    %v5020 = vunpack.c.l.b16 %v4885
    %v5021 = vunpack.c.l.b16 %v4886
    %v5022 = vunpack.c.l.b16 %v4887
    %v5023 = vunpack.c.l.b16 %v4888
    %v5024 = vunpack.c.l.b16 %v4889
    %v5025 = vunpack.c.l.b16 %v4890
    %v5026 = vpack.c.b16 %v4963, %v4962
    %v5027 = vpack.c.b16 %v4965, %v4964
    %v5028 = vpack.c.b16 %v4967, %v4966
    %v5029 = vpack.c.b16 %v4969, %v4968
    %v5030 = vpack.c.b16 %v4971, %v4970
    %v5031 = vpack.c.b16 %v4973, %v4972
    %v5032 = vpack.c.b16 %v4975, %v4974
    %v5033 = vpack.c.b16 %v4977, %v4976
    %v5034 = vpack.c.b16 %v4979, %v4978
    %v5035 = vpack.c.b16 %v4981, %v4980
    %v5036 = vpack.c.b16 %v4983, %v4982
    %v5037 = vpack.c.b16 %v4985, %v4984
    %v5038 = vpack.c.b16 %v4987, %v4986
    %v5039 = vpack.c.b16 %v4989, %v4988
    %v5040 = vpack.c.b16 %v4991, %v4990
    %v5041 = vpack.c.b16 %v4993, %v4992
    %v5042 = vpack.c.b16 %v4995, %v4994
    %v5043 = vpack.c.b16 %v4997, %v4996
    %v5044 = vpack.c.b16 %v4999, %v4998
    %v5045 = vpack.c.b16 %v5001, %v5000
    %v5046 = vpack.c.b16 %v5003, %v5002
    %v5047 = vpack.c.b16 %v5005, %v5004
    %v5048 = vpack.c.b16 %v5007, %v5006
    %v5049 = vpack.c.b16 %v5009, %v5008
    %v5050 = vpack.c.b16 %v5011, %v5010
    %v5051 = vpack.c.b16 %v5013, %v5012
    %v5052 = vpack.c.b16 %v5015, %v5014
    %v5053 = vpack.c.b16 %v5017, %v5016
    %v5054 = vpack.c.b16 %v5019, %v5018
    %v5055 = vpack.c.b16 %v5021, %v5020
    %v5056 = vpack.c.b16 %v5023, %v5022
    %v5057 = vpack.c.b16 %v5025, %v5024
    %5090 = vmatprep.subr.bf16.mxu0 0
    %5091 = vmatpush1.bf16.msra.mxu0 %v5026
    %5092 = vmatprep.subr.bf16.mxu0 0
    %5093 = vmatpush1.bf16.msra.mxu0 %v5027
    %5094 = vmatprep.subr.bf16.mxu0 0
    %5095 = vmatpush1.bf16.msra.mxu0 %v5028
    %5096 = vmatprep.subr.bf16.mxu0 0
    %5097 = vmatpush1.bf16.msra.mxu0 %v5029
    %5098 = vmatprep.subr.bf16.mxu0 0
    %5099 = vmatpush1.bf16.msra.mxu0 %v5030
    %5100 = vmatprep.subr.bf16.mxu0 0
    %5101 = vmatpush1.bf16.msra.mxu0 %v5031
    %5102 = vmatprep.subr.bf16.mxu0 0
    %5103 = vmatpush1.bf16.msra.mxu0 %v5032
    %5104 = vmatprep.subr.bf16.mxu0 0
    %5105 = vmatpush1.bf16.msra.mxu0 %v5033
    %5106 = vmatprep.subr.bf16.mxu0 0
    %5107 = vmatpush1.bf16.msra.mxu0 %v5034
    %5108 = vmatprep.subr.bf16.mxu0 0
    %5109 = vmatpush1.bf16.msra.mxu0 %v5035
    %5110 = vmatprep.subr.bf16.mxu0 0
    %5111 = vmatpush1.bf16.msra.mxu0 %v5036
    %5112 = vmatprep.subr.bf16.mxu0 0
    %5113 = vmatpush1.bf16.msra.mxu0 %v5037
    %5114 = vmatprep.subr.bf16.mxu0 0
    %5115 = vmatpush1.bf16.msra.mxu0 %v5038
    %5116 = vmatprep.subr.bf16.mxu0 0
    %5117 = vmatpush1.bf16.msra.mxu0 %v5039
    %5118 = vmatprep.subr.bf16.mxu0 0
    %5119 = vmatpush1.bf16.msra.mxu0 %v5040
    %5120 = vmatprep.subr.bf16.mxu0 0
    %5121 = vmatpush1.bf16.msra.mxu0 %v5041
    %5122 = vmatprep.mubr.bf16.mxu0 %v4824
    %5123 = vmatmul.mubr.bf16.gmra.mrb[0].mxu0 %v4823
    %v5124 = vpop.f32.mrb[0].mxu0
    %v5125 = vadd.f32 %v4896, %v5124
    %v5126 = vpop.f32.mrb[0].mxu0
    %v5127 = vpop.f32.mrb[0].mxu0
    %v5128 = vpop.f32.mrb[0].mxu0
    %5129 = vdwg.mxu0
    %5130 = vmatprep.subr.bf16.mxu0 0
    %5131 = vmatpush1.bf16.msra.mxu0 %v5042
    %5132 = vmatprep.subr.bf16.mxu0 0
    %5133 = vmatpush1.bf16.msra.mxu0 %v5043
    %5134 = vmatprep.subr.bf16.mxu0 0
    %5135 = vmatpush1.bf16.msra.mxu0 %v5044
    %5136 = vmatprep.subr.bf16.mxu0 0
    %5137 = vmatpush1.bf16.msra.mxu0 %v5045
    %5138 = vmatprep.subr.bf16.mxu0 0
    %5139 = vmatpush1.bf16.msra.mxu0 %v5046
    %5140 = vmatprep.subr.bf16.mxu0 0
    %5141 = vmatpush1.bf16.msra.mxu0 %v5047
    %5142 = vmatprep.subr.bf16.mxu0 0
    %5143 = vmatpush1.bf16.msra.mxu0 %v5048
    %5144 = vmatprep.subr.bf16.mxu0 0
    %5145 = vmatpush1.bf16.msra.mxu0 %v5049
    %5146 = vmatprep.subr.bf16.mxu0 0
    %5147 = vmatpush1.bf16.msra.mxu0 %v5050
    %5148 = vmatprep.subr.bf16.mxu0 0
    %5149 = vmatpush1.bf16.msra.mxu0 %v5051
    %5150 = vmatprep.subr.bf16.mxu0 0
    %5151 = vmatpush1.bf16.msra.mxu0 %v5052
    %5152 = vmatprep.subr.bf16.mxu0 0
    %5153 = vmatpush1.bf16.msra.mxu0 %v5053
    %5154 = vmatprep.subr.bf16.mxu0 0
    %5155 = vmatpush1.bf16.msra.mxu0 %v5054
    %5156 = vmatprep.subr.bf16.mxu0 0
    %5157 = vmatpush1.bf16.msra.mxu0 %v5055
    %5158 = vmatprep.subr.bf16.mxu0 0
    %5159 = vmatpush1.bf16.msra.mxu0 %v5056
    %5160 = vmatprep.subr.bf16.mxu0 0
    %5161 = vmatpush1.bf16.msra.mxu0 %v5057
    %5162 = vmatprep.mubr.bf16.mxu0 %v4826
    %5163 = vmatmul.mubr.bf16.gmra.mrb[0].mxu0 %v4825
    %v5164 = vpop.f32.mrb[0].mxu0
    %v5165 = vadd.f32 %v5125, %v5164
    %v5166 = vpop.f32.mrb[0].mxu0
    %v5167 = vpop.f32.mrb[0].mxu0
    %v5168 = vpop.f32.mrb[0].mxu0
    %5169 = vdwg.mxu0
    %5170 = vst [vmem:[#allocation13] sm:$0xff] %v5165
    // Predicated region
    $region50: #{tpu_custom_call.1} parent=1 // pred_check
      _
    $region51: #{tpu_custom_call.1} parent=1 // pred_check_branch
      %5172 = sbr.rel (0) target = $region53
    $region52: #{tpu_custom_call.1} parent=1 // pred_region
      %s5174 = ssub.s32 128, 128
      %5175 = vsyncadd [#allocation4], %s5174
      %s5177 = sshll.u32 [#allocation13], 4
      %s5178 = int_to_ptr.vmem [resolvable:$true] %s5177
      %5180 = dma.vmem_to_hbm [thread:$0]  %s5178, 128, %s6, [#allocation4]
    $region53: #{tpu_custom_call.1} parent=1 // pred_fallthru
      _
    // Predicated region
    $region54: #{tpu_custom_call.1} parent=1 // pred_check
      _
    $region55: #{tpu_custom_call.1} parent=1 // pred_check_branch
      %5182 = sbr.rel (0) target = $region57
    $region56: #{tpu_custom_call.1} parent=1 // pred_region
      %5183 = dma.done [#allocation4], 128
    $region57: #{tpu_custom_call.1} parent=1 // pred_fallthru
      _
    %5184 = vsyncpa [#allocation3], 1
    %5185 = vsyncpa [#allocation6], 1
    %5186 = vsyncpa [#allocation9], 1
    %5187 = vsyncpa [#allocation12], 1
    %5188 = vsyncpa [#allocation4], 1

</llo_original>
